<compile_context>
chip_gen: v6e
topology: v6e:2x2x1
jax: 0.10.0
libtpu: 0.0.40
codegen_flags: <defaults>
</compile_context>

<pallas_src>
import functools

import jax
import jax.numpy as jnp
from jax import lax
from jax.experimental import pallas as pl
from jax.experimental.pallas import tpu as pltpu

EPS = 1e-5
LANE = 128

CPARAMS = pltpu.CompilerParams(
    dimension_semantics=("parallel", "parallel"),
    # 48 MiB scoped VMEM: well above the 16/32 MiB defaults (bigger tiles on v5e/v6e)
    # while staying inside v7x's 64 MiB-per-TensorCore physical budget.
    vmem_limit_bytes=48 * 1024 * 1024,
)


def _round_up(n, m):
    return ((n + m - 1) // m) * m


# ---------------------------------------------------------------------------
# Pass-1 kernels: conv matmul (MXU, f32 accumulate) + per-tile partial BN moments.
# ---------------------------------------------------------------------------
def _conv3x3_stats_kernel(x_ref, w_ref, y_ref, ssum_ref, ssq_ref):
    """Implicit-im2col 3x3 stride-1 pad-1 conv over one image + partial BN moments.

    x_ref: (1, Hp, Wp, Ci) bf16 spatially padded image (streamed from HBM once)
    w_ref: (9, Ci, CB)     bf16 tap-major weights
    y_ref: (1, Ho*Wo, CB)  bf16 raw conv output
    ssum_ref / ssq_ref: (1, 1, CB) f32 partial per-channel sum / sum-of-squares
    """
    _, hp, wp, ci = x_ref.shape
    ho, wo = hp - 2, wp - 2
    acc = None
    for kh in range(3):
        for kw in range(3):
            # Shifted VMEM window load; the f32 round trip keeps the (ho, wo) row
            # collapse an aligned (data-movement-free) reshape for any Wo % 8 == 0.
            tap = x_ref[0, kh:kh + ho, kw:kw + wo, :].astype(jnp.float32)
            tap = tap.reshape(ho * wo, ci).astype(jnp.bfloat16)
            part = jnp.dot(tap, w_ref[kh * 3 + kw],
                           preferred_element_type=jnp.float32)        # MXU
            acc = part if acc is None else acc + part
    y_ref[...] = acc[None].astype(y_ref.dtype)
    # direct lane-dense moment stores (no concat/reshape round trip)
    ssum_ref[...] = jnp.sum(acc, axis=0, keepdims=True)[None]
    ssq_ref[...] = jnp.sum(acc * acc, axis=0, keepdims=True)[None]


def _matmul_stats_kernel(x_ref, w_ref, y_ref, ssum_ref, ssq_ref):
    """Generic row-tiled matmul + partial BN moments (pre-expanded operands)."""
    acc = jnp.dot(x_ref[...], w_ref[...], preferred_element_type=jnp.float32)
    y_ref[...] = acc.astype(y_ref.dtype)
    ssum_ref[...] = jnp.sum(acc, axis=0, keepdims=True)[None]
    ssq_ref[...] = jnp.sum(acc * acc, axis=0, keepdims=True)[None]


# ---------------------------------------------------------------------------
# Pass-2 kernels: y*scale + shift (+ scaled residual) (+ ReLU).
# ---------------------------------------------------------------------------
def _norm_kernel(y_ref, sc_ref, sh_ref, o_ref, *, do_relu):
    y = y_ref[...].astype(jnp.float32) * sc_ref[...] + sh_ref[...]
    if do_relu:
        y = jnp.maximum(y, 0.0)
    o_ref[...] = y.astype(o_ref.dtype)


def _norm_res_relu_kernel(y_ref, sc_ref, sh_ref, r_ref, rsc_ref, rsh_ref, o_ref):
    y = y_ref[...].astype(jnp.float32) * sc_ref[...] + sh_ref[...]
    r = r_ref[...].astype(jnp.float32) * rsc_ref[...] + rsh_ref[...]
    o_ref[...] = jnp.maximum(y + r, 0.0).astype(o_ref.dtype)


# ---------------------------------------------------------------------------
# pallas_call wrappers
# ---------------------------------------------------------------------------
def _conv3x3_bn_pass1(x_nhwc, w9, cb):
    """Implicit-im2col 3x3/stride-1/pad-1 conv + partial BN moments."""
    n, h, w, cin = x_nhwc.shape
    _, ci, cp = w9.shape
    xp = jnp.pad(x_nhwc, ((0, 0), (1, 1), (1, 1), (0, ci - cin)))
    hp, wp = h + 2, w + 2
    r = h * w
    ncb = cp // cb
    # TODO(synk): for very large feature maps (R*cb f32 blocks > ~10 MiB) add an H-block
    # grid axis; whole-image blocks are fine for typical ResNet shapes.
    flops = 2 * n * r * 9 * ci * cp
    bytes_acc = (n * hp * wp * ci * 2 + 9 * ci * cp * 2
                 + n * r * cp * 2 + 2 * n * cp * 4)
    return pl.pallas_call(
        _conv3x3_stats_kernel,
        out_shape=(jax.ShapeDtypeStruct((n, r, cp), jnp.bfloat16),
                   jax.ShapeDtypeStruct((n, 1, cp), jnp.float32),
                   jax.ShapeDtypeStruct((n, 1, cp), jnp.float32)),
        grid=(n, ncb),
        in_specs=[pl.BlockSpec((1, hp, wp, ci), lambda i, j: (i, 0, 0, 0)),
                  pl.BlockSpec((9, ci, cb), lambda i, j: (0, 0, j))],
        out_specs=(pl.BlockSpec((1, r, cb), lambda i, j: (i, 0, j)),
                   pl.BlockSpec((1, 1, cb), lambda i, j: (i, 0, j)),
                   pl.BlockSpec((1, 1, cb), lambda i, j: (i, 0, j))),
        compiler_params=CPARAMS,
        cost_estimate=pl.CostEstimate(flops=flops, transcendentals=0,
                                      bytes_accessed=bytes_acc),
    )(xp, w9)


def _matmul_bn_pass1(x_rows, w_mat, cb, tm):
    """(P, K) @ (K, Cp) + partial BN moments (strided conv1 / 1x1 projection)."""
    p, k = x_rows.shape
    cp = w_mat.shape[1]
    k8 = _round_up(k, 8)
    if k8 != k:                                   # keep operands sublane-aligned
        x_rows = jnp.pad(x_rows, ((0, 0), (0, k8 - k)))
        w_mat = jnp.pad(w_mat, ((0, k8 - k), (0, 0)))
    assert p % tm == 0
    nt = p // tm
    ncb = cp // cb
    flops = 2 * p * k8 * cp
    bytes_acc = p * k8 * 2 + k8 * cp * 2 + p * cp * 2 + 2 * nt * cp * 4
    return pl.pallas_call(
        _matmul_stats_kernel,
        out_shape=(jax.ShapeDtypeStruct((p, cp), jnp.bfloat16),
                   jax.ShapeDtypeStruct((nt, 1, cp), jnp.float32),
                   jax.ShapeDtypeStruct((nt, 1, cp), jnp.float32)),
        grid=(nt, ncb),
        in_specs=[pl.BlockSpec((tm, k8), lambda i, j: (i, 0)),
                  pl.BlockSpec((k8, cb), lambda i, j: (0, j))],
        out_specs=(pl.BlockSpec((tm, cb), lambda i, j: (i, j)),
                   pl.BlockSpec((1, 1, cb), lambda i, j: (i, 0, j)),
                   pl.BlockSpec((1, 1, cb), lambda i, j: (i, 0, j))),
        compiler_params=CPARAMS,
        cost_estimate=pl.CostEstimate(flops=flops, transcendentals=0,
                                      bytes_accessed=bytes_acc),
    )(x_rows, w_mat)


def _norm_pass(y, scale, shift, *, do_relu, out_dtype, cb,
               residual=None, rscale=None, rshift=None):
    """BN affine (+ optional scaled-residual add) (+ ReLU), tiled per image."""
    n, r, cp = y.shape
    ncb = cp // cb
    row_spec = pl.BlockSpec((1, r, cb), lambda i, j: (i, 0, j))
    vec_spec = pl.BlockSpec((1, 1, cb), lambda i, j: (0, 0, j))
    sc = scale.reshape(1, 1, cp)
    sh = shift.reshape(1, 1, cp)
    if residual is None:
        kernel = functools.partial(_norm_kernel, do_relu=do_relu)
        args = (y, sc, sh)
        in_specs = [row_spec, vec_spec, vec_spec]
        # normalize in place over the raw conv output when shapes/dtypes match
        aliases = {0: 0} if jnp.dtype(out_dtype) == y.dtype else {}
    else:
        kernel = _norm_res_relu_kernel
        args = (y, sc, sh, residual,
                rscale.reshape(1, 1, cp), rshift.reshape(1, 1, cp))
        in_specs = [row_spec, vec_spec, vec_spec, row_spec, vec_spec, vec_spec]
        aliases = {}
    return pl.pallas_call(
        kernel,
        out_shape=jax.ShapeDtypeStruct((n, r, cp), out_dtype),
        grid=(n, ncb),
        in_specs=in_specs,
        out_specs=row_spec,
        input_output_aliases=aliases,
        compiler_params=CPARAMS,
    )(*args)


# ---------------------------------------------------------------------------
# Plain-JAX glue: BN finalize, weight reshaping, im2col fallback, forward wrapper
# ---------------------------------------------------------------------------
def _bn_scale_shift(ssum, ssq, gamma_p, beta_p, count):
    s = jnp.sum(ssum, axis=(0, 1))
    q = jnp.sum(ssq, axis=(0, 1))
    mean = s / count
    var = jnp.maximum(q / count - mean * mean, 0.0)   # biased (training-mode) variance
    # TODO(synk): E[x^2]-E[x]^2 can cancel for large-|mean| activations; a centered /
    # Welford-style partial accumulation would be more robust if this feeds training.
    scale = gamma_p * lax.rsqrt(var + EPS)
    shift = beta_p - mean * scale
    return scale, shift


def _pad_vec(v, cp):
    v = v.astype(jnp.float32)
    return jnp.pad(v, (0, cp - v.shape[0]))


def _w9(w_oihw, cp_out, cin_pad=None):
    cout, cin, kh, kw = w_oihw.shape
    w = jnp.transpose(w_oihw, (2, 3, 1, 0)).reshape(kh * kw, cin, cout)  # (taps, ci, co)
    ci = cin if cin_pad is None else cin_pad
    w = jnp.pad(w, ((0, 0), (0, ci - cin), (0, cp_out - cout)))
    return w.astype(jnp.bfloat16)


def _wmat(w_oihw, cp_out, cin_pad=None):
    w = _w9(w_oihw, cp_out, cin_pad)
    return w.reshape(-1, cp_out)                     # (k*k*ci, Cp), (kh, kw, ci) order


def _im2col(x_nhwc, ksize, stride, padding):
    n, h, w, c = x_nhwc.shape
    xp = jnp.pad(x_nhwc, ((0, 0), (padding, padding), (padding, padding), (0, 0)))
    ho = (h + 2 * padding - ksize) // stride + 1
    wo = (w + 2 * padding - ksize) // stride + 1
    patches = []
    for kh in range(ksize):
        for kw in range(ksize):
            patches.append(
                xp[:, kh:kh + (ho - 1) * stride + 1:stride,
                      kw:kw + (wo - 1) * stride + 1:stride, :])
    cols = jnp.stack(patches, axis=3)                # (N, Ho, Wo, k*k, C)
    return cols.reshape(n * ho * wo, ksize * ksize * c)


def _row_tile(p, r):
    # Prefer whole-image row tiles (no row padding, N-way 'parallel' grid); fall back
    # to <=512-row tiles + zero-row padding when an image's row count is not 8-aligned.
    if r % 8 == 0 and r <= 1024:
        return r, p
    tm = min(512, _round_up(p, 8))
    return tm, _round_up(p, tm)


def init_params(key, in_channels, out_channels, stride):
    ks = jax.random.split(key, 9)

    def conv_w(k, cout, cin, kh, kw):
        fan_in = cin * kh * kw
        return jax.random.normal(k, (cout, cin, kh, kw), jnp.float32) * (2.0 / fan_in) ** 0.5

    params = {
        "w1": conv_w(ks[0], out_channels, in_channels, 3, 3),
        "g1": 1.0 + 0.1 * jax.random.normal(ks[1], (out_channels,), jnp.float32),
        "b1": 0.1 * jax.random.normal(ks[2], (out_channels,), jnp.float32),
        "w2": conv_w(ks[3], out_channels, out_channels, 3, 3),
        "g2": 1.0 + 0.1 * jax.random.normal(ks[4], (out_channels,), jnp.float32),
        "b2": 0.1 * jax.random.normal(ks[5], (out_channels,), jnp.float32),
    }
    if stride != 1 or in_channels != out_channels:
        params["wp"] = conv_w(ks[6], out_channels, in_channels, 1, 1)
        params["gp"] = 1.0 + 0.1 * jax.random.normal(ks[7], (out_channels,), jnp.float32)
        params["bp"] = 0.1 * jax.random.normal(ks[8], (out_channels,), jnp.float32)
    return params


def residual_block_forward(x_nchw, params, stride):
    n, cin, h, w = x_nchw.shape
    x_bf = jnp.transpose(x_nchw, (0, 2, 3, 1)).astype(jnp.bfloat16)   # NHWC bf16
    cout = params["w1"].shape[0]
    cp = _round_up(cout, LANE)
    cb = 256 if cp % 256 == 0 else 128             # channel-block (2nd parallel grid axis)
    ho = (h + 2 - 3) // stride + 1
    wo = (w + 2 - 3) // stride + 1
    r = ho * wo
    p = n * r                                      # BN population size

    g1, b1 = _pad_vec(params["g1"], cp), _pad_vec(params["b1"], cp)
    g2, b2 = _pad_vec(params["g2"], cp), _pad_vec(params["b2"], cp)

    # ---- conv1 -> bn1 -> relu -------------------------------------------------
    if stride == 1 and wo % 8 == 0:
        w1 = _w9(params["w1"], cp, cin_pad=_round_up(cin, 8))
        y1, s1, q1 = _conv3x3_bn_pass1(x_bf, w1, cb)
    else:
        # TODO(synk): the strided conv still materializes an explicit im2col (~2.25x the
        # input bytes); an in-kernel phase-decomposed gather would remove this too.
        cols1 = _im2col(x_bf, 3, stride, 1)
        tm, pp = _row_tile(p, r)
        if pp != p:
            cols1 = jnp.pad(cols1, ((0, pp - p), (0, 0)))
        y1, s1, q1 = _matmul_bn_pass1(cols1, _wmat(params["w1"], cp), cb, tm)
        y1 = y1[:p].reshape(n, r, cp)
    sc1, sh1 = _bn_scale_shift(s1, q1, g1, b1, p)
    y1n = _norm_pass(y1, sc1, sh1, do_relu=True, out_dtype=jnp.bfloat16, cb=cb)

    # ---- shortcut (its BN affine is folded into conv2's pass-2) ----------------
    if "wp" in params:
        xs = x_bf[:, ::stride, ::stride, :].reshape(p, cin)
        tm, pp = _row_tile(p, r)
        if pp != p:
            xs = jnp.pad(xs, ((0, pp - p), (0, 0)))
        yp, sp, qp = _matmul_bn_pass1(xs, _wmat(params["wp"], cp), cb, tm)
        res = yp[:p].reshape(n, r, cp)
        gp, bp = _pad_vec(params["gp"], cp), _pad_vec(params["bp"], cp)
        rsc, rsh = _bn_scale_shift(sp, qp, gp, bp, p)
    else:
        res = jnp.pad(x_bf, ((0, 0), (0, 0), (0, 0), (0, cp - cin))).reshape(n, r, cp)
        rsc = jnp.ones((cp,), jnp.float32)
        rsh = jnp.zeros((cp,), jnp.float32)

    # ---- conv2 -> bn2 -> (+ shortcut) -> relu ----------------------------------
    y1n_img = y1n.reshape(n, ho, wo, cp)
    if wo % 8 == 0:
        w2 = _w9(params["w2"], cp, cin_pad=cp)     # conv2 consumes the cp-padded act.
        y2, s2, q2 = _conv3x3_bn_pass1(y1n_img, w2, cb)
    else:
        cols2 = _im2col(y1n_img, 3, 1, 1)
        tm, pp = _row_tile(p, r)
        if pp != p:
            cols2 = jnp.pad(cols2, ((0, pp - p), (0, 0)))
        y2, s2, q2 = _matmul_bn_pass1(cols2, _wmat(params["w2"], cp, cin_pad=cp), cb, tm)
        y2 = y2[:p].reshape(n, r, cp)
    sc2, sh2 = _bn_scale_shift(s2, q2, g2, b2, p)
    out = _norm_pass(y2, sc2, sh2, do_relu=True, out_dtype=jnp.float32, cb=cb,
                     residual=res, rscale=rsc, rshift=rsh)

    out = out[:, :, :cout].reshape(n, ho, wo, cout)
    return jnp.transpose(out, (0, 3, 1, 2))        # back to NCHW


# ---------------------------------------------------------------------------
# Pure-JAX reference (numerical validation only)
# ---------------------------------------------------------------------------
def ref_forward(x_nchw, params, stride):
    x = x_nchw.astype(jnp.float32)

    def conv(x, w, s, p):
        return lax.conv_general_dilated(x, w, (s, s), [(p, p), (p, p)],
                                        dimension_numbers=("NCHW", "OIHW", "NCHW"))

    def bn(y, g, b):
        mean = jnp.mean(y, axis=(0, 2, 3), keepdims=True)
        var = jnp.mean((y - mean) ** 2, axis=(0, 2, 3), keepdims=True)
        return (y - mean) * lax.rsqrt(var + EPS) * g[None, :, None, None] + b[None, :, None, None]

    out = jax.nn.relu(bn(conv(x, params["w1"], stride, 1), params["g1"], params["b1"]))
    out = bn(conv(out, params["w2"], 1, 1), params["g2"], params["b2"])
    if "wp" in params:
        identity = bn(conv(x, params["wp"], stride, 0), params["gp"], params["bp"])
    else:
        identity = x
    return jax.nn.relu(out + identity)


if __name__ == "__main__":
    key = jax.random.PRNGKey(0)
    kx, kp1, kp2 = jax.random.split(key, 3)

    fwd = jax.jit(residual_block_forward, static_argnames=("stride",))

    # Case 1: stride=2, channel change -> projection-shortcut path
    x1 = jax.random.normal(kx, (2, 4, 16, 16), jnp.float32)   # NCHW
    p1 = init_params(kp1, in_channels=4, out_channels=8, stride=2)
    out1 = jax.block_until_ready(fwd(x1, p1, stride=2))
    ref1 = jax.block_until_ready(ref_forward(x1, p1, stride=2))
    assert out1.shape == (2, 8, 8, 8)
    # bf16 MXU operands + bf16 intermediates -> relaxed tolerance vs f32 reference
    assert jnp.allclose(out1, ref1, rtol=5e-2, atol=6e-2), "mismatch (projection path)"

    # Case 2: stride=1, same channels -> identity-shortcut path (implicit-im2col conv1)
    x2 = jax.random.normal(kx, (2, 8, 16, 16), jnp.float32)
    p2 = init_params(kp2, in_channels=8, out_channels=8, stride=1)
    out2 = jax.block_until_ready(fwd(x2, p2, stride=1))
    ref2 = jax.block_until_ready(ref_forward(x2, p2, stride=1))
    assert out2.shape == (2, 8, 16, 16)
    assert jnp.allclose(out2, ref2, rtol=5e-2, atol=6e-2), "mismatch (identity path)"

    print("KERNEL_OK")
</pallas_src>

<mosaic_0001>
module attributes {stable_mosaic.version = 11 : i64} {
  func.func @_norm_kernel(%arg0: i32, %arg1: i32, %arg2: memref<1x64x128xbf16, #tpu.memory_space<vmem>>, %arg3: memref<1x1x128xf32, #tpu.memory_space<vmem>>, %arg4: memref<1x1x128xf32, #tpu.memory_space<vmem>>, %arg5: memref<1x64x128xbf16, #tpu.memory_space<vmem>>) attributes {dimension_semantics = [#tpu.dimension_semantics<parallel>, #tpu.dimension_semantics<parallel>], iteration_bounds = array<i64: 2, 1>, scalar_prefetch = 0 : i64, scratch_operands = 0 : i64, tpu.core_type = #tpu.core_type<tc>, window_params = [{transform_indices = @transform_0, window_bounds = array<i64: 1, 64, 128>}, {transform_indices = @transform_1, window_bounds = array<i64: 1, 1, 128>}, {transform_indices = @transform_2, window_bounds = array<i64: 1, 1, 128>}, {transform_indices = @transform_3, window_bounds = array<i64: 1, 64, 128>}]} {
    %c0 = arith.constant 0 : index
    %c0_0 = arith.constant 0 : index
    %c0_1 = arith.constant 0 : index
    %0 = vector.load %arg2[%c0, %c0_0, %c0_1] : memref<1x64x128xbf16, #tpu.memory_space<vmem>>, vector<1x64x128xbf16>
    %1 = arith.extf %0 : vector<1x64x128xbf16> to vector<1x64x128xf32>
    %c0_2 = arith.constant 0 : index
    %c0_3 = arith.constant 0 : index
    %c0_4 = arith.constant 0 : index
    %2 = vector.load %arg3[%c0_2, %c0_3, %c0_4] : memref<1x1x128xf32, #tpu.memory_space<vmem>>, vector<1x1x128xf32>
    %3 = vector.broadcast %2 : vector<1x1x128xf32> to vector<1x64x128xf32>
    %4 = arith.mulf %1, %3 : vector<1x64x128xf32>
    %c0_5 = arith.constant 0 : index
    %c0_6 = arith.constant 0 : index
    %c0_7 = arith.constant 0 : index
    %5 = vector.load %arg4[%c0_5, %c0_6, %c0_7] : memref<1x1x128xf32, #tpu.memory_space<vmem>>, vector<1x1x128xf32>
    %6 = vector.broadcast %5 : vector<1x1x128xf32> to vector<1x64x128xf32>
    %7 = arith.addf %4, %6 : vector<1x64x128xf32>
    %cst = arith.constant 0.000000e+00 : f32
    %8 = vector.broadcast %cst : f32 to vector<1x64x128xf32>
    %9 = arith.maximumf %7, %8 : vector<1x64x128xf32>
    %10 = arith.truncf %9 : vector<1x64x128xf32> to vector<1x64x128xbf16>
    %c0_8 = arith.constant 0 : index
    %c0_9 = arith.constant 0 : index
    %c0_10 = arith.constant 0 : index
    %11 = vector.load %arg5[%c0_8, %c0_9, %c0_10] : memref<1x64x128xbf16, #tpu.memory_space<vmem>>, vector<1x64x128xbf16>
    tpu.vector_store %arg5[%c0_8, %c0_9, %c0_10], %10 {strides = array<i32>} : memref<1x64x128xbf16, #tpu.memory_space<vmem>>, vector<1x64x128xbf16>,
    return
  }
  func.func @transform_0(%arg0: i32, %arg1: i32) -> (i32, i32, i32) {
    %c0_i32 = arith.constant 0 : i32
    %c0_i32_0 = arith.constant 0 : i32
    return %arg0, %c0_i32, %arg1 : i32, i32, i32
  }
  func.func @transform_1(%arg0: i32, %arg1: i32) -> (i32, i32, i32) {
    %c0_i32 = arith.constant 0 : i32
    %c0_i32_0 = arith.constant 0 : i32
    %c0_i32_1 = arith.constant 0 : i32
    return %c0_i32, %c0_i32_0, %arg1 : i32, i32, i32
  }
  func.func @transform_2(%arg0: i32, %arg1: i32) -> (i32, i32, i32) {
    %c0_i32 = arith.constant 0 : i32
    %c0_i32_0 = arith.constant 0 : i32
    %c0_i32_1 = arith.constant 0 : i32
    return %c0_i32, %c0_i32_0, %arg1 : i32, i32, i32
  }
  func.func @transform_3(%arg0: i32, %arg1: i32) -> (i32, i32, i32) {
    %c0_i32 = arith.constant 0 : i32
    %c0_i32_0 = arith.constant 0 : i32
    return %arg0, %c0_i32, %arg1 : i32, i32, i32
  }
}

module attributes {stable_mosaic.version = 11 : i64} {
  func.func @_matmul_stats_kernel(%arg0: i32, %arg1: i32, %arg2: memref<64x40xbf16, #tpu.memory_space<vmem>>, %arg3: memref<40x128xbf16, #tpu.memory_space<vmem>>, %arg4: memref<64x128xbf16, #tpu.memory_space<vmem>>, %arg5: memref<1x1x128xf32, #tpu.memory_space<vmem>>, %arg6: memref<1x1x128xf32, #tpu.memory_space<vmem>>) attributes {dimension_semantics = [#tpu.dimension_semantics<parallel>, #tpu.dimension_semantics<parallel>], iteration_bounds = array<i64: 2, 1>, scalar_prefetch = 0 : i64, scratch_operands = 0 : i64, tpu.core_type = #tpu.core_type<tc>, window_params = [{transform_indices = @transform_0, window_bounds = array<i64: 64, 40>}, {transform_indices = @transform_1, window_bounds = array<i64: 40, 128>}, {transform_indices = @transform_2, window_bounds = array<i64: 64, 128>}, {transform_indices = @transform_3, window_bounds = array<i64: 1, 1, 128>}, {transform_indices = @transform_4, window_bounds = array<i64: 1, 1, 128>}]} {
    %c0 = arith.constant 0 : index
    %c0_0 = arith.constant 0 : index
    %0 = vector.load %arg2[%c0, %c0_0] : memref<64x40xbf16, #tpu.memory_space<vmem>>, vector<64x40xbf16>
    %c0_1 = arith.constant 0 : index
    %c0_2 = arith.constant 0 : index
    %1 = vector.load %arg3[%c0_1, %c0_2] : memref<40x128xbf16, #tpu.memory_space<vmem>>, vector<40x128xbf16>
    %cst = arith.constant dense<0.000000e+00> : vector<64x128xf32>
    %2 = tpu.matmul %0, %1, %cst {dimension_numbers = #tpu.dot_dimension_numbers<[1], [0], [0], [1], [0, 0, 1, 1], [], []>} : vector<64x40xbf16>, vector<40x128xbf16>, vector<64x128xf32> -> vector<64x128xf32>
    %3 = arith.truncf %2 : vector<64x128xf32> to vector<64x128xbf16>
    %c0_3 = arith.constant 0 : index
    %c0_4 = arith.constant 0 : index
    %4 = vector.load %arg4[%c0_3, %c0_4] : memref<64x128xbf16, #tpu.memory_space<vmem>>, vector<64x128xbf16>
    tpu.vector_store %arg4[%c0_3, %c0_4], %3 {strides = array<i32>} : memref<64x128xbf16, #tpu.memory_space<vmem>>, vector<64x128xbf16>,
    %cst_5 = arith.constant dense<0.000000e+00> : vector<128xf32>
    %5 = vector.multi_reduction <add>, %2, %cst_5 [0] : vector<64x128xf32> to vector<128xf32>
    %6 = vector.shape_cast %5 : vector<128xf32> to vector<1x128xf32>
    %7 = vector.shape_cast %6 : vector<1x128xf32> to vector<1x1x128xf32>
    %c0_6 = arith.constant 0 : index
    %c0_7 = arith.constant 0 : index
    %c0_8 = arith.constant 0 : index
    %8 = vector.load %arg5[%c0_6, %c0_7, %c0_8] : memref<1x1x128xf32, #tpu.memory_space<vmem>>, vector<1x1x128xf32>
    tpu.vector_store %arg5[%c0_6, %c0_7, %c0_8], %7 {strides = array<i32>} : memref<1x1x128xf32, #tpu.memory_space<vmem>>, vector<1x1x128xf32>,
    %9 = arith.mulf %2, %2 : vector<64x128xf32>
    %cst_9 = arith.constant dense<0.000000e+00> : vector<128xf32>
    %10 = vector.multi_reduction <add>, %9, %cst_9 [0] : vector<64x128xf32> to vector<128xf32>
    %11 = vector.shape_cast %10 : vector<128xf32> to vector<1x128xf32>
    %12 = vector.shape_cast %11 : vector<1x128xf32> to vector<1x1x128xf32>
    %c0_10 = arith.constant 0 : index
    %c0_11 = arith.constant 0 : index
    %c0_12 = arith.constant 0 : index
    %13 = vector.load %arg6[%c0_10, %c0_11, %c0_12] : memref<1x1x128xf32, #tpu.memory_space<vmem>>, vector<1x1x128xf32>
    tpu.vector_store %arg6[%c0_10, %c0_11, %c0_12], %12 {strides = array<i32>} : memref<1x1x128xf32, #tpu.memory_space<vmem>>, vector<1x1x128xf32>,
    return
  }
  func.func @transform_0(%arg0: i32, %arg1: i32) -> (i32, i32) {
    %c0_i32 = arith.constant 0 : i32
    %c0_i32_0 = arith.constant 0 : i32
    return %arg0, %c0_i32 : i32, i32
  }
  func.func @transform_1(%arg0: i32, %arg1: i32) -> (i32, i32) {
    %c0_i32 = arith.constant 0 : i32
    %c0_i32_0 = arith.constant 0 : i32
    return %c0_i32, %arg1 : i32, i32
  }
  func.func @transform_2(%arg0: i32, %arg1: i32) -> (i32, i32) {
    %c0_i32 = arith.constant 0 : i32
    return %arg0, %arg1 : i32, i32
  }
  func.func @transform_3(%arg0: i32, %arg1: i32) -> (i32, i32, i32) {
    %c0_i32 = arith.constant 0 : i32
    %c0_i32_0 = arith.constant 0 : i32
    return %arg0, %c0_i32, %arg1 : i32, i32, i32
  }
  func.func @transform_4(%arg0: i32, %arg1: i32) -> (i32, i32, i32) {
    %c0_i32 = arith.constant 0 : i32
    %c0_i32_0 = arith.constant 0 : i32
    return %arg0, %c0_i32, %arg1 : i32, i32, i32
  }
}

module attributes {stable_mosaic.version = 11 : i64} {
  func.func @_conv3x3_stats_kernel(%arg0: i32, %arg1: i32, %arg2: memref<1x10x10x128xbf16, #tpu.memory_space<vmem>>, %arg3: memref<9x128x128xbf16, #tpu.memory_space<vmem>>, %arg4: memref<1x64x128xbf16, #tpu.memory_space<vmem>>, %arg5: memref<1x1x128xf32, #tpu.memory_space<vmem>>, %arg6: memref<1x1x128xf32, #tpu.memory_space<vmem>>) attributes {dimension_semantics = [#tpu.dimension_semantics<parallel>, #tpu.dimension_semantics<parallel>], iteration_bounds = array<i64: 2, 1>, scalar_prefetch = 0 : i64, scratch_operands = 0 : i64, tpu.core_type = #tpu.core_type<tc>, window_params = [{transform_indices = @transform_0, window_bounds = array<i64: 1, 10, 10, 128>}, {transform_indices = @transform_1, window_bounds = array<i64: 9, 128, 128>}, {transform_indices = @transform_2, window_bounds = array<i64: 1, 64, 128>}, {transform_indices = @transform_3, window_bounds = array<i64: 1, 1, 128>}, {transform_indices = @transform_4, window_bounds = array<i64: 1, 1, 128>}]} {
    %c0 = arith.constant 0 : index
    %c0_0 = arith.constant 0 : index
    %c0_1 = arith.constant 0 : index
    %c0_2 = arith.constant 0 : index
    %0 = vector.load %arg2[%c0, %c0_0, %c0_1, %c0_2] : memref<1x10x10x128xbf16, #tpu.memory_space<vmem>>, vector<1x8x8x128xbf16>
    %1 = vector.shape_cast %0 : vector<1x8x8x128xbf16> to vector<8x8x128xbf16>
    %2 = arith.extf %1 : vector<8x8x128xbf16> to vector<8x8x128xf32>
    %3 = vector.shape_cast %2 : vector<8x8x128xf32> to vector<64x128xf32>
    %4 = arith.truncf %3 : vector<64x128xf32> to vector<64x128xbf16>
    %c0_3 = arith.constant 0 : index
    %c0_4 = arith.constant 0 : index
    %c0_5 = arith.constant 0 : index
    %5 = vector.load %arg3[%c0_3, %c0_4, %c0_5] : memref<9x128x128xbf16, #tpu.memory_space<vmem>>, vector<1x128x128xbf16>
    %6 = vector.shape_cast %5 : vector<1x128x128xbf16> to vector<128x128xbf16>
    %cst = arith.constant dense<0.000000e+00> : vector<64x128xf32>
    %7 = tpu.matmul %4, %6, %cst {dimension_numbers = #tpu.dot_dimension_numbers<[1], [0], [0], [1], [0, 0, 1, 1], [], []>} : vector<64x128xbf16>, vector<128x128xbf16>, vector<64x128xf32> -> vector<64x128xf32>
    %c0_6 = arith.constant 0 : index
    %c0_7 = arith.constant 0 : index
    %c1 = arith.constant 1 : index
    %c0_8 = arith.constant 0 : index
    %8 = vector.load %arg2[%c0_6, %c0_7, %c1, %c0_8] : memref<1x10x10x128xbf16, #tpu.memory_space<vmem>>, vector<1x8x8x128xbf16>
    %9 = vector.shape_cast %8 : vector<1x8x8x128xbf16> to vector<8x8x128xbf16>
    %10 = arith.extf %9 : vector<8x8x128xbf16> to vector<8x8x128xf32>
    %11 = vector.shape_cast %10 : vector<8x8x128xf32> to vector<64x128xf32>
    %12 = arith.truncf %11 : vector<64x128xf32> to vector<64x128xbf16>
    %c1_9 = arith.constant 1 : index
    %c0_10 = arith.constant 0 : index
    %c0_11 = arith.constant 0 : index
    %13 = vector.load %arg3[%c1_9, %c0_10, %c0_11] : memref<9x128x128xbf16, #tpu.memory_space<vmem>>, vector<1x128x128xbf16>
    %14 = vector.shape_cast %13 : vector<1x128x128xbf16> to vector<128x128xbf16>
    %cst_12 = arith.constant dense<0.000000e+00> : vector<64x128xf32>
    %15 = tpu.matmul %12, %14, %cst_12 {dimension_numbers = #tpu.dot_dimension_numbers<[1], [0], [0], [1], [0, 0, 1, 1], [], []>} : vector<64x128xbf16>, vector<128x128xbf16>, vector<64x128xf32> -> vector<64x128xf32>
    %16 = arith.addf %7, %15 : vector<64x128xf32>
    %c0_13 = arith.constant 0 : index
    %c0_14 = arith.constant 0 : index
    %c2 = arith.constant 2 : index
    %c0_15 = arith.constant 0 : index
    %17 = vector.load %arg2[%c0_13, %c0_14, %c2, %c0_15] : memref<1x10x10x128xbf16, #tpu.memory_space<vmem>>, vector<1x8x8x128xbf16>
    %18 = vector.shape_cast %17 : vector<1x8x8x128xbf16> to vector<8x8x128xbf16>
    %19 = arith.extf %18 : vector<8x8x128xbf16> to vector<8x8x128xf32>
    %20 = vector.shape_cast %19 : vector<8x8x128xf32> to vector<64x128xf32>
    %21 = arith.truncf %20 : vector<64x128xf32> to vector<64x128xbf16>
    %c2_16 = arith.constant 2 : index
    %c0_17 = arith.constant 0 : index
    %c0_18 = arith.constant 0 : index
    %22 = vector.load %arg3[%c2_16, %c0_17, %c0_18] : memref<9x128x128xbf16, #tpu.memory_space<vmem>>, vector<1x128x128xbf16>
    %23 = vector.shape_cast %22 : vector<1x128x128xbf16> to vector<128x128xbf16>
    %cst_19 = arith.constant dense<0.000000e+00> : vector<64x128xf32>
    %24 = tpu.matmul %21, %23, %cst_19 {dimension_numbers = #tpu.dot_dimension_numbers<[1], [0], [0], [1], [0, 0, 1, 1], [], []>} : vector<64x128xbf16>, vector<128x128xbf16>, vector<64x128xf32> -> vector<64x128xf32>
    %25 = arith.addf %16, %24 : vector<64x128xf32>
    %c0_20 = arith.constant 0 : index
    %c1_21 = arith.constant 1 : index
    %c0_22 = arith.constant 0 : index
    %c0_23 = arith.constant 0 : index
    %26 = vector.load %arg2[%c0_20, %c1_21, %c0_22, %c0_23] : memref<1x10x10x128xbf16, #tpu.memory_space<vmem>>, vector<1x8x8x128xbf16>
    %27 = vector.shape_cast %26 : vector<1x8x8x128xbf16> to vector<8x8x128xbf16>
    %28 = arith.extf %27 : vector<8x8x128xbf16> to vector<8x8x128xf32>
    %29 = vector.shape_cast %28 : vector<8x8x128xf32> to vector<64x128xf32>
    %30 = arith.truncf %29 : vector<64x128xf32> to vector<64x128xbf16>
    %c3 = arith.constant 3 : index
    %c0_24 = arith.constant 0 : index
    %c0_25 = arith.constant 0 : index
    %31 = vector.load %arg3[%c3, %c0_24, %c0_25] : memref<9x128x128xbf16, #tpu.memory_space<vmem>>, vector<1x128x128xbf16>
    %32 = vector.shape_cast %31 : vector<1x128x128xbf16> to vector<128x128xbf16>
    %cst_26 = arith.constant dense<0.000000e+00> : vector<64x128xf32>
    %33 = tpu.matmul %30, %32, %cst_26 {dimension_numbers = #tpu.dot_dimension_numbers<[1], [0], [0], [1], [0, 0, 1, 1], [], []>} : vector<64x128xbf16>, vector<128x128xbf16>, vector<64x128xf32> -> vector<64x128xf32>
    %34 = arith.addf %25, %33 : vector<64x128xf32>
    %c0_27 = arith.constant 0 : index
    %c1_28 = arith.constant 1 : index
    %c1_29 = arith.constant 1 : index
    %c0_30 = arith.constant 0 : index
    %35 = vector.load %arg2[%c0_27, %c1_28, %c1_29, %c0_30] : memref<1x10x10x128xbf16, #tpu.memory_space<vmem>>, vector<1x8x8x128xbf16>
    %36 = vector.shape_cast %35 : vector<1x8x8x128xbf16> to vector<8x8x128xbf16>
    %37 = arith.extf %36 : vector<8x8x128xbf16> to vector<8x8x128xf32>
    %38 = vector.shape_cast %37 : vector<8x8x128xf32> to vector<64x128xf32>
    %39 = arith.truncf %38 : vector<64x128xf32> to vector<64x128xbf16>
    %c4 = arith.constant 4 : index
    %c0_31 = arith.constant 0 : index
    %c0_32 = arith.constant 0 : index
    %40 = vector.load %arg3[%c4, %c0_31, %c0_32] : memref<9x128x128xbf16, #tpu.memory_space<vmem>>, vector<1x128x128xbf16>
    %41 = vector.shape_cast %40 : vector<1x128x128xbf16> to vector<128x128xbf16>
    %cst_33 = arith.constant dense<0.000000e+00> : vector<64x128xf32>
    %42 = tpu.matmul %39, %41, %cst_33 {dimension_numbers = #tpu.dot_dimension_numbers<[1], [0], [0], [1], [0, 0, 1, 1], [], []>} : vector<64x128xbf16>, vector<128x128xbf16>, vector<64x128xf32> -> vector<64x128xf32>
    %43 = arith.addf %34, %42 : vector<64x128xf32>
    %c0_34 = arith.constant 0 : index
    %c1_35 = arith.constant 1 : index
    %c2_36 = arith.constant 2 : index
    %c0_37 = arith.constant 0 : index
    %44 = vector.load %arg2[%c0_34, %c1_35, %c2_36, %c0_37] : memref<1x10x10x128xbf16, #tpu.memory_space<vmem>>, vector<1x8x8x128xbf16>
    %45 = vector.shape_cast %44 : vector<1x8x8x128xbf16> to vector<8x8x128xbf16>
    %46 = arith.extf %45 : vector<8x8x128xbf16> to vector<8x8x128xf32>
    %47 = vector.shape_cast %46 : vector<8x8x128xf32> to vector<64x128xf32>
    %48 = arith.truncf %47 : vector<64x128xf32> to vector<64x128xbf16>
    %c5 = arith.constant 5 : index
    %c0_38 = arith.constant 0 : index
    %c0_39 = arith.constant 0 : index
    %49 = vector.load %arg3[%c5, %c0_38, %c0_39] : memref<9x128x128xbf16, #tpu.memory_space<vmem>>, vector<1x128x128xbf16>
    %50 = vector.shape_cast %49 : vector<1x128x128xbf16> to vector<128x128xbf16>
    %cst_40 = arith.constant dense<0.000000e+00> : vector<64x128xf32>
    %51 = tpu.matmul %48, %50, %cst_40 {dimension_numbers = #tpu.dot_dimension_numbers<[1], [0], [0], [1], [0, 0, 1, 1], [], []>} : vector<64x128xbf16>, vector<128x128xbf16>, vector<64x128xf32> -> vector<64x128xf32>
    %52 = arith.addf %43, %51 : vector<64x128xf32>
    %c0_41 = arith.constant 0 : index
    %c2_42 = arith.constant 2 : index
    %c0_43 = arith.constant 0 : index
    %c0_44 = arith.constant 0 : index
    %53 = vector.load %arg2[%c0_41, %c2_42, %c0_43, %c0_44] : memref<1x10x10x128xbf16, #tpu.memory_space<vmem>>, vector<1x8x8x128xbf16>
    %54 = vector.shape_cast %53 : vector<1x8x8x128xbf16> to vector<8x8x128xbf16>
    %55 = arith.extf %54 : vector<8x8x128xbf16> to vector<8x8x128xf32>
    %56 = vector.shape_cast %55 : vector<8x8x128xf32> to vector<64x128xf32>
    %57 = arith.truncf %56 : vector<64x128xf32> to vector<64x128xbf16>
    %c6 = arith.constant 6 : index
    %c0_45 = arith.constant 0 : index
    %c0_46 = arith.constant 0 : index
    %58 = vector.load %arg3[%c6, %c0_45, %c0_46] : memref<9x128x128xbf16, #tpu.memory_space<vmem>>, vector<1x128x128xbf16>
    %59 = vector.shape_cast %58 : vector<1x128x128xbf16> to vector<128x128xbf16>
    %cst_47 = arith.constant dense<0.000000e+00> : vector<64x128xf32>
    %60 = tpu.matmul %57, %59, %cst_47 {dimension_numbers = #tpu.dot_dimension_numbers<[1], [0], [0], [1], [0, 0, 1, 1], [], []>} : vector<64x128xbf16>, vector<128x128xbf16>, vector<64x128xf32> -> vector<64x128xf32>
    %61 = arith.addf %52, %60 : vector<64x128xf32>
    %c0_48 = arith.constant 0 : index
    %c2_49 = arith.constant 2 : index
    %c1_50 = arith.constant 1 : index
    %c0_51 = arith.constant 0 : index
    %62 = vector.load %arg2[%c0_48, %c2_49, %c1_50, %c0_51] : memref<1x10x10x128xbf16, #tpu.memory_space<vmem>>, vector<1x8x8x128xbf16>
    %63 = vector.shape_cast %62 : vector<1x8x8x128xbf16> to vector<8x8x128xbf16>
    %64 = arith.extf %63 : vector<8x8x128xbf16> to vector<8x8x128xf32>
    %65 = vector.shape_cast %64 : vector<8x8x128xf32> to vector<64x128xf32>
    %66 = arith.truncf %65 : vector<64x128xf32> to vector<64x128xbf16>
    %c7 = arith.constant 7 : index
    %c0_52 = arith.constant 0 : index
    %c0_53 = arith.constant 0 : index
    %67 = vector.load %arg3[%c7, %c0_52, %c0_53] : memref<9x128x128xbf16, #tpu.memory_space<vmem>>, vector<1x128x128xbf16>
    %68 = vector.shape_cast %67 : vector<1x128x128xbf16> to vector<128x128xbf16>
    %cst_54 = arith.constant dense<0.000000e+00> : vector<64x128xf32>
    %69 = tpu.matmul %66, %68, %cst_54 {dimension_numbers = #tpu.dot_dimension_numbers<[1], [0], [0], [1], [0, 0, 1, 1], [], []>} : vector<64x128xbf16>, vector<128x128xbf16>, vector<64x128xf32> -> vector<64x128xf32>
    %70 = arith.addf %61, %69 : vector<64x128xf32>
    %c0_55 = arith.constant 0 : index
    %c2_56 = arith.constant 2 : index
    %c2_57 = arith.constant 2 : index
    %c0_58 = arith.constant 0 : index
    %71 = vector.load %arg2[%c0_55, %c2_56, %c2_57, %c0_58] : memref<1x10x10x128xbf16, #tpu.memory_space<vmem>>, vector<1x8x8x128xbf16>
    %72 = vector.shape_cast %71 : vector<1x8x8x128xbf16> to vector<8x8x128xbf16>
    %73 = arith.extf %72 : vector<8x8x128xbf16> to vector<8x8x128xf32>
    %74 = vector.shape_cast %73 : vector<8x8x128xf32> to vector<64x128xf32>
    %75 = arith.truncf %74 : vector<64x128xf32> to vector<64x128xbf16>
    %c8 = arith.constant 8 : index
    %c0_59 = arith.constant 0 : index
    %c0_60 = arith.constant 0 : index
    %76 = vector.load %arg3[%c8, %c0_59, %c0_60] : memref<9x128x128xbf16, #tpu.memory_space<vmem>>, vector<1x128x128xbf16>
    %77 = vector.shape_cast %76 : vector<1x128x128xbf16> to vector<128x128xbf16>
    %cst_61 = arith.constant dense<0.000000e+00> : vector<64x128xf32>
    %78 = tpu.matmul %75, %77, %cst_61 {dimension_numbers = #tpu.dot_dimension_numbers<[1], [0], [0], [1], [0, 0, 1, 1], [], []>} : vector<64x128xbf16>, vector<128x128xbf16>, vector<64x128xf32> -> vector<64x128xf32>
    %79 = arith.addf %70, %78 : vector<64x128xf32>
    %80 = vector.shape_cast %79 : vector<64x128xf32> to vector<1x64x128xf32>
    %81 = arith.truncf %80 : vector<1x64x128xf32> to vector<1x64x128xbf16>
    %c0_62 = arith.constant 0 : index
    %c0_63 = arith.constant 0 : index
    %c0_64 = arith.constant 0 : index
    %82 = vector.load %arg4[%c0_62, %c0_63, %c0_64] : memref<1x64x128xbf16, #tpu.memory_space<vmem>>, vector<1x64x128xbf16>
    tpu.vector_store %arg4[%c0_62, %c0_63, %c0_64], %81 {strides = array<i32>} : memref<1x64x128xbf16, #tpu.memory_space<vmem>>, vector<1x64x128xbf16>,
    %cst_65 = arith.constant dense<0.000000e+00> : vector<128xf32>
    %83 = vector.multi_reduction <add>, %79, %cst_65 [0] : vector<64x128xf32> to vector<128xf32>
    %84 = vector.shape_cast %83 : vector<128xf32> to vector<1x128xf32>
    %85 = vector.shape_cast %84 : vector<1x128xf32> to vector<1x1x128xf32>
    %c0_66 = arith.constant 0 : index
    %c0_67 = arith.constant 0 : index
    %c0_68 = arith.constant 0 : index
    %86 = vector.load %arg5[%c0_66, %c0_67, %c0_68] : memref<1x1x128xf32, #tpu.memory_space<vmem>>, vector<1x1x128xf32>
    tpu.vector_store %arg5[%c0_66, %c0_67, %c0_68], %85 {strides = array<i32>} : memref<1x1x128xf32, #tpu.memory_space<vmem>>, vector<1x1x128xf32>,
    %87 = arith.mulf %79, %79 : vector<64x128xf32>
    %cst_69 = arith.constant dense<0.000000e+00> : vector<128xf32>
    %88 = vector.multi_reduction <add>, %87, %cst_69 [0] : vector<64x128xf32> to vector<128xf32>
    %89 = vector.shape_cast %88 : vector<128xf32> to vector<1x128xf32>
    %90 = vector.shape_cast %89 : vector<1x128xf32> to vector<1x1x128xf32>
    %c0_70 = arith.constant 0 : index
    %c0_71 = arith.constant 0 : index
    %c0_72 = arith.constant 0 : index
    %91 = vector.load %arg6[%c0_70, %c0_71, %c0_72] : memref<1x1x128xf32, #tpu.memory_space<vmem>>, vector<1x1x128xf32>
    tpu.vector_store %arg6[%c0_70, %c0_71, %c0_72], %90 {strides = array<i32>} : memref<1x1x128xf32, #tpu.memory_space<vmem>>, vector<1x1x128xf32>,
    return
  }
  func.func @transform_0(%arg0: i32, %arg1: i32) -> (i32, i32, i32, i32) {
    %c0_i32 = arith.constant 0 : i32
    %c0_i32_0 = arith.constant 0 : i32
    %c0_i32_1 = arith.constant 0 : i32
    %c0_i32_2 = arith.constant 0 : i32
    return %arg0, %c0_i32, %c0_i32_0, %c0_i32_1 : i32, i32, i32, i32
  }
  func.func @transform_1(%arg0: i32, %arg1: i32) -> (i32, i32, i32) {
    %c0_i32 = arith.constant 0 : i32
    %c0_i32_0 = arith.constant 0 : i32
    %c0_i32_1 = arith.constant 0 : i32
    return %c0_i32, %c0_i32_0, %arg1 : i32, i32, i32
  }
  func.func @transform_2(%arg0: i32, %arg1: i32) -> (i32, i32, i32) {
    %c0_i32 = arith.constant 0 : i32
    %c0_i32_0 = arith.constant 0 : i32
    return %arg0, %c0_i32, %arg1 : i32, i32, i32
  }
  func.func @transform_3(%arg0: i32, %arg1: i32) -> (i32, i32, i32) {
    %c0_i32 = arith.constant 0 : i32
    %c0_i32_0 = arith.constant 0 : i32
    return %arg0, %c0_i32, %arg1 : i32, i32, i32
  }
  func.func @transform_4(%arg0: i32, %arg1: i32) -> (i32, i32, i32) {
    %c0_i32 = arith.constant 0 : i32
    %c0_i32_0 = arith.constant 0 : i32
    return %arg0, %c0_i32, %arg1 : i32, i32, i32
  }
}

module attributes {stable_mosaic.version = 11 : i64} {
  func.func @_norm_res_relu_kernel(%arg0: i32, %arg1: i32, %arg2: memref<1x64x128xbf16, #tpu.memory_space<vmem>>, %arg3: memref<1x1x128xf32, #tpu.memory_space<vmem>>, %arg4: memref<1x1x128xf32, #tpu.memory_space<vmem>>, %arg5: memref<1x64x128xbf16, #tpu.memory_space<vmem>>, %arg6: memref<1x1x128xf32, #tpu.memory_space<vmem>>, %arg7: memref<1x1x128xf32, #tpu.memory_space<vmem>>, %arg8: memref<1x64x128xf32, #tpu.memory_space<vmem>>) attributes {dimension_semantics = [#tpu.dimension_semantics<parallel>, #tpu.dimension_semantics<parallel>], iteration_bounds = array<i64: 2, 1>, scalar_prefetch = 0 : i64, scratch_operands = 0 : i64, tpu.core_type = #tpu.core_type<tc>, window_params = [{transform_indices = @transform_0, window_bounds = array<i64: 1, 64, 128>}, {transform_indices = @transform_1, window_bounds = array<i64: 1, 1, 128>}, {transform_indices = @transform_2, window_bounds = array<i64: 1, 1, 128>}, {transform_indices = @transform_3, window_bounds = array<i64: 1, 64, 128>}, {transform_indices = @transform_4, window_bounds = array<i64: 1, 1, 128>}, {transform_indices = @transform_5, window_bounds = array<i64: 1, 1, 128>}, {transform_indices = @transform_6, window_bounds = array<i64: 1, 64, 128>}]} {
    %c0 = arith.constant 0 : index
    %c0_0 = arith.constant 0 : index
    %c0_1 = arith.constant 0 : index
    %0 = vector.load %arg2[%c0, %c0_0, %c0_1] : memref<1x64x128xbf16, #tpu.memory_space<vmem>>, vector<1x64x128xbf16>
    %1 = arith.extf %0 : vector<1x64x128xbf16> to vector<1x64x128xf32>
    %c0_2 = arith.constant 0 : index
    %c0_3 = arith.constant 0 : index
    %c0_4 = arith.constant 0 : index
    %2 = vector.load %arg3[%c0_2, %c0_3, %c0_4] : memref<1x1x128xf32, #tpu.memory_space<vmem>>, vector<1x1x128xf32>
    %3 = vector.broadcast %2 : vector<1x1x128xf32> to vector<1x64x128xf32>
    %4 = arith.mulf %1, %3 : vector<1x64x128xf32>
    %c0_5 = arith.constant 0 : index
    %c0_6 = arith.constant 0 : index
    %c0_7 = arith.constant 0 : index
    %5 = vector.load %arg4[%c0_5, %c0_6, %c0_7] : memref<1x1x128xf32, #tpu.memory_space<vmem>>, vector<1x1x128xf32>
    %6 = vector.broadcast %5 : vector<1x1x128xf32> to vector<1x64x128xf32>
    %7 = arith.addf %4, %6 : vector<1x64x128xf32>
    %c0_8 = arith.constant 0 : index
    %c0_9 = arith.constant 0 : index
    %c0_10 = arith.constant 0 : index
    %8 = vector.load %arg5[%c0_8, %c0_9, %c0_10] : memref<1x64x128xbf16, #tpu.memory_space<vmem>>, vector<1x64x128xbf16>
    %9 = arith.extf %8 : vector<1x64x128xbf16> to vector<1x64x128xf32>
    %c0_11 = arith.constant 0 : index
    %c0_12 = arith.constant 0 : index
    %c0_13 = arith.constant 0 : index
    %10 = vector.load %arg6[%c0_11, %c0_12, %c0_13] : memref<1x1x128xf32, #tpu.memory_space<vmem>>, vector<1x1x128xf32>
    %11 = vector.broadcast %10 : vector<1x1x128xf32> to vector<1x64x128xf32>
    %12 = arith.mulf %9, %11 : vector<1x64x128xf32>
    %c0_14 = arith.constant 0 : index
    %c0_15 = arith.constant 0 : index
    %c0_16 = arith.constant 0 : index
    %13 = vector.load %arg7[%c0_14, %c0_15, %c0_16] : memref<1x1x128xf32, #tpu.memory_space<vmem>>, vector<1x1x128xf32>
    %14 = vector.broadcast %13 : vector<1x1x128xf32> to vector<1x64x128xf32>
    %15 = arith.addf %12, %14 : vector<1x64x128xf32>
    %16 = arith.addf %7, %15 : vector<1x64x128xf32>
    %cst = arith.constant 0.000000e+00 : f32
    %17 = vector.broadcast %cst : f32 to vector<1x64x128xf32>
    %18 = arith.maximumf %16, %17 : vector<1x64x128xf32>
    %c0_17 = arith.constant 0 : index
    %c0_18 = arith.constant 0 : index
    %c0_19 = arith.constant 0 : index
    %19 = vector.load %arg8[%c0_17, %c0_18, %c0_19] : memref<1x64x128xf32, #tpu.memory_space<vmem>>, vector<1x64x128xf32>
    tpu.vector_store %arg8[%c0_17, %c0_18, %c0_19], %18 {strides = array<i32>} : memref<1x64x128xf32, #tpu.memory_space<vmem>>, vector<1x64x128xf32>,
    return
  }
  func.func @transform_0(%arg0: i32, %arg1: i32) -> (i32, i32, i32) {
    %c0_i32 = arith.constant 0 : i32
    %c0_i32_0 = arith.constant 0 : i32
    return %arg0, %c0_i32, %arg1 : i32, i32, i32
  }
  func.func @transform_1(%arg0: i32, %arg1: i32) -> (i32, i32, i32) {
    %c0_i32 = arith.constant 0 : i32
    %c0_i32_0 = arith.constant 0 : i32
    %c0_i32_1 = arith.constant 0 : i32
    return %c0_i32, %c0_i32_0, %arg1 : i32, i32, i32
  }
  func.func @transform_2(%arg0: i32, %arg1: i32) -> (i32, i32, i32) {
    %c0_i32 = arith.constant 0 : i32
    %c0_i32_0 = arith.constant 0 : i32
    %c0_i32_1 = arith.constant 0 : i32
    return %c0_i32, %c0_i32_0, %arg1 : i32, i32, i32
  }
  func.func @transform_3(%arg0: i32, %arg1: i32) -> (i32, i32, i32) {
    %c0_i32 = arith.constant 0 : i32
    %c0_i32_0 = arith.constant 0 : i32
    return %arg0, %c0_i32, %arg1 : i32, i32, i32
  }
  func.func @transform_4(%arg0: i32, %arg1: i32) -> (i32, i32, i32) {
    %c0_i32 = arith.constant 0 : i32
    %c0_i32_0 = arith.constant 0 : i32
    %c0_i32_1 = arith.constant 0 : i32
    return %c0_i32, %c0_i32_0, %arg1 : i32, i32, i32
  }
  func.func @transform_5(%arg0: i32, %arg1: i32) -> (i32, i32, i32) {
    %c0_i32 = arith.constant 0 : i32
    %c0_i32_0 = arith.constant 0 : i32
    %c0_i32_1 = arith.constant 0 : i32
    return %c0_i32, %c0_i32_0, %arg1 : i32, i32, i32
  }
  func.func @transform_6(%arg0: i32, %arg1: i32) -> (i32, i32, i32) {
    %c0_i32 = arith.constant 0 : i32
    %c0_i32_0 = arith.constant 0 : i32
    return %arg0, %c0_i32, %arg1 : i32, i32, i32
  }
}

module attributes {stable_mosaic.version = 11 : i64} {
  func.func @_matmul_stats_kernel(%arg0: i32, %arg1: i32, %arg2: memref<64x8xbf16, #tpu.memory_space<vmem>>, %arg3: memref<8x128xbf16, #tpu.memory_space<vmem>>, %arg4: memref<64x128xbf16, #tpu.memory_space<vmem>>, %arg5: memref<1x1x128xf32, #tpu.memory_space<vmem>>, %arg6: memref<1x1x128xf32, #tpu.memory_space<vmem>>) attributes {dimension_semantics = [#tpu.dimension_semantics<parallel>, #tpu.dimension_semantics<parallel>], iteration_bounds = array<i64: 2, 1>, scalar_prefetch = 0 : i64, scratch_operands = 0 : i64, tpu.core_type = #tpu.core_type<tc>, window_params = [{transform_indices = @transform_0, window_bounds = array<i64: 64, 8>}, {transform_indices = @transform_1, window_bounds = array<i64: 8, 128>}, {transform_indices = @transform_2, window_bounds = array<i64: 64, 128>}, {transform_indices = @transform_3, window_bounds = array<i64: 1, 1, 128>}, {transform_indices = @transform_4, window_bounds = array<i64: 1, 1, 128>}]} {
    %c0 = arith.constant 0 : index
    %c0_0 = arith.constant 0 : index
    %0 = vector.load %arg2[%c0, %c0_0] : memref<64x8xbf16, #tpu.memory_space<vmem>>, vector<64x8xbf16>
    %c0_1 = arith.constant 0 : index
    %c0_2 = arith.constant 0 : index
    %1 = vector.load %arg3[%c0_1, %c0_2] : memref<8x128xbf16, #tpu.memory_space<vmem>>, vector<8x128xbf16>
    %cst = arith.constant dense<0.000000e+00> : vector<64x128xf32>
    %2 = tpu.matmul %0, %1, %cst {dimension_numbers = #tpu.dot_dimension_numbers<[1], [0], [0], [1], [0, 0, 1, 1], [], []>} : vector<64x8xbf16>, vector<8x128xbf16>, vector<64x128xf32> -> vector<64x128xf32>
    %3 = arith.truncf %2 : vector<64x128xf32> to vector<64x128xbf16>
    %c0_3 = arith.constant 0 : index
    %c0_4 = arith.constant 0 : index
    %4 = vector.load %arg4[%c0_3, %c0_4] : memref<64x128xbf16, #tpu.memory_space<vmem>>, vector<64x128xbf16>
    tpu.vector_store %arg4[%c0_3, %c0_4], %3 {strides = array<i32>} : memref<64x128xbf16, #tpu.memory_space<vmem>>, vector<64x128xbf16>,
    %cst_5 = arith.constant dense<0.000000e+00> : vector<128xf32>
    %5 = vector.multi_reduction <add>, %2, %cst_5 [0] : vector<64x128xf32> to vector<128xf32>
    %6 = vector.shape_cast %5 : vector<128xf32> to vector<1x128xf32>
    %7 = vector.shape_cast %6 : vector<1x128xf32> to vector<1x1x128xf32>
    %c0_6 = arith.constant 0 : index
    %c0_7 = arith.constant 0 : index
    %c0_8 = arith.constant 0 : index
    %8 = vector.load %arg5[%c0_6, %c0_7, %c0_8] : memref<1x1x128xf32, #tpu.memory_space<vmem>>, vector<1x1x128xf32>
    tpu.vector_store %arg5[%c0_6, %c0_7, %c0_8], %7 {strides = array<i32>} : memref<1x1x128xf32, #tpu.memory_space<vmem>>, vector<1x1x128xf32>,
    %9 = arith.mulf %2, %2 : vector<64x128xf32>
    %cst_9 = arith.constant dense<0.000000e+00> : vector<128xf32>
    %10 = vector.multi_reduction <add>, %9, %cst_9 [0] : vector<64x128xf32> to vector<128xf32>
    %11 = vector.shape_cast %10 : vector<128xf32> to vector<1x128xf32>
    %12 = vector.shape_cast %11 : vector<1x128xf32> to vector<1x1x128xf32>
    %c0_10 = arith.constant 0 : index
    %c0_11 = arith.constant 0 : index
    %c0_12 = arith.constant 0 : index
    %13 = vector.load %arg6[%c0_10, %c0_11, %c0_12] : memref<1x1x128xf32, #tpu.memory_space<vmem>>, vector<1x1x128xf32>
    tpu.vector_store %arg6[%c0_10, %c0_11, %c0_12], %12 {strides = array<i32>} : memref<1x1x128xf32, #tpu.memory_space<vmem>>, vector<1x1x128xf32>,
    return
  }
  func.func @transform_0(%arg0: i32, %arg1: i32) -> (i32, i32) {
    %c0_i32 = arith.constant 0 : i32
    %c0_i32_0 = arith.constant 0 : i32
    return %arg0, %c0_i32 : i32, i32
  }
  func.func @transform_1(%arg0: i32, %arg1: i32) -> (i32, i32) {
    %c0_i32 = arith.constant 0 : i32
    %c0_i32_0 = arith.constant 0 : i32
    return %c0_i32, %arg1 : i32, i32
  }
  func.func @transform_2(%arg0: i32, %arg1: i32) -> (i32, i32) {
    %c0_i32 = arith.constant 0 : i32
    return %arg0, %arg1 : i32, i32
  }
  func.func @transform_3(%arg0: i32, %arg1: i32) -> (i32, i32, i32) {
    %c0_i32 = arith.constant 0 : i32
    %c0_i32_0 = arith.constant 0 : i32
    return %arg0, %c0_i32, %arg1 : i32, i32, i32
  }
  func.func @transform_4(%arg0: i32, %arg1: i32) -> (i32, i32, i32) {
    %c0_i32 = arith.constant 0 : i32
    %c0_i32_0 = arith.constant 0 : i32
    return %arg0, %c0_i32, %arg1 : i32, i32, i32
  }
}

</mosaic_0001>

<llo_original>
// kernel: residual_block_forward.5
$region0: #{residual_block_forward.5}
  #allocation0 [shape = 'u32[]', space=smem, size = 0x4, offset = 0x4, fixed_abs, tag = 'smem constant byte address 0x4 - core index']
  #allocation1 [shape = 'u32[144,128]{1,0:T(1,128)}', space=vmem, size = 0x12000, scoped, tag = 'internal scratch']
  %s0 = inlined_call_operand.vmem [shape: bf16[128,40], index: 0, kind: input, shape index: {}]
  %s1 = inlined_call_operand.vmem [shape: bf16[40,128], index: 1, kind: input, shape index: {}]
  %s2 = inlined_call_operand.vmem [shape: bf16[128,128], index: 2, kind: output, shape index: {0}]
  %s3 = inlined_call_operand.vmem [shape: f32[2,1,128], index: 3, kind: output, shape index: {1}]
  %s4 = inlined_call_operand.vmem [shape: f32[2,1,128], index: 4, kind: output, shape index: {2}]
  %5 = xla_tuple %s2, %s3, %s4
  %s6 = sld [smem:[#allocation0]]
  $region57: #{residual_block_forward.5} parent=0
    _
  %s8 = ssub.s32 1, %s6
  %s9 = scalar_select 0, %s8, %s6
  loop: start=0, step=1, limit=4
  $region2: #{residual_block_forward.5} parent=0 // loop_pre_header
    _
  $region3: #{residual_block_forward.5} parent=0 // loop_header
    %s11 = sphi 0, %s15
    %p12 = scmp.ge.s32.totalorder %s11, 4
    %s18 = sphi 0, %s30
    %s19 = sphi 0, %s26
    %s20 = sphi 0, %s18
    %s21 = sphi 0, %s19
    %s22 = sphi 0, %s20
    %s23 = sphi 0, %s21
    %s33 = sphi 0, %s35
    %s36 = sphi 0, %s33
    %s37 = sphi 0, %s36
    %s53 = sphi 0, %s37
    %s59 = sphi 0, %s61
    %s62 = sphi 0, %s59
    %s63 = sphi 0, %s62
    %s79 = sphi 0, %s63
    %s87 = sphi 0, %s89
    %s90 = sphi 0, %s87
    %s91 = sphi 0, %s90
    %s107 = sphi 0, %s91
    %s115 = sphi 0, %s117
    %s118 = sphi 0, %s115
    %s119 = sphi 0, %s118
    %s135 = sphi 0, %s119
    %s143 = sphi 0, %s145
    %s146 = sphi 0, %s143
    %s147 = sphi 0, %s146
    %s163 = sphi 0, %s147
  $region4: #{residual_block_forward.5} parent=0 // loop_header_branch
    %14 = sbr.rel (%p12) target = $region8
  $region5: #{residual_block_forward.5} parent=0 // loop_body
    %s16 = ssub.s32 %s11, 1
    %s17 = ssub.s32 %s11, 2
    %s24 = sadd.s32 1, %s19
    %p25 = scmp.ge.s32.totalorder %s24, 1
    %s26 = scalar_select %p25, 0, %s24
    %s27 = sadd.s32 1, %s18
    %s28 = scalar_select %p25, %s27, %s18
    %p29 = scmp.ge.s32.totalorder %s28, 2
    %s30 = scalar_select %p29, 0, %s28
    %s31 = ssub.s32 %s18, %s30
    %p32 = scmp.eq.s32.totalorder %s31, 0
    %s34 = sadd.s32 %s33, 1
    %s35 = scalar_select %p32, %s33, %s34
    %p38 = pneg %p32
    %p39 = scmp.eq.s32.totalorder %s11, 1
    %p40 = por %p38, %p39
    %p41 = scmp.ne.s32.totalorder %s33, %s36
    %p42 = scmp.eq.s32.totalorder %s11, 0
    %p43 = por %p41, %p42
    %p44 = scmp.ne.s32.totalorder %s33, %s36
    %p45 = scmp.eq.s32.totalorder %s16, 1
    %p46 = por %p44, %p45
    %p47 = scmp.ne.s32.totalorder %s36, %s37
    %p48 = scmp.eq.s32.totalorder %s16, 0
    %p49 = por %p47, %p48
    %p50 = scmp.ne.s32.totalorder %s36, %s37
    %p51 = scmp.eq.s32.totalorder %s17, 1
    %p52 = por %p50, %p51
    %p54 = scmp.ne.s32.totalorder %s37, %s53
    %p55 = scmp.eq.s32.totalorder %s17, 0
    %p56 = por %p54, %p55
    %s57 = ssub.s32 %s19, %s26
    %p58 = scmp.eq.s32.totalorder %s57, 0
    %s60 = sadd.s32 %s59, 1
    %s61 = scalar_select %p58, %s59, %s60
    %p64 = pneg %p58
    %p65 = scmp.eq.s32.totalorder %s11, 1
    %p66 = por %p64, %p65
    %p67 = scmp.ne.s32.totalorder %s59, %s62
    %p68 = scmp.eq.s32.totalorder %s11, 0
    %p69 = por %p67, %p68
    %p70 = scmp.ne.s32.totalorder %s59, %s62
    %p71 = scmp.eq.s32.totalorder %s16, 1
    %p72 = por %p70, %p71
    %p73 = scmp.ne.s32.totalorder %s62, %s63
    %p74 = scmp.eq.s32.totalorder %s16, 0
    %p75 = por %p73, %p74
    %p76 = scmp.ne.s32.totalorder %s62, %s63
    %p77 = scmp.eq.s32.totalorder %s17, 1
    %p78 = por %p76, %p77
    %p80 = scmp.ne.s32.totalorder %s63, %s79
    %p81 = scmp.eq.s32.totalorder %s17, 0
    %p82 = por %p80, %p81
    %s83 = ssub.s32 %s18, %s30
    %s84 = ssub.s32 %s19, %s26
    %s85 = sor.u32 %s83, %s84
    %p86 = scmp.eq.s32.totalorder %s85, 0
    %s88 = sadd.s32 %s87, 1
    %s89 = scalar_select %p86, %s87, %s88
    %p92 = pneg %p86
    %p93 = scmp.eq.s32.totalorder %s11, 1
    %p94 = por %p92, %p93
    %p95 = scmp.ne.s32.totalorder %s87, %s90
    %p96 = scmp.eq.s32.totalorder %s11, 0
    %p97 = por %p95, %p96
    %p98 = scmp.ne.s32.totalorder %s87, %s90
    %p99 = scmp.eq.s32.totalorder %s16, 1
    %p100 = por %p98, %p99
    %p101 = scmp.ne.s32.totalorder %s90, %s91
    %p102 = scmp.eq.s32.totalorder %s16, 0
    %p103 = por %p101, %p102
    %p104 = scmp.ne.s32.totalorder %s90, %s91
    %p105 = scmp.eq.s32.totalorder %s17, 1
    %p106 = por %p104, %p105
    %p108 = scmp.ne.s32.totalorder %s91, %s107
    %p109 = scmp.eq.s32.totalorder %s17, 0
    %p110 = por %p108, %p109
    %s111 = ssub.s32 %s18, %s30
    %s112 = ssub.s32 %s19, %s26
    %s113 = sor.u32 %s111, %s112
    %p114 = scmp.eq.s32.totalorder %s113, 0
    %s116 = sadd.s32 %s115, 1
    %s117 = scalar_select %p114, %s115, %s116
    %p120 = pneg %p114
    %p121 = scmp.eq.s32.totalorder %s11, 1
    %p122 = por %p120, %p121
    %p123 = scmp.ne.s32.totalorder %s115, %s118
    %p124 = scmp.eq.s32.totalorder %s11, 0
    %p125 = por %p123, %p124
    %p126 = scmp.ne.s32.totalorder %s115, %s118
    %p127 = scmp.eq.s32.totalorder %s16, 1
    %p128 = por %p126, %p127
    %p129 = scmp.ne.s32.totalorder %s118, %s119
    %p130 = scmp.eq.s32.totalorder %s16, 0
    %p131 = por %p129, %p130
    %p132 = scmp.ne.s32.totalorder %s118, %s119
    %p133 = scmp.eq.s32.totalorder %s17, 1
    %p134 = por %p132, %p133
    %p136 = scmp.ne.s32.totalorder %s119, %s135
    %p137 = scmp.eq.s32.totalorder %s17, 0
    %p138 = por %p136, %p137
    %s139 = ssub.s32 %s18, %s30
    %s140 = ssub.s32 %s19, %s26
    %s141 = sor.u32 %s139, %s140
    %p142 = scmp.eq.s32.totalorder %s141, 0
    %s144 = sadd.s32 %s143, 1
    %s145 = scalar_select %p142, %s143, %s144
    %p148 = pneg %p142
    %p149 = scmp.eq.s32.totalorder %s11, 1
    %p150 = por %p148, %p149
    %p151 = scmp.ne.s32.totalorder %s143, %s146
    %p152 = scmp.eq.s32.totalorder %s11, 0
    %p153 = por %p151, %p152
    %p154 = scmp.ne.s32.totalorder %s143, %s146
    %p155 = scmp.eq.s32.totalorder %s16, 1
    %p156 = por %p154, %p155
    %p157 = scmp.ne.s32.totalorder %s146, %s147
    %p158 = scmp.eq.s32.totalorder %s16, 0
    %p159 = por %p157, %p158
    %p160 = scmp.ne.s32.totalorder %s146, %s147
    %p161 = scmp.eq.s32.totalorder %s17, 1
    %p162 = por %p160, %p161
    %p164 = scmp.ne.s32.totalorder %s147, %s163
    %p165 = scmp.eq.s32.totalorder %s17, 0
    %p166 = por %p164, %p165
    %p167 = scmp.le.s32.totalorder 1, %s11
    %p168 = scmp.lt.s32.totalorder %s11, 3
    %p169 = pnand %p167, %p168
    %p170 = pneg %p169
    // Predicated region
    $region9: #{residual_block_forward.5} parent=5 // pred_check
      _
    $region10: #{residual_block_forward.5} parent=5 // pred_check_branch
      %172 = sbr.rel (%p169) target = $region12
    $region11: #{residual_block_forward.5} parent=5 // pred_region
      %s173 = ssub.s32 %s11, 1
      // Predicated region
      $region13: #{residual_block_forward.5} parent=11 // pred_check
        %p174 = pneg %p75
      $region14: #{residual_block_forward.5} parent=11 // pred_check_branch
        %176 = sbr.rel (%p174) target = $region16
      $region15: #{residual_block_forward.5} parent=11 // pred_region
        %p177 = scmp.lt.s32.totalorder %s21, 0
        %s178 = scalar_select %p177, %s21, 0
        %s179 = smul.addr %s178, 4
        %s180 = scalar_lea.vmem %s1, %s179
      $region16: #{residual_block_forward.5} parent=11 // pred_fallthru
        _
    $region12: #{residual_block_forward.5} parent=5 // pred_fallthru
      _
    %p181 = scmp.lt.s32.totalorder %s11, 2
    // Predicated region
    $region17: #{residual_block_forward.5} parent=5 // pred_check
      %p182 = pneg %p181
    $region18: #{residual_block_forward.5} parent=5 // pred_check_branch
      %184 = sbr.rel (%p182) target = $region20
    $region19: #{residual_block_forward.5} parent=5 // pred_region
      // Predicated region
      $region21: #{residual_block_forward.5} parent=19 // pred_check
        %p185 = pneg %p43
      $region22: #{residual_block_forward.5} parent=19 // pred_check_branch
        %187 = sbr.rel (%p185) target = $region24
      $region23: #{residual_block_forward.5} parent=19 // pred_region
        %s188 = smul.u32 8, %s18
        %p189 = scmp.lt.s32.totalorder %s188, 15
        %s190 = scalar_select %p189, %s188, 15
        %s191 = smul.addr %s190, 4
        %s192 = scalar_lea.vmem %s0, %s191
        %s193 = smul.u32 8, %s18
      $region24: #{residual_block_forward.5} parent=19 // pred_fallthru
        _
    $region20: #{residual_block_forward.5} parent=5 // pred_fallthru
      _
    %p194 = scmp.le.s32.totalorder 1, %s11
    %p195 = scmp.lt.s32.totalorder %s11, 3
    %p196 = pnand %p194, %p195
    %p197 = pneg %p196
    // Predicated region
    $region25: #{residual_block_forward.5} parent=5 // pred_check
      _
    $region26: #{residual_block_forward.5} parent=5 // pred_check_branch
      %199 = sbr.rel (%p196) target = $region28
    $region27: #{residual_block_forward.5} parent=5 // pred_region
      %s200 = ssub.s32 %s11, 1
      %s201 = smul.u32 8, %s20
      %p202 = scmp.lt.s32.totalorder %s201, 15
      %s203 = scalar_select %p202, %s201, 15
      %s204 = smul.addr %s203, 4
      %s205 = scalar_lea.vmem %s0, %s204
      %p206 = pneg %p49
      %p207 = pneg %p46
      %p208 = scmp.lt.s32.totalorder %s21, 0
      %s209 = scalar_select %p208, %s21, 0
      %s210 = smul.addr %s209, 4
      %s211 = scalar_lea.vmem %s1, %s210
      %p212 = pneg %p75
      %p213 = pneg %p72
      %p214 = pneg %p103
      %p215 = pneg %p100
      %s216 = smul.u32 8, %s20
      %p217 = scmp.lt.s32.totalorder %s216, 15
      %s218 = scalar_select %p217, %s216, 15
      %p219 = scmp.lt.s32.totalorder %s21, 0
      %s220 = scalar_select %p219, %s21, 0
      %s221 = sadd.s32 %s220, %s218
      %s222 = smul.addr %s221, 4
      %s223 = scalar_lea.vmem %s2, %s222
      %p224 = pneg %p131
      %p225 = pneg %p128
      %p226 = scmp.lt.s32.totalorder %s20, 1
      %s227 = scalar_select %p226, %s20, 1
      %p228 = scmp.lt.s32.totalorder %s21, 0
      %s229 = scalar_select %p228, %s21, 0
      %s230 = sadd.s32 %s229, %s227
      %s231 = scalar_lea.vmem %s3, %s230
      %p232 = pneg %p159
      %p233 = pneg %p156
      %p234 = scmp.lt.s32.totalorder %s20, 1
      %s235 = scalar_select %p234, %s20, 1
      %p236 = scmp.lt.s32.totalorder %s21, 0
      %s237 = scalar_select %p236, %s21, 0
      %s238 = sadd.s32 %s237, %s235
      %s239 = scalar_lea.vmem %s4, %s238
      %s240 = smul.u32 8, %s20
      %p241 = scmp.lt.s32.totalorder %s240, 15
      %s242 = scalar_select %p241, %s240, 15
      %s243 = smul.addr %s242, 4
      %s244 = scalar_lea.vmem %s0, %s243
      %s245 = smul.u32 8, %s20
      %p246 = scmp.lt.s32.totalorder %s21, 0
      %s247 = scalar_select %p246, %s21, 0
      %s248 = smul.addr %s247, 4
      %s249 = scalar_lea.vmem %s1, %s248
      %s250 = smul.u32 8, %s20
      %p251 = scmp.lt.s32.totalorder %s250, 15
      %s252 = scalar_select %p251, %s250, 15
      %p253 = scmp.lt.s32.totalorder %s21, 0
      %s254 = scalar_select %p253, %s21, 0
      %s255 = sadd.s32 %s254, %s252
      %s256 = smul.addr %s255, 4
      %s257 = scalar_lea.vmem %s2, %s256
      %s258 = smul.u32 8, %s20
      %p259 = scmp.lt.s32.totalorder %s20, 1
      %s260 = scalar_select %p259, %s20, 1
      %p261 = scmp.lt.s32.totalorder %s21, 0
      %s262 = scalar_select %p261, %s21, 0
      %s263 = sadd.s32 %s262, %s260
      %s264 = scalar_lea.vmem %s3, %s263
      %p265 = scmp.lt.s32.totalorder %s20, 1
      %s266 = scalar_select %p265, %s20, 1
      %p267 = scmp.lt.s32.totalorder %s21, 0
      %s268 = scalar_select %p267, %s21, 0
      %s269 = sadd.s32 %s268, %s266
      %s270 = scalar_lea.vmem %s4, %s269
      %v272 = vld [vmem:[%s244] sm:$0xf]
      %v273 = vld [vmem:[%s244 + $0x4] sm:$0xf]
      %v274 = vld [vmem:[%s244 + $0x8] sm:$0xf]
      %v275 = vld [vmem:[%s244 + $0xc] sm:$0xf]
      %v276 = vld [vmem:[%s244 + $0x10] sm:$0xf]
      %v277 = vld [vmem:[%s244 + $0x14] sm:$0xf]
      %v278 = vld [vmem:[%s244 + $0x18] sm:$0xf]
      %v279 = vld [vmem:[%s244 + $0x1c] sm:$0xf]
      %v280 = vld [vmem:[%s249] sm:$0xf]
      %v281 = vld [vmem:[%s249 + $0x4] sm:$0xf]
      %v282 = vld [vmem:[%s249 + $0x8] sm:$0xf]
      %v283 = vld [vmem:[%s249 + $0xc] sm:$0xf]
      %v284 = vld [vmem:[%s249 + $0x10] sm:$0xf]
      %v293 = vunpack.c.l.b16 %v272
      %v294 = vunpack.c.l.b16 %v273
      %v295 = vunpack.c.l.b16 %v274
      %v296 = vunpack.c.l.b16 %v275
      %v297 = vunpack.c.l.b16 %v276
      %v298 = vunpack.c.l.b16 %v277
      %v299 = vunpack.c.l.b16 %v278
      %v300 = vunpack.c.l.b16 %v279
      %v301 = vpack.c.b16 %v294, %v293
      %v302 = vpack.c.b16 %v296, %v295
      %v303 = vpack.c.b16 %v298, %v297
      %v304 = vpack.c.b16 %v300, %v299
      %v310 = vunpack.c.l.b16 %v280
      %v311 = vunpack.c.l.b16 %v281
      %v312 = vunpack.c.l.b16 %v282
      %v313 = vunpack.c.l.b16 %v283
      %v314 = vunpack.c.l.b16 %v284
      %v315 = vpack.c.b16 %v311, %v310
      %v316 = vpack.c.b16 %v313, %v312
      %v317 = vpack.c.b16 %v314, %v314
      %vm320 = vcmask 326656
      %v322 = vsel %vm320, %v301, 0
      %v325 = vsel %vm320, %v302, 0
      %v328 = vsel %vm320, %v303, 0
      %v331 = vsel %vm320, %v304, 0
      %vm333 = vcmask 1043456
      %v335 = vsel %vm333, %v317, 0
      %337 = vmatprep.subr.bf16.mxu0 0
      %338 = vmatpush1.bf16.msra.mxu0 0
      %339 = vmatprep.subr.bf16.mxu0 0
      %340 = vmatpush1.bf16.msra.mxu0 0
      %341 = vmatprep.subr.bf16.mxu0 0
      %342 = vmatpush1.bf16.msra.mxu0 0
      %343 = vmatprep.subr.bf16.mxu0 0
      %344 = vmatpush1.bf16.msra.mxu0 0
      %345 = vmatprep.subr.bf16.mxu0 0
      %346 = vmatpush1.bf16.msra.mxu0 0
      %347 = vmatprep.subr.bf16.mxu0 0
      %348 = vmatpush1.bf16.msra.mxu0 %v335
      %349 = vmatprep.subr.bf16.mxu0 0
      %350 = vmatpush1.bf16.msra.mxu0 %v316
      %351 = vmatprep.subr.bf16.mxu0 0
      %352 = vmatpush1.bf16.msra.mxu0 %v315
      %353 = vmatprep.subr.bf16.mxu0 0
      %354 = vmatpush2.bf16.msra.mxu0 0
      %355 = vmatprep.subr.bf16.mxu0 0
      %356 = vmatpush2.bf16.msra.mxu0 0
      %357 = vmatprep.subr.bf16.mxu0 0
      %358 = vmatpush2.bf16.msra.mxu0 0
      %359 = vmatprep.subr.bf16.mxu0 0
      %360 = vmatpush2.bf16.msra.mxu0 0
      %361 = vmatprep.subr.bf16.mxu0 0
      %362 = vmatpush2.bf16.msra.mxu0 0
      %363 = vmatprep.subr.bf16.mxu0 0
      %364 = vmatpush2.bf16.msra.mxu0 0
      %365 = vmatprep.subr.bf16.mxu0 0
      %366 = vmatpush2.bf16.msra.mxu0 0
      %367 = vmatprep.subr.bf16.mxu0 0
      %368 = vmatpush2.bf16.msra.mxu0 0
      %369 = vmatprep.mubr.bf16.mxu0 0
      %370 = vmatmul.mubr.bf16.gmra.mxu0 %v322
      %v371 = vpop.f32.mrf.mxu0
      %v372 = vadd.f32 0.0, %v371
      %v373 = vpop.f32.mrf.mxu0
      %v374 = vpop.f32.mrf.mxu0
      %v375 = vadd.f32 0.0, %v374
      %v376 = vpop.f32.mrf.mxu0
      %377 = vmatprep.mubr.bf16.mxu0 0
      %378 = vmatmul.mubr.bf16.gmra.mxu0 %v325
      %v379 = vpop.f32.mrf.mxu0
      %v380 = vadd.f32 0.0, %v379
      %v381 = vpop.f32.mrf.mxu0
      %v382 = vpop.f32.mrf.mxu0
      %v383 = vadd.f32 0.0, %v382
      %v384 = vpop.f32.mrf.mxu0
      %385 = vmatprep.mubr.bf16.mxu0 0
      %386 = vmatmul.mubr.bf16.gmra.mxu0 %v328
      %v387 = vpop.f32.mrf.mxu0
      %v388 = vadd.f32 0.0, %v387
      %v389 = vpop.f32.mrf.mxu0
      %v390 = vpop.f32.mrf.mxu0
      %v391 = vadd.f32 0.0, %v390
      %v392 = vpop.f32.mrf.mxu0
      %393 = vmatprep.mubr.bf16.mxu0 0
      %394 = vmatmul.mubr.bf16.gmra.mxu0 %v331
      %v395 = vpop.f32.mrf.mxu0
      %v396 = vadd.f32 0.0, %v395
      %v397 = vpop.f32.mrf.mxu0
      %v398 = vpop.f32.mrf.mxu0
      %v399 = vadd.f32 0.0, %v398
      %v400 = vpop.f32.mrf.mxu0
      %401 = vdwg.mxu0
      %v402 = vpack.c.bf16 %v375, %v372
      %v403 = vpack.c.bf16 %v383, %v380
      %v404 = vpack.c.bf16 %v391, %v388
      %v405 = vpack.c.bf16 %v399, %v396
      %v410 = vunpack.c.l.b16 %v402
      %v411 = vunpack.c.h.b16 %v402
      %v412 = vunpack.c.l.b16 %v403
      %v413 = vunpack.c.h.b16 %v403
      %v414 = vunpack.c.l.b16 %v404
      %v415 = vunpack.c.h.b16 %v404
      %v416 = vunpack.c.l.b16 %v405
      %v417 = vunpack.c.h.b16 %v405
      %v418 = vpack.c.b16 %v410, %v410
      %v419 = vpack.c.b16 %v411, %v411
      %v420 = vpack.c.b16 %v412, %v412
      %v421 = vpack.c.b16 %v413, %v413
      %v422 = vpack.c.b16 %v414, %v414
      %v423 = vpack.c.b16 %v415, %v415
      %v424 = vpack.c.b16 %v416, %v416
      %v425 = vpack.c.b16 %v417, %v417
      %434 = vst [vmem:[%s257] sm:$0xf] %v418
      %435 = vst [vmem:[%s257 + $0x4] sm:$0xf] %v419
      %436 = vst [vmem:[%s257 + $0x8] sm:$0xf] %v420
      %437 = vst [vmem:[%s257 + $0xc] sm:$0xf] %v421
      %438 = vst [vmem:[%s257 + $0x10] sm:$0xf] %v422
      %439 = vst [vmem:[%s257 + $0x14] sm:$0xf] %v423
      %440 = vst [vmem:[%s257 + $0x18] sm:$0xf] %v424
      %441 = vst [vmem:[%s257 + $0x1c] sm:$0xf] %v425
      %v442 = vadd.f32 %v372, %v375
      %v443 = vadd.f32 %v442, %v380
      %v444 = vadd.f32 %v443, %v383
      %v445 = vadd.f32 %v444, %v388
      %v446 = vadd.f32 %v445, %v391
      %v447 = vadd.f32 %v446, %v396
      %v448 = vadd.f32 %v447, %v399
      %v449 = vrot.slane %v448, 4
      %v450 = vadd.f32 %v448, %v449
      %v451 = vrot.slane %v450, 2
      %v452 = vadd.f32 %v450, %v451
      %v453 = vrot.slane %v452, 1
      %v454 = vadd.f32 %v452, %v453
      %455 = vst [vmem:[%s264] sm:$0x1] %v454
      %v456 = vmul.f32 %v372, %v372
      %v457 = vmul.f32 %v375, %v375
      %v458 = vmul.f32 %v380, %v380
      %v459 = vmul.f32 %v383, %v383
      %v460 = vmul.f32 %v388, %v388
      %v461 = vmul.f32 %v391, %v391
      %v462 = vmul.f32 %v396, %v396
      %v463 = vmul.f32 %v399, %v399
      %v464 = vadd.f32 %v456, %v457
      %v465 = vadd.f32 %v464, %v458
      %v466 = vadd.f32 %v465, %v459
      %v467 = vadd.f32 %v466, %v460
      %v468 = vadd.f32 %v467, %v461
      %v469 = vadd.f32 %v468, %v462
      %v470 = vadd.f32 %v469, %v463
      %v471 = vrot.slane %v470, 4
      %v472 = vadd.f32 %v470, %v471
      %v473 = vrot.slane %v472, 2
      %v474 = vadd.f32 %v472, %v473
      %v475 = vrot.slane %v474, 1
      %v476 = vadd.f32 %v474, %v475
      %477 = vst [vmem:[%s270] sm:$0x1] %v476
      %s478 = smul.u32 8, %s20
      %p479 = scmp.lt.s32.totalorder %s478, 15
      %s480 = scalar_select %p479, %s478, 15
      %p481 = scmp.lt.s32.totalorder %s21, 0
      %s482 = scalar_select %p481, %s21, 0
      %s483 = sadd.s32 %s482, %s480
      %s484 = smul.addr %s483, 4
      %s485 = scalar_lea.vmem %s2, %s484
      %p486 = scmp.lt.s32.totalorder %s20, 1
      %s487 = scalar_select %p486, %s20, 1
      %p488 = scmp.lt.s32.totalorder %s21, 0
      %s489 = scalar_select %p488, %s21, 0
      %s490 = sadd.s32 %s489, %s487
      %s491 = scalar_lea.vmem %s3, %s490
      %p492 = scmp.lt.s32.totalorder %s20, 1
      %s493 = scalar_select %p492, %s20, 1
      %p494 = scmp.lt.s32.totalorder %s21, 0
      %s495 = scalar_select %p494, %s21, 0
      %s496 = sadd.s32 %s495, %s493
      %s497 = scalar_lea.vmem %s4, %s496
      // Predicated region
      $region29: #{residual_block_forward.5} parent=27 // pred_check
        %p498 = pneg %p100
      $region30: #{residual_block_forward.5} parent=27 // pred_check_branch
        %500 = sbr.rel (%p498) target = $region32
      $region31: #{residual_block_forward.5} parent=27 // pred_region
        %s501 = smul.u32 8, %s20
      $region32: #{residual_block_forward.5} parent=27 // pred_fallthru
        _
      // Predicated region
      $region33: #{residual_block_forward.5} parent=27 // pred_check
        %p502 = pneg %p128
      $region34: #{residual_block_forward.5} parent=27 // pred_check_branch
        %504 = sbr.rel (%p502) target = $region36
      $region35: #{residual_block_forward.5} parent=27 // pred_region
        _
      $region36: #{residual_block_forward.5} parent=27 // pred_fallthru
        _
      // Predicated region
      $region37: #{residual_block_forward.5} parent=27 // pred_check
        %p505 = pneg %p156
      $region38: #{residual_block_forward.5} parent=27 // pred_check_branch
        %507 = sbr.rel (%p505) target = $region40
      $region39: #{residual_block_forward.5} parent=27 // pred_region
        _
      $region40: #{residual_block_forward.5} parent=27 // pred_fallthru
        _
    $region28: #{residual_block_forward.5} parent=5 // pred_fallthru
      _
    %p508 = scmp.le.s32.totalorder 2, %s11
    // Predicated region
    $region41: #{residual_block_forward.5} parent=5 // pred_check
      %p509 = pneg %p508
    $region42: #{residual_block_forward.5} parent=5 // pred_check_branch
      %511 = sbr.rel (%p509) target = $region44
    $region43: #{residual_block_forward.5} parent=5 // pred_region
      %s512 = ssub.s32 %s11, 2
      // Predicated region
      $region45: #{residual_block_forward.5} parent=43 // pred_check
        %p513 = pneg %p106
      $region46: #{residual_block_forward.5} parent=43 // pred_check_branch
        %515 = sbr.rel (%p513) target = $region48
      $region47: #{residual_block_forward.5} parent=43 // pred_region
        %s516 = smul.u32 8, %s22
        %p517 = scmp.lt.s32.totalorder %s516, 15
        %s518 = scalar_select %p517, %s516, 15
        %p519 = scmp.lt.s32.totalorder %s23, 0
        %s520 = scalar_select %p519, %s23, 0
        %s521 = sadd.s32 %s520, %s518
        %s522 = smul.addr %s521, 4
        %s523 = scalar_lea.vmem %s2, %s522
      $region48: #{residual_block_forward.5} parent=43 // pred_fallthru
        _
      // Predicated region
      $region49: #{residual_block_forward.5} parent=43 // pred_check
        %p524 = pneg %p134
      $region50: #{residual_block_forward.5} parent=43 // pred_check_branch
        %526 = sbr.rel (%p524) target = $region52
      $region51: #{residual_block_forward.5} parent=43 // pred_region
        %p527 = scmp.lt.s32.totalorder %s22, 1
        %s528 = scalar_select %p527, %s22, 1
        %p529 = scmp.lt.s32.totalorder %s23, 0
        %s530 = scalar_select %p529, %s23, 0
        %s531 = sadd.s32 %s530, %s528
        %s532 = scalar_lea.vmem %s3, %s531
      $region52: #{residual_block_forward.5} parent=43 // pred_fallthru
        _
      // Predicated region
      $region53: #{residual_block_forward.5} parent=43 // pred_check
        %p533 = pneg %p162
      $region54: #{residual_block_forward.5} parent=43 // pred_check_branch
        %535 = sbr.rel (%p533) target = $region56
      $region55: #{residual_block_forward.5} parent=43 // pred_region
        %p536 = scmp.lt.s32.totalorder %s22, 1
        %s537 = scalar_select %p536, %s22, 1
        %p538 = scmp.lt.s32.totalorder %s23, 0
        %s539 = scalar_select %p538, %s23, 0
        %s540 = sadd.s32 %s539, %s537
        %s541 = scalar_lea.vmem %s4, %s540
      $region56: #{residual_block_forward.5} parent=43 // pred_fallthru
        _
    $region44: #{residual_block_forward.5} parent=5 // pred_fallthru
      _
  $region6: #{residual_block_forward.5} parent=0 // loop_footer
    %s15 = sadd.s32 1, %s11
  $region7: #{residual_block_forward.5} parent=0 // loop_footer_branch
    %10 = sbr.rel target = $region3
  $region8: #{residual_block_forward.5} parent=0 // loop_exit
    _

// kernel: residual_block_forward.6
$region0: #{residual_block_forward.6}
  #allocation0 [shape = 'u32[]', space=smem, size = 0x4, offset = 0x4, fixed_abs, tag = 'smem constant byte address 0x4 - core index']
  #allocation1 [shape = 'u32[144,128]{1,0:T(1,128)}', space=vmem, size = 0x12000, scoped, tag = 'internal scratch']
  %s0 = inlined_call_operand.vmem [shape: bf16[2,64,128], index: 0, kind: input, shape index: {}, may-alias: {0,3}]
  %s1 = inlined_call_operand.vmem [shape: f32[1,1,128], index: 1, kind: input, shape index: {}]
  %s2 = inlined_call_operand.vmem [shape: f32[1,1,128], index: 2, kind: input, shape index: {}]
  %s3 = inlined_call_operand.vmem [shape: bf16[2,64,128], index: 3, kind: output, shape index: {}, may-alias: {0,3}]
  %s4 = sld [smem:[#allocation0]]
  $region45: #{residual_block_forward.6} parent=0
    _
  %s6 = ssub.s32 1, %s4
  %s7 = scalar_select 0, %s6, %s4
  loop: start=0, step=1, limit=4
  $region2: #{residual_block_forward.6} parent=0 // loop_pre_header
    _
  $region3: #{residual_block_forward.6} parent=0 // loop_header
    %s9 = sphi 0, %s13
    %p10 = scmp.ge.s32.totalorder %s9, 4
    %s16 = sphi 0, %s28
    %s17 = sphi 0, %s24
    %s18 = sphi 0, %s16
    %s19 = sphi 0, %s17
    %s20 = sphi 0, %s18
    %s21 = sphi 0, %s19
    %s33 = sphi 0, %s35
    %s36 = sphi 0, %s33
    %s37 = sphi 0, %s36
    %s53 = sphi 0, %s37
    %s59 = sphi 0, %s61
    %s62 = sphi 0, %s59
    %s63 = sphi 0, %s62
    %s79 = sphi 0, %s63
    %s85 = sphi 0, %s87
    %s88 = sphi 0, %s85
    %s89 = sphi 0, %s88
    %s105 = sphi 0, %s89
    %s113 = sphi 0, %s115
    %s116 = sphi 0, %s113
    %s117 = sphi 0, %s116
    %s133 = sphi 0, %s117
  $region4: #{residual_block_forward.6} parent=0 // loop_header_branch
    %12 = sbr.rel (%p10) target = $region8
  $region5: #{residual_block_forward.6} parent=0 // loop_body
    %s14 = ssub.s32 %s9, 1
    %s15 = ssub.s32 %s9, 2
    %s22 = sadd.s32 1, %s17
    %p23 = scmp.ge.s32.totalorder %s22, 1
    %s24 = scalar_select %p23, 0, %s22
    %s25 = sadd.s32 1, %s16
    %s26 = scalar_select %p23, %s25, %s16
    %p27 = scmp.ge.s32.totalorder %s26, 2
    %s28 = scalar_select %p27, 0, %s26
    %s29 = ssub.s32 %s16, %s28
    %s30 = ssub.s32 %s17, %s24
    %s31 = sor.u32 %s29, %s30
    %p32 = scmp.eq.s32.totalorder %s31, 0
    %s34 = sadd.s32 %s33, 1
    %s35 = scalar_select %p32, %s33, %s34
    %p38 = pneg %p32
    %p39 = scmp.eq.s32.totalorder %s9, 1
    %p40 = por %p38, %p39
    %p41 = scmp.ne.s32.totalorder %s33, %s36
    %p42 = scmp.eq.s32.totalorder %s9, 0
    %p43 = por %p41, %p42
    %p44 = scmp.ne.s32.totalorder %s33, %s36
    %p45 = scmp.eq.s32.totalorder %s14, 1
    %p46 = por %p44, %p45
    %p47 = scmp.ne.s32.totalorder %s36, %s37
    %p48 = scmp.eq.s32.totalorder %s14, 0
    %p49 = por %p47, %p48
    %p50 = scmp.ne.s32.totalorder %s36, %s37
    %p51 = scmp.eq.s32.totalorder %s15, 1
    %p52 = por %p50, %p51
    %p54 = scmp.ne.s32.totalorder %s37, %s53
    %p55 = scmp.eq.s32.totalorder %s15, 0
    %p56 = por %p54, %p55
    %s57 = ssub.s32 %s17, %s24
    %p58 = scmp.eq.s32.totalorder %s57, 0
    %s60 = sadd.s32 %s59, 1
    %s61 = scalar_select %p58, %s59, %s60
    %p64 = pneg %p58
    %p65 = scmp.eq.s32.totalorder %s9, 1
    %p66 = por %p64, %p65
    %p67 = scmp.ne.s32.totalorder %s59, %s62
    %p68 = scmp.eq.s32.totalorder %s9, 0
    %p69 = por %p67, %p68
    %p70 = scmp.ne.s32.totalorder %s59, %s62
    %p71 = scmp.eq.s32.totalorder %s14, 1
    %p72 = por %p70, %p71
    %p73 = scmp.ne.s32.totalorder %s62, %s63
    %p74 = scmp.eq.s32.totalorder %s14, 0
    %p75 = por %p73, %p74
    %p76 = scmp.ne.s32.totalorder %s62, %s63
    %p77 = scmp.eq.s32.totalorder %s15, 1
    %p78 = por %p76, %p77
    %p80 = scmp.ne.s32.totalorder %s63, %s79
    %p81 = scmp.eq.s32.totalorder %s15, 0
    %p82 = por %p80, %p81
    %s83 = ssub.s32 %s17, %s24
    %p84 = scmp.eq.s32.totalorder %s83, 0
    %s86 = sadd.s32 %s85, 1
    %s87 = scalar_select %p84, %s85, %s86
    %p90 = pneg %p84
    %p91 = scmp.eq.s32.totalorder %s9, 1
    %p92 = por %p90, %p91
    %p93 = scmp.ne.s32.totalorder %s85, %s88
    %p94 = scmp.eq.s32.totalorder %s9, 0
    %p95 = por %p93, %p94
    %p96 = scmp.ne.s32.totalorder %s85, %s88
    %p97 = scmp.eq.s32.totalorder %s14, 1
    %p98 = por %p96, %p97
    %p99 = scmp.ne.s32.totalorder %s88, %s89
    %p100 = scmp.eq.s32.totalorder %s14, 0
    %p101 = por %p99, %p100
    %p102 = scmp.ne.s32.totalorder %s88, %s89
    %p103 = scmp.eq.s32.totalorder %s15, 1
    %p104 = por %p102, %p103
    %p106 = scmp.ne.s32.totalorder %s89, %s105
    %p107 = scmp.eq.s32.totalorder %s15, 0
    %p108 = por %p106, %p107
    %s109 = ssub.s32 %s16, %s28
    %s110 = ssub.s32 %s17, %s24
    %s111 = sor.u32 %s109, %s110
    %p112 = scmp.eq.s32.totalorder %s111, 0
    %s114 = sadd.s32 %s113, 1
    %s115 = scalar_select %p112, %s113, %s114
    %p118 = pneg %p112
    %p119 = scmp.eq.s32.totalorder %s9, 1
    %p120 = por %p118, %p119
    %p121 = scmp.ne.s32.totalorder %s113, %s116
    %p122 = scmp.eq.s32.totalorder %s9, 0
    %p123 = por %p121, %p122
    %p124 = scmp.ne.s32.totalorder %s113, %s116
    %p125 = scmp.eq.s32.totalorder %s14, 1
    %p126 = por %p124, %p125
    %p127 = scmp.ne.s32.totalorder %s116, %s117
    %p128 = scmp.eq.s32.totalorder %s14, 0
    %p129 = por %p127, %p128
    %p130 = scmp.ne.s32.totalorder %s116, %s117
    %p131 = scmp.eq.s32.totalorder %s15, 1
    %p132 = por %p130, %p131
    %p134 = scmp.ne.s32.totalorder %s117, %s133
    %p135 = scmp.eq.s32.totalorder %s15, 0
    %p136 = por %p134, %p135
    %p137 = scmp.le.s32.totalorder 1, %s9
    %p138 = scmp.lt.s32.totalorder %s9, 3
    %p139 = pnand %p137, %p138
    %p140 = pneg %p139
    // Predicated region
    $region9: #{residual_block_forward.6} parent=5 // pred_check
      _
    $region10: #{residual_block_forward.6} parent=5 // pred_check_branch
      %142 = sbr.rel (%p139) target = $region12
    $region11: #{residual_block_forward.6} parent=5 // pred_region
      %s143 = ssub.s32 %s9, 1
      // Predicated region
      $region13: #{residual_block_forward.6} parent=11 // pred_check
        %p144 = pneg %p75
      $region14: #{residual_block_forward.6} parent=11 // pred_check_branch
        %146 = sbr.rel (%p144) target = $region16
      $region15: #{residual_block_forward.6} parent=11 // pred_region
        %p147 = scmp.lt.s32.totalorder %s19, 0
        %s148 = scalar_select %p147, %s19, 0
        %s149 = scalar_lea.vmem %s1, %s148
      $region16: #{residual_block_forward.6} parent=11 // pred_fallthru
        _
      // Predicated region
      $region17: #{residual_block_forward.6} parent=11 // pred_check
        %p150 = pneg %p101
      $region18: #{residual_block_forward.6} parent=11 // pred_check_branch
        %152 = sbr.rel (%p150) target = $region20
      $region19: #{residual_block_forward.6} parent=11 // pred_region
        %p153 = scmp.lt.s32.totalorder %s19, 0
        %s154 = scalar_select %p153, %s19, 0
        %s155 = scalar_lea.vmem %s2, %s154
      $region20: #{residual_block_forward.6} parent=11 // pred_fallthru
        _
    $region12: #{residual_block_forward.6} parent=5 // pred_fallthru
      _
    %p156 = scmp.lt.s32.totalorder %s9, 2
    // Predicated region
    $region21: #{residual_block_forward.6} parent=5 // pred_check
      %p157 = pneg %p156
    $region22: #{residual_block_forward.6} parent=5 // pred_check_branch
      %159 = sbr.rel (%p157) target = $region24
    $region23: #{residual_block_forward.6} parent=5 // pred_region
      // Predicated region
      $region25: #{residual_block_forward.6} parent=23 // pred_check
        %p160 = pneg %p43
      $region26: #{residual_block_forward.6} parent=23 // pred_check_branch
        %162 = sbr.rel (%p160) target = $region28
      $region27: #{residual_block_forward.6} parent=23 // pred_region
        %p163 = scmp.lt.s32.totalorder %s16, 1
        %s164 = scalar_select %p163, %s16, 1
        %p165 = scmp.lt.s32.totalorder %s17, 0
        %s166 = scalar_select %p165, %s17, 0
        %s167 = smul.addr %s164, 8
        %s168 = sadd.s32 %s166, %s167
        %s169 = smul.addr %s168, 4
        %s170 = scalar_lea.vmem %s0, %s169
      $region28: #{residual_block_forward.6} parent=23 // pred_fallthru
        _
    $region24: #{residual_block_forward.6} parent=5 // pred_fallthru
      _
    %p171 = scmp.le.s32.totalorder 1, %s9
    %p172 = scmp.lt.s32.totalorder %s9, 3
    %p173 = pnand %p171, %p172
    %p174 = pneg %p173
    // Predicated region
    $region29: #{residual_block_forward.6} parent=5 // pred_check
      _
    $region30: #{residual_block_forward.6} parent=5 // pred_check_branch
      %176 = sbr.rel (%p173) target = $region32
    $region31: #{residual_block_forward.6} parent=5 // pred_region
      %s177 = ssub.s32 %s9, 1
      %p178 = scmp.lt.s32.totalorder %s18, 1
      %s179 = scalar_select %p178, %s18, 1
      %p180 = scmp.lt.s32.totalorder %s19, 0
      %s181 = scalar_select %p180, %s19, 0
      %s182 = smul.addr %s179, 8
      %s183 = sadd.s32 %s181, %s182
      %s184 = smul.addr %s183, 4
      %s185 = scalar_lea.vmem %s0, %s184
      %p186 = pneg %p49
      %p187 = pneg %p46
      %p188 = scmp.lt.s32.totalorder %s19, 0
      %s189 = scalar_select %p188, %s19, 0
      %s190 = scalar_lea.vmem %s1, %s189
      %p191 = pneg %p75
      %p192 = pneg %p72
      %p193 = scmp.lt.s32.totalorder %s19, 0
      %s194 = scalar_select %p193, %s19, 0
      %s195 = scalar_lea.vmem %s2, %s194
      %p196 = pneg %p101
      %p197 = pneg %p98
      %p198 = pneg %p129
      %p199 = pneg %p126
      %p200 = scmp.lt.s32.totalorder %s18, 1
      %s201 = scalar_select %p200, %s18, 1
      %p202 = scmp.lt.s32.totalorder %s19, 0
      %s203 = scalar_select %p202, %s19, 0
      %s204 = smul.addr %s201, 8
      %s205 = sadd.s32 %s203, %s204
      %s206 = smul.addr %s205, 4
      %s207 = scalar_lea.vmem %s3, %s206
      %p208 = scmp.lt.s32.totalorder %s18, 1
      %s209 = scalar_select %p208, %s18, 1
      %p210 = scmp.lt.s32.totalorder %s19, 0
      %s211 = scalar_select %p210, %s19, 0
      %s212 = smul.addr %s209, 8
      %s213 = sadd.s32 %s211, %s212
      %s214 = smul.addr %s213, 4
      %s215 = scalar_lea.vmem %s0, %s214
      %p216 = scmp.lt.s32.totalorder %s19, 0
      %s217 = scalar_select %p216, %s19, 0
      %s218 = scalar_lea.vmem %s1, %s217
      %p219 = scmp.lt.s32.totalorder %s19, 0
      %s220 = scalar_select %p219, %s19, 0
      %s221 = scalar_lea.vmem %s2, %s220
      %p222 = scmp.lt.s32.totalorder %s18, 1
      %s223 = scalar_select %p222, %s18, 1
      %p224 = scmp.lt.s32.totalorder %s19, 0
      %s225 = scalar_select %p224, %s19, 0
      %s226 = smul.addr %s223, 8
      %s227 = sadd.s32 %s225, %s226
      %s228 = smul.addr %s227, 4
      %s229 = scalar_lea.vmem %s3, %s228
      %v230 = vld [vmem:[%s215] sm:$0xf]
      %v231 = vld [vmem:[%s215 + $0x4] sm:$0xf]
      %v232 = vld [vmem:[%s215 + $0x8] sm:$0xf]
      %v233 = vld [vmem:[%s215 + $0xc] sm:$0xf]
      %v234 = vld [vmem:[%s215 + $0x10] sm:$0xf]
      %v235 = vld [vmem:[%s215 + $0x14] sm:$0xf]
      %v236 = vld [vmem:[%s215 + $0x18] sm:$0xf]
      %v237 = vld [vmem:[%s215 + $0x1c] sm:$0xf]
      %v238 = vunpack.c.l.bf16 %v230
      %v239 = vunpack.c.l.bf16 %v231
      %v240 = vunpack.c.l.bf16 %v232
      %v241 = vunpack.c.l.bf16 %v233
      %v242 = vunpack.c.l.bf16 %v234
      %v243 = vunpack.c.l.bf16 %v235
      %v244 = vunpack.c.l.bf16 %v236
      %v245 = vunpack.c.l.bf16 %v237
      %v246 = vld [vmem:[%s218] sm:$0x1]
      %v248 = vlaneseq
      %v249 = vshrl.u32 %v248, 7
      %v250 = vsub.s32 0, %v249
      %v251 = vrot.slane %v246, %v250
      %v253 = vmul.f32 %v238, %v251
      %v254 = vmul.f32 %v239, %v251
      %v255 = vmul.f32 %v240, %v251
      %v256 = vmul.f32 %v241, %v251
      %v257 = vmul.f32 %v242, %v251
      %v258 = vmul.f32 %v243, %v251
      %v259 = vmul.f32 %v244, %v251
      %v260 = vmul.f32 %v245, %v251
      %v261 = vld [vmem:[%s221] sm:$0x1]
      %v263 = vlaneseq
      %v264 = vshrl.u32 %v263, 7
      %v265 = vsub.s32 0, %v264
      %v266 = vrot.slane %v261, %v265
      %v268 = vadd.f32 %v253, %v266
      %v269 = vadd.f32 %v254, %v266
      %v270 = vadd.f32 %v255, %v266
      %v271 = vadd.f32 %v256, %v266
      %v272 = vadd.f32 %v257, %v266
      %v273 = vadd.f32 %v258, %v266
      %v274 = vadd.f32 %v259, %v266
      %v275 = vadd.f32 %v260, %v266
      %v276 = vmax.f32 %v268, 0.0
      %v277 = vmax.f32 %v269, 0.0
      %v278 = vmax.f32 %v270, 0.0
      %v279 = vmax.f32 %v271, 0.0
      %v280 = vmax.f32 %v272, 0.0
      %v281 = vmax.f32 %v273, 0.0
      %v282 = vmax.f32 %v274, 0.0
      %v283 = vmax.f32 %v275, 0.0
      %v284 = vpack.c.bf16 %v277, %v276
      %v285 = vpack.c.bf16 %v279, %v278
      %v286 = vpack.c.bf16 %v281, %v280
      %v287 = vpack.c.bf16 %v283, %v282
      %v292 = vunpack.c.l.b16 %v284
      %v293 = vunpack.c.h.b16 %v284
      %v294 = vunpack.c.l.b16 %v285
      %v295 = vunpack.c.h.b16 %v285
      %v296 = vunpack.c.l.b16 %v286
      %v297 = vunpack.c.h.b16 %v286
      %v298 = vunpack.c.l.b16 %v287
      %v299 = vunpack.c.h.b16 %v287
      %v300 = vpack.c.b16 %v292, %v292
      %v301 = vpack.c.b16 %v293, %v293
      %v302 = vpack.c.b16 %v294, %v294
      %v303 = vpack.c.b16 %v295, %v295
      %v304 = vpack.c.b16 %v296, %v296
      %v305 = vpack.c.b16 %v297, %v297
      %v306 = vpack.c.b16 %v298, %v298
      %v307 = vpack.c.b16 %v299, %v299
      %316 = vst [vmem:[%s229] sm:$0xf] %v300
      %317 = vst [vmem:[%s229 + $0x4] sm:$0xf] %v301
      %318 = vst [vmem:[%s229 + $0x8] sm:$0xf] %v302
      %319 = vst [vmem:[%s229 + $0xc] sm:$0xf] %v303
      %320 = vst [vmem:[%s229 + $0x10] sm:$0xf] %v304
      %321 = vst [vmem:[%s229 + $0x14] sm:$0xf] %v305
      %322 = vst [vmem:[%s229 + $0x18] sm:$0xf] %v306
      %323 = vst [vmem:[%s229 + $0x1c] sm:$0xf] %v307
      %p324 = scmp.lt.s32.totalorder %s18, 1
      %s325 = scalar_select %p324, %s18, 1
      %p326 = scmp.lt.s32.totalorder %s19, 0
      %s327 = scalar_select %p326, %s19, 0
      %s328 = smul.addr %s325, 8
      %s329 = sadd.s32 %s327, %s328
      %s330 = smul.addr %s329, 4
      %s331 = scalar_lea.vmem %s3, %s330
      // Predicated region
      $region33: #{residual_block_forward.6} parent=31 // pred_check
        %p332 = pneg %p126
      $region34: #{residual_block_forward.6} parent=31 // pred_check_branch
        %334 = sbr.rel (%p332) target = $region36
      $region35: #{residual_block_forward.6} parent=31 // pred_region
        _
      $region36: #{residual_block_forward.6} parent=31 // pred_fallthru
        _
    $region32: #{residual_block_forward.6} parent=5 // pred_fallthru
      _
    %p335 = scmp.le.s32.totalorder 2, %s9
    // Predicated region
    $region37: #{residual_block_forward.6} parent=5 // pred_check
      %p336 = pneg %p335
    $region38: #{residual_block_forward.6} parent=5 // pred_check_branch
      %338 = sbr.rel (%p336) target = $region40
    $region39: #{residual_block_forward.6} parent=5 // pred_region
      %s339 = ssub.s32 %s9, 2
      // Predicated region
      $region41: #{residual_block_forward.6} parent=39 // pred_check
        %p340 = pneg %p132
      $region42: #{residual_block_forward.6} parent=39 // pred_check_branch
        %342 = sbr.rel (%p340) target = $region44
      $region43: #{residual_block_forward.6} parent=39 // pred_region
        %p343 = scmp.lt.s32.totalorder %s20, 1
        %s344 = scalar_select %p343, %s20, 1
        %p345 = scmp.lt.s32.totalorder %s21, 0
        %s346 = scalar_select %p345, %s21, 0
        %s347 = smul.addr %s344, 8
        %s348 = sadd.s32 %s346, %s347
        %s349 = smul.addr %s348, 4
        %s350 = scalar_lea.vmem %s3, %s349
      $region44: #{residual_block_forward.6} parent=39 // pred_fallthru
        _
    $region40: #{residual_block_forward.6} parent=5 // pred_fallthru
      _
  $region6: #{residual_block_forward.6} parent=0 // loop_footer
    %s13 = sadd.s32 1, %s9
  $region7: #{residual_block_forward.6} parent=0 // loop_footer_branch
    %8 = sbr.rel target = $region3
  $region8: #{residual_block_forward.6} parent=0 // loop_exit
    _

// kernel: residual_block_forward.9
$region0: #{residual_block_forward.9}
  #allocation0 [shape = 'u32[]', space=smem, size = 0x4, offset = 0x4, fixed_abs, tag = 'smem constant byte address 0x4 - core index']
  #allocation1 [shape = 'u32[144,128]{1,0:T(1,128)}', space=vmem, size = 0x12000, scoped, tag = 'internal scratch']
  %s0 = inlined_call_operand.vmem [shape: bf16[2,64,128], index: 0, kind: input, shape index: {}]
  %s1 = inlined_call_operand.vmem [shape: f32[1,1,128], index: 1, kind: input, shape index: {}]
  %s2 = inlined_call_operand.vmem [shape: f32[1,1,128], index: 2, kind: input, shape index: {}]
  %s3 = inlined_call_operand.vmem [shape: bf16[2,64,128], index: 3, kind: input, shape index: {}]
  %s4 = inlined_call_operand.vmem [shape: f32[1,1,128], index: 4, kind: input, shape index: {}]
  %s5 = inlined_call_operand.vmem [shape: f32[1,1,128], index: 5, kind: input, shape index: {}]
  %s6 = inlined_call_operand.vmem [shape: f32[2,64,128], index: 6, kind: output, shape index: {}]
  %s7 = sld [smem:[#allocation0]]
  $region57: #{residual_block_forward.9} parent=0
    _
  %s9 = ssub.s32 1, %s7
  %s10 = scalar_select 0, %s9, %s7
  loop: start=0, step=1, limit=4
  $region2: #{residual_block_forward.9} parent=0 // loop_pre_header
    _
  $region3: #{residual_block_forward.9} parent=0 // loop_header
    %s12 = sphi 0, %s16
    %p13 = scmp.ge.s32.totalorder %s12, 4
    %s19 = sphi 0, %s31
    %s20 = sphi 0, %s27
    %s21 = sphi 0, %s19
    %s22 = sphi 0, %s20
    %s23 = sphi 0, %s21
    %s24 = sphi 0, %s22
    %s36 = sphi 0, %s38
    %s39 = sphi 0, %s36
    %s40 = sphi 0, %s39
    %s56 = sphi 0, %s40
    %s62 = sphi 0, %s64
    %s65 = sphi 0, %s62
    %s66 = sphi 0, %s65
    %s82 = sphi 0, %s66
    %s88 = sphi 0, %s90
    %s91 = sphi 0, %s88
    %s92 = sphi 0, %s91
    %s108 = sphi 0, %s92
    %s116 = sphi 0, %s118
    %s119 = sphi 0, %s116
    %s120 = sphi 0, %s119
    %s136 = sphi 0, %s120
    %s142 = sphi 0, %s144
    %s145 = sphi 0, %s142
    %s146 = sphi 0, %s145
    %s162 = sphi 0, %s146
    %s168 = sphi 0, %s170
    %s171 = sphi 0, %s168
    %s172 = sphi 0, %s171
    %s188 = sphi 0, %s172
    %s196 = sphi 0, %s198
    %s199 = sphi 0, %s196
    %s200 = sphi 0, %s199
    %s216 = sphi 0, %s200
  $region4: #{residual_block_forward.9} parent=0 // loop_header_branch
    %15 = sbr.rel (%p13) target = $region8
  $region5: #{residual_block_forward.9} parent=0 // loop_body
    %s17 = ssub.s32 %s12, 1
    %s18 = ssub.s32 %s12, 2
    %s25 = sadd.s32 1, %s20
    %p26 = scmp.ge.s32.totalorder %s25, 1
    %s27 = scalar_select %p26, 0, %s25
    %s28 = sadd.s32 1, %s19
    %s29 = scalar_select %p26, %s28, %s19
    %p30 = scmp.ge.s32.totalorder %s29, 2
    %s31 = scalar_select %p30, 0, %s29
    %s32 = ssub.s32 %s19, %s31
    %s33 = ssub.s32 %s20, %s27
    %s34 = sor.u32 %s32, %s33
    %p35 = scmp.eq.s32.totalorder %s34, 0
    %s37 = sadd.s32 %s36, 1
    %s38 = scalar_select %p35, %s36, %s37
    %p41 = pneg %p35
    %p42 = scmp.eq.s32.totalorder %s12, 1
    %p43 = por %p41, %p42
    %p44 = scmp.ne.s32.totalorder %s36, %s39
    %p45 = scmp.eq.s32.totalorder %s12, 0
    %p46 = por %p44, %p45
    %p47 = scmp.ne.s32.totalorder %s36, %s39
    %p48 = scmp.eq.s32.totalorder %s17, 1
    %p49 = por %p47, %p48
    %p50 = scmp.ne.s32.totalorder %s39, %s40
    %p51 = scmp.eq.s32.totalorder %s17, 0
    %p52 = por %p50, %p51
    %p53 = scmp.ne.s32.totalorder %s39, %s40
    %p54 = scmp.eq.s32.totalorder %s18, 1
    %p55 = por %p53, %p54
    %p57 = scmp.ne.s32.totalorder %s40, %s56
    %p58 = scmp.eq.s32.totalorder %s18, 0
    %p59 = por %p57, %p58
    %s60 = ssub.s32 %s20, %s27
    %p61 = scmp.eq.s32.totalorder %s60, 0
    %s63 = sadd.s32 %s62, 1
    %s64 = scalar_select %p61, %s62, %s63
    %p67 = pneg %p61
    %p68 = scmp.eq.s32.totalorder %s12, 1
    %p69 = por %p67, %p68
    %p70 = scmp.ne.s32.totalorder %s62, %s65
    %p71 = scmp.eq.s32.totalorder %s12, 0
    %p72 = por %p70, %p71
    %p73 = scmp.ne.s32.totalorder %s62, %s65
    %p74 = scmp.eq.s32.totalorder %s17, 1
    %p75 = por %p73, %p74
    %p76 = scmp.ne.s32.totalorder %s65, %s66
    %p77 = scmp.eq.s32.totalorder %s17, 0
    %p78 = por %p76, %p77
    %p79 = scmp.ne.s32.totalorder %s65, %s66
    %p80 = scmp.eq.s32.totalorder %s18, 1
    %p81 = por %p79, %p80
    %p83 = scmp.ne.s32.totalorder %s66, %s82
    %p84 = scmp.eq.s32.totalorder %s18, 0
    %p85 = por %p83, %p84
    %s86 = ssub.s32 %s20, %s27
    %p87 = scmp.eq.s32.totalorder %s86, 0
    %s89 = sadd.s32 %s88, 1
    %s90 = scalar_select %p87, %s88, %s89
    %p93 = pneg %p87
    %p94 = scmp.eq.s32.totalorder %s12, 1
    %p95 = por %p93, %p94
    %p96 = scmp.ne.s32.totalorder %s88, %s91
    %p97 = scmp.eq.s32.totalorder %s12, 0
    %p98 = por %p96, %p97
    %p99 = scmp.ne.s32.totalorder %s88, %s91
    %p100 = scmp.eq.s32.totalorder %s17, 1
    %p101 = por %p99, %p100
    %p102 = scmp.ne.s32.totalorder %s91, %s92
    %p103 = scmp.eq.s32.totalorder %s17, 0
    %p104 = por %p102, %p103
    %p105 = scmp.ne.s32.totalorder %s91, %s92
    %p106 = scmp.eq.s32.totalorder %s18, 1
    %p107 = por %p105, %p106
    %p109 = scmp.ne.s32.totalorder %s92, %s108
    %p110 = scmp.eq.s32.totalorder %s18, 0
    %p111 = por %p109, %p110
    %s112 = ssub.s32 %s19, %s31
    %s113 = ssub.s32 %s20, %s27
    %s114 = sor.u32 %s112, %s113
    %p115 = scmp.eq.s32.totalorder %s114, 0
    %s117 = sadd.s32 %s116, 1
    %s118 = scalar_select %p115, %s116, %s117
    %p121 = pneg %p115
    %p122 = scmp.eq.s32.totalorder %s12, 1
    %p123 = por %p121, %p122
    %p124 = scmp.ne.s32.totalorder %s116, %s119
    %p125 = scmp.eq.s32.totalorder %s12, 0
    %p126 = por %p124, %p125
    %p127 = scmp.ne.s32.totalorder %s116, %s119
    %p128 = scmp.eq.s32.totalorder %s17, 1
    %p129 = por %p127, %p128
    %p130 = scmp.ne.s32.totalorder %s119, %s120
    %p131 = scmp.eq.s32.totalorder %s17, 0
    %p132 = por %p130, %p131
    %p133 = scmp.ne.s32.totalorder %s119, %s120
    %p134 = scmp.eq.s32.totalorder %s18, 1
    %p135 = por %p133, %p134
    %p137 = scmp.ne.s32.totalorder %s120, %s136
    %p138 = scmp.eq.s32.totalorder %s18, 0
    %p139 = por %p137, %p138
    %s140 = ssub.s32 %s20, %s27
    %p141 = scmp.eq.s32.totalorder %s140, 0
    %s143 = sadd.s32 %s142, 1
    %s144 = scalar_select %p141, %s142, %s143
    %p147 = pneg %p141
    %p148 = scmp.eq.s32.totalorder %s12, 1
    %p149 = por %p147, %p148
    %p150 = scmp.ne.s32.totalorder %s142, %s145
    %p151 = scmp.eq.s32.totalorder %s12, 0
    %p152 = por %p150, %p151
    %p153 = scmp.ne.s32.totalorder %s142, %s145
    %p154 = scmp.eq.s32.totalorder %s17, 1
    %p155 = por %p153, %p154
    %p156 = scmp.ne.s32.totalorder %s145, %s146
    %p157 = scmp.eq.s32.totalorder %s17, 0
    %p158 = por %p156, %p157
    %p159 = scmp.ne.s32.totalorder %s145, %s146
    %p160 = scmp.eq.s32.totalorder %s18, 1
    %p161 = por %p159, %p160
    %p163 = scmp.ne.s32.totalorder %s146, %s162
    %p164 = scmp.eq.s32.totalorder %s18, 0
    %p165 = por %p163, %p164
    %s166 = ssub.s32 %s20, %s27
    %p167 = scmp.eq.s32.totalorder %s166, 0
    %s169 = sadd.s32 %s168, 1
    %s170 = scalar_select %p167, %s168, %s169
    %p173 = pneg %p167
    %p174 = scmp.eq.s32.totalorder %s12, 1
    %p175 = por %p173, %p174
    %p176 = scmp.ne.s32.totalorder %s168, %s171
    %p177 = scmp.eq.s32.totalorder %s12, 0
    %p178 = por %p176, %p177
    %p179 = scmp.ne.s32.totalorder %s168, %s171
    %p180 = scmp.eq.s32.totalorder %s17, 1
    %p181 = por %p179, %p180
    %p182 = scmp.ne.s32.totalorder %s171, %s172
    %p183 = scmp.eq.s32.totalorder %s17, 0
    %p184 = por %p182, %p183
    %p185 = scmp.ne.s32.totalorder %s171, %s172
    %p186 = scmp.eq.s32.totalorder %s18, 1
    %p187 = por %p185, %p186
    %p189 = scmp.ne.s32.totalorder %s172, %s188
    %p190 = scmp.eq.s32.totalorder %s18, 0
    %p191 = por %p189, %p190
    %s192 = ssub.s32 %s19, %s31
    %s193 = ssub.s32 %s20, %s27
    %s194 = sor.u32 %s192, %s193
    %p195 = scmp.eq.s32.totalorder %s194, 0
    %s197 = sadd.s32 %s196, 1
    %s198 = scalar_select %p195, %s196, %s197
    %p201 = pneg %p195
    %p202 = scmp.eq.s32.totalorder %s12, 1
    %p203 = por %p201, %p202
    %p204 = scmp.ne.s32.totalorder %s196, %s199
    %p205 = scmp.eq.s32.totalorder %s12, 0
    %p206 = por %p204, %p205
    %p207 = scmp.ne.s32.totalorder %s196, %s199
    %p208 = scmp.eq.s32.totalorder %s17, 1
    %p209 = por %p207, %p208
    %p210 = scmp.ne.s32.totalorder %s199, %s200
    %p211 = scmp.eq.s32.totalorder %s17, 0
    %p212 = por %p210, %p211
    %p213 = scmp.ne.s32.totalorder %s199, %s200
    %p214 = scmp.eq.s32.totalorder %s18, 1
    %p215 = por %p213, %p214
    %p217 = scmp.ne.s32.totalorder %s200, %s216
    %p218 = scmp.eq.s32.totalorder %s18, 0
    %p219 = por %p217, %p218
    %p220 = scmp.le.s32.totalorder 1, %s12
    %p221 = scmp.lt.s32.totalorder %s12, 3
    %p222 = pnand %p220, %p221
    %p223 = pneg %p222
    // Predicated region
    $region9: #{residual_block_forward.9} parent=5 // pred_check
      _
    $region10: #{residual_block_forward.9} parent=5 // pred_check_branch
      %225 = sbr.rel (%p222) target = $region12
    $region11: #{residual_block_forward.9} parent=5 // pred_region
      %s226 = ssub.s32 %s12, 1
      // Predicated region
      $region13: #{residual_block_forward.9} parent=11 // pred_check
        %p227 = pneg %p78
      $region14: #{residual_block_forward.9} parent=11 // pred_check_branch
        %229 = sbr.rel (%p227) target = $region16
      $region15: #{residual_block_forward.9} parent=11 // pred_region
        %p230 = scmp.lt.s32.totalorder %s22, 0
        %s231 = scalar_select %p230, %s22, 0
        %s232 = scalar_lea.vmem %s1, %s231
      $region16: #{residual_block_forward.9} parent=11 // pred_fallthru
        _
      // Predicated region
      $region17: #{residual_block_forward.9} parent=11 // pred_check
        %p233 = pneg %p104
      $region18: #{residual_block_forward.9} parent=11 // pred_check_branch
        %235 = sbr.rel (%p233) target = $region20
      $region19: #{residual_block_forward.9} parent=11 // pred_region
        %p236 = scmp.lt.s32.totalorder %s22, 0
        %s237 = scalar_select %p236, %s22, 0
        %s238 = scalar_lea.vmem %s2, %s237
      $region20: #{residual_block_forward.9} parent=11 // pred_fallthru
        _
      // Predicated region
      $region21: #{residual_block_forward.9} parent=11 // pred_check
        %p239 = pneg %p158
      $region22: #{residual_block_forward.9} parent=11 // pred_check_branch
        %241 = sbr.rel (%p239) target = $region24
      $region23: #{residual_block_forward.9} parent=11 // pred_region
        %p242 = scmp.lt.s32.totalorder %s22, 0
        %s243 = scalar_select %p242, %s22, 0
        %s244 = scalar_lea.vmem %s4, %s243
      $region24: #{residual_block_forward.9} parent=11 // pred_fallthru
        _
      // Predicated region
      $region25: #{residual_block_forward.9} parent=11 // pred_check
        %p245 = pneg %p184
      $region26: #{residual_block_forward.9} parent=11 // pred_check_branch
        %247 = sbr.rel (%p245) target = $region28
      $region27: #{residual_block_forward.9} parent=11 // pred_region
        %p248 = scmp.lt.s32.totalorder %s22, 0
        %s249 = scalar_select %p248, %s22, 0
        %s250 = scalar_lea.vmem %s5, %s249
      $region28: #{residual_block_forward.9} parent=11 // pred_fallthru
        _
    $region12: #{residual_block_forward.9} parent=5 // pred_fallthru
      _
    %p251 = scmp.lt.s32.totalorder %s12, 2
    // Predicated region
    $region29: #{residual_block_forward.9} parent=5 // pred_check
      %p252 = pneg %p251
    $region30: #{residual_block_forward.9} parent=5 // pred_check_branch
      %254 = sbr.rel (%p252) target = $region32
    $region31: #{residual_block_forward.9} parent=5 // pred_region
      // Predicated region
      $region33: #{residual_block_forward.9} parent=31 // pred_check
        %p255 = pneg %p46
      $region34: #{residual_block_forward.9} parent=31 // pred_check_branch
        %257 = sbr.rel (%p255) target = $region36
      $region35: #{residual_block_forward.9} parent=31 // pred_region
        %p258 = scmp.lt.s32.totalorder %s19, 1
        %s259 = scalar_select %p258, %s19, 1
        %p260 = scmp.lt.s32.totalorder %s20, 0
        %s261 = scalar_select %p260, %s20, 0
        %s262 = smul.addr %s259, 8
        %s263 = sadd.s32 %s261, %s262
        %s264 = smul.addr %s263, 4
        %s265 = scalar_lea.vmem %s0, %s264
      $region36: #{residual_block_forward.9} parent=31 // pred_fallthru
        _
      // Predicated region
      $region37: #{residual_block_forward.9} parent=31 // pred_check
        %p266 = pneg %p126
      $region38: #{residual_block_forward.9} parent=31 // pred_check_branch
        %268 = sbr.rel (%p266) target = $region40
      $region39: #{residual_block_forward.9} parent=31 // pred_region
        %p269 = scmp.lt.s32.totalorder %s19, 1
        %s270 = scalar_select %p269, %s19, 1
        %p271 = scmp.lt.s32.totalorder %s20, 0
        %s272 = scalar_select %p271, %s20, 0
        %s273 = smul.addr %s270, 8
        %s274 = sadd.s32 %s272, %s273
        %s275 = smul.addr %s274, 4
        %s276 = scalar_lea.vmem %s3, %s275
      $region40: #{residual_block_forward.9} parent=31 // pred_fallthru
        _
    $region32: #{residual_block_forward.9} parent=5 // pred_fallthru
      _
    %p277 = scmp.le.s32.totalorder 1, %s12
    %p278 = scmp.lt.s32.totalorder %s12, 3
    %p279 = pnand %p277, %p278
    %p280 = pneg %p279
    // Predicated region
    $region41: #{residual_block_forward.9} parent=5 // pred_check
      _
    $region42: #{residual_block_forward.9} parent=5 // pred_check_branch
      %282 = sbr.rel (%p279) target = $region44
    $region43: #{residual_block_forward.9} parent=5 // pred_region
      %s283 = ssub.s32 %s12, 1
      %p284 = scmp.lt.s32.totalorder %s21, 1
      %s285 = scalar_select %p284, %s21, 1
      %p286 = scmp.lt.s32.totalorder %s22, 0
      %s287 = scalar_select %p286, %s22, 0
      %s288 = smul.addr %s285, 8
      %s289 = sadd.s32 %s287, %s288
      %s290 = smul.addr %s289, 4
      %s291 = scalar_lea.vmem %s0, %s290
      %p292 = pneg %p52
      %p293 = pneg %p49
      %p294 = scmp.lt.s32.totalorder %s22, 0
      %s295 = scalar_select %p294, %s22, 0
      %s296 = scalar_lea.vmem %s1, %s295
      %p297 = pneg %p78
      %p298 = pneg %p75
      %p299 = scmp.lt.s32.totalorder %s22, 0
      %s300 = scalar_select %p299, %s22, 0
      %s301 = scalar_lea.vmem %s2, %s300
      %p302 = pneg %p104
      %p303 = pneg %p101
      %p304 = scmp.lt.s32.totalorder %s21, 1
      %s305 = scalar_select %p304, %s21, 1
      %p306 = scmp.lt.s32.totalorder %s22, 0
      %s307 = scalar_select %p306, %s22, 0
      %s308 = smul.addr %s305, 8
      %s309 = sadd.s32 %s307, %s308
      %s310 = smul.addr %s309, 4
      %s311 = scalar_lea.vmem %s3, %s310
      %p312 = pneg %p132
      %p313 = pneg %p129
      %p314 = scmp.lt.s32.totalorder %s22, 0
      %s315 = scalar_select %p314, %s22, 0
      %s316 = scalar_lea.vmem %s4, %s315
      %p317 = pneg %p158
      %p318 = pneg %p155
      %p319 = scmp.lt.s32.totalorder %s22, 0
      %s320 = scalar_select %p319, %s22, 0
      %s321 = scalar_lea.vmem %s5, %s320
      %p322 = pneg %p184
      %p323 = pneg %p181
      %p324 = pneg %p212
      %p325 = pneg %p209
      %p326 = scmp.lt.s32.totalorder %s21, 1
      %s327 = scalar_select %p326, %s21, 1
      %p328 = scmp.lt.s32.totalorder %s22, 0
      %s329 = scalar_select %p328, %s22, 0
      %s330 = smul.addr %s327, 8
      %s331 = sadd.s32 %s329, %s330
      %s332 = smul.addr %s331, 8
      %s333 = scalar_lea.vmem %s6, %s332
      %p334 = scmp.lt.s32.totalorder %s21, 1
      %s335 = scalar_select %p334, %s21, 1
      %p336 = scmp.lt.s32.totalorder %s22, 0
      %s337 = scalar_select %p336, %s22, 0
      %s338 = smul.addr %s335, 8
      %s339 = sadd.s32 %s337, %s338
      %s340 = smul.addr %s339, 4
      %s341 = scalar_lea.vmem %s0, %s340
      %p342 = scmp.lt.s32.totalorder %s22, 0
      %s343 = scalar_select %p342, %s22, 0
      %s344 = scalar_lea.vmem %s1, %s343
      %p345 = scmp.lt.s32.totalorder %s22, 0
      %s346 = scalar_select %p345, %s22, 0
      %s347 = scalar_lea.vmem %s2, %s346
      %p348 = scmp.lt.s32.totalorder %s21, 1
      %s349 = scalar_select %p348, %s21, 1
      %p350 = scmp.lt.s32.totalorder %s22, 0
      %s351 = scalar_select %p350, %s22, 0
      %s352 = smul.addr %s349, 8
      %s353 = sadd.s32 %s351, %s352
      %s354 = smul.addr %s353, 4
      %s355 = scalar_lea.vmem %s3, %s354
      %p356 = scmp.lt.s32.totalorder %s22, 0
      %s357 = scalar_select %p356, %s22, 0
      %s358 = scalar_lea.vmem %s4, %s357
      %p359 = scmp.lt.s32.totalorder %s22, 0
      %s360 = scalar_select %p359, %s22, 0
      %s361 = scalar_lea.vmem %s5, %s360
      %p362 = scmp.lt.s32.totalorder %s21, 1
      %s363 = scalar_select %p362, %s21, 1
      %p364 = scmp.lt.s32.totalorder %s22, 0
      %s365 = scalar_select %p364, %s22, 0
      %s366 = smul.addr %s363, 8
      %s367 = sadd.s32 %s365, %s366
      %s368 = smul.addr %s367, 8
      %s369 = scalar_lea.vmem %s6, %s368
      %v370 = vld [vmem:[%s341] sm:$0xf]
      %v371 = vld [vmem:[%s341 + $0x4] sm:$0xf]
      %v372 = vld [vmem:[%s341 + $0x8] sm:$0xf]
      %v373 = vld [vmem:[%s341 + $0xc] sm:$0xf]
      %v374 = vld [vmem:[%s341 + $0x10] sm:$0xf]
      %v375 = vld [vmem:[%s341 + $0x14] sm:$0xf]
      %v376 = vld [vmem:[%s341 + $0x18] sm:$0xf]
      %v377 = vld [vmem:[%s341 + $0x1c] sm:$0xf]
      %v378 = vunpack.c.l.bf16 %v370
      %v379 = vunpack.c.l.bf16 %v371
      %v380 = vunpack.c.l.bf16 %v372
      %v381 = vunpack.c.l.bf16 %v373
      %v382 = vunpack.c.l.bf16 %v374
      %v383 = vunpack.c.l.bf16 %v375
      %v384 = vunpack.c.l.bf16 %v376
      %v385 = vunpack.c.l.bf16 %v377
      %v386 = vld [vmem:[%s344] sm:$0x1]
      %v388 = vlaneseq
      %v389 = vshrl.u32 %v388, 7
      %v390 = vsub.s32 0, %v389
      %v391 = vrot.slane %v386, %v390
      %v393 = vmul.f32 %v378, %v391
      %v394 = vmul.f32 %v379, %v391
      %v395 = vmul.f32 %v380, %v391
      %v396 = vmul.f32 %v381, %v391
      %v397 = vmul.f32 %v382, %v391
      %v398 = vmul.f32 %v383, %v391
      %v399 = vmul.f32 %v384, %v391
      %v400 = vmul.f32 %v385, %v391
      %v401 = vld [vmem:[%s347] sm:$0x1]
      %v403 = vlaneseq
      %v404 = vshrl.u32 %v403, 7
      %v405 = vsub.s32 0, %v404
      %v406 = vrot.slane %v401, %v405
      %v408 = vadd.f32 %v393, %v406
      %v409 = vadd.f32 %v394, %v406
      %v410 = vadd.f32 %v395, %v406
      %v411 = vadd.f32 %v396, %v406
      %v412 = vadd.f32 %v397, %v406
      %v413 = vadd.f32 %v398, %v406
      %v414 = vadd.f32 %v399, %v406
      %v415 = vadd.f32 %v400, %v406
      %v416 = vld [vmem:[%s355] sm:$0xf]
      %v417 = vld [vmem:[%s355 + $0x4] sm:$0xf]
      %v418 = vld [vmem:[%s355 + $0x8] sm:$0xf]
      %v419 = vld [vmem:[%s355 + $0xc] sm:$0xf]
      %v420 = vld [vmem:[%s355 + $0x10] sm:$0xf]
      %v421 = vld [vmem:[%s355 + $0x14] sm:$0xf]
      %v422 = vld [vmem:[%s355 + $0x18] sm:$0xf]
      %v423 = vld [vmem:[%s355 + $0x1c] sm:$0xf]
      %v424 = vunpack.c.l.bf16 %v416
      %v425 = vunpack.c.l.bf16 %v417
      %v426 = vunpack.c.l.bf16 %v418
      %v427 = vunpack.c.l.bf16 %v419
      %v428 = vunpack.c.l.bf16 %v420
      %v429 = vunpack.c.l.bf16 %v421
      %v430 = vunpack.c.l.bf16 %v422
      %v431 = vunpack.c.l.bf16 %v423
      %v432 = vld [vmem:[%s358] sm:$0x1]
      %v434 = vlaneseq
      %v435 = vshrl.u32 %v434, 7
      %v436 = vsub.s32 0, %v435
      %v437 = vrot.slane %v432, %v436
      %v439 = vmul.f32 %v424, %v437
      %v440 = vmul.f32 %v425, %v437
      %v441 = vmul.f32 %v426, %v437
      %v442 = vmul.f32 %v427, %v437
      %v443 = vmul.f32 %v428, %v437
      %v444 = vmul.f32 %v429, %v437
      %v445 = vmul.f32 %v430, %v437
      %v446 = vmul.f32 %v431, %v437
      %v447 = vld [vmem:[%s361] sm:$0x1]
      %v449 = vlaneseq
      %v450 = vshrl.u32 %v449, 7
      %v451 = vsub.s32 0, %v450
      %v452 = vrot.slane %v447, %v451
      %v454 = vadd.f32 %v439, %v452
      %v455 = vadd.f32 %v440, %v452
      %v456 = vadd.f32 %v441, %v452
      %v457 = vadd.f32 %v442, %v452
      %v458 = vadd.f32 %v443, %v452
      %v459 = vadd.f32 %v444, %v452
      %v460 = vadd.f32 %v445, %v452
      %v461 = vadd.f32 %v446, %v452
      %v462 = vadd.f32 %v408, %v454
      %v463 = vadd.f32 %v409, %v455
      %v464 = vadd.f32 %v410, %v456
      %v465 = vadd.f32 %v411, %v457
      %v466 = vadd.f32 %v412, %v458
      %v467 = vadd.f32 %v413, %v459
      %v468 = vadd.f32 %v414, %v460
      %v469 = vadd.f32 %v415, %v461
      %v470 = vmax.f32 %v462, 0.0
      %v471 = vmax.f32 %v463, 0.0
      %v472 = vmax.f32 %v464, 0.0
      %v473 = vmax.f32 %v465, 0.0
      %v474 = vmax.f32 %v466, 0.0
      %v475 = vmax.f32 %v467, 0.0
      %v476 = vmax.f32 %v468, 0.0
      %v477 = vmax.f32 %v469, 0.0
      %478 = vst [vmem:[%s369] sm:$0xff] %v470
      %479 = vst [vmem:[%s369 + $0x8] sm:$0xff] %v471
      %480 = vst [vmem:[%s369 + $0x10] sm:$0xff] %v472
      %481 = vst [vmem:[%s369 + $0x18] sm:$0xff] %v473
      %482 = vst [vmem:[%s369 + $0x20] sm:$0xff] %v474
      %483 = vst [vmem:[%s369 + $0x28] sm:$0xff] %v475
      %484 = vst [vmem:[%s369 + $0x30] sm:$0xff] %v476
      %485 = vst [vmem:[%s369 + $0x38] sm:$0xff] %v477
      %p486 = scmp.lt.s32.totalorder %s21, 1
      %s487 = scalar_select %p486, %s21, 1
      %p488 = scmp.lt.s32.totalorder %s22, 0
      %s489 = scalar_select %p488, %s22, 0
      %s490 = smul.addr %s487, 8
      %s491 = sadd.s32 %s489, %s490
      %s492 = smul.addr %s491, 8
      %s493 = scalar_lea.vmem %s6, %s492
      // Predicated region
      $region45: #{residual_block_forward.9} parent=43 // pred_check
        %p494 = pneg %p209
      $region46: #{residual_block_forward.9} parent=43 // pred_check_branch
        %496 = sbr.rel (%p494) target = $region48
      $region47: #{residual_block_forward.9} parent=43 // pred_region
        _
      $region48: #{residual_block_forward.9} parent=43 // pred_fallthru
        _
    $region44: #{residual_block_forward.9} parent=5 // pred_fallthru
      _
    %p497 = scmp.le.s32.totalorder 2, %s12
    // Predicated region
    $region49: #{residual_block_forward.9} parent=5 // pred_check
      %p498 = pneg %p497
    $region50: #{residual_block_forward.9} parent=5 // pred_check_branch
      %500 = sbr.rel (%p498) target = $region52
    $region51: #{residual_block_forward.9} parent=5 // pred_region
      %s501 = ssub.s32 %s12, 2
      // Predicated region
      $region53: #{residual_block_forward.9} parent=51 // pred_check
        %p502 = pneg %p215
      $region54: #{residual_block_forward.9} parent=51 // pred_check_branch
        %504 = sbr.rel (%p502) target = $region56
      $region55: #{residual_block_forward.9} parent=51 // pred_region
        %p505 = scmp.lt.s32.totalorder %s23, 1
        %s506 = scalar_select %p505, %s23, 1
        %p507 = scmp.lt.s32.totalorder %s24, 0
        %s508 = scalar_select %p507, %s24, 0
        %s509 = smul.addr %s506, 8
        %s510 = sadd.s32 %s508, %s509
        %s511 = smul.addr %s510, 8
        %s512 = scalar_lea.vmem %s6, %s511
      $region56: #{residual_block_forward.9} parent=51 // pred_fallthru
        _
    $region52: #{residual_block_forward.9} parent=5 // pred_fallthru
      _
  $region6: #{residual_block_forward.9} parent=0 // loop_footer
    %s16 = sadd.s32 1, %s12
  $region7: #{residual_block_forward.9} parent=0 // loop_footer_branch
    %11 = sbr.rel target = $region3
  $region8: #{residual_block_forward.9} parent=0 // loop_exit
    _

// kernel: residual_block_forward.7
$region0: #{residual_block_forward.7}
  #allocation0 [shape = 'u32[]', space=smem, size = 0x4, offset = 0x4, fixed_abs, tag = 'smem constant byte address 0x4 - core index']
  #allocation1 [shape = 'u32[144,128]{1,0:T(1,128)}', space=vmem, size = 0x12000, scoped, tag = 'internal scratch']
  %s0 = inlined_call_operand.vmem [shape: bf16[128,8], index: 0, kind: input, shape index: {}]
  %s1 = inlined_call_operand.vmem [shape: bf16[8,128], index: 1, kind: input, shape index: {}]
  %s2 = inlined_call_operand.vmem [shape: bf16[128,128], index: 2, kind: output, shape index: {0}]
  %s3 = inlined_call_operand.vmem [shape: f32[2,1,128], index: 3, kind: output, shape index: {1}]
  %s4 = inlined_call_operand.vmem [shape: f32[2,1,128], index: 4, kind: output, shape index: {2}]
  %5 = xla_tuple %s2, %s3, %s4
  %s6 = sld [smem:[#allocation0]]
  $region57: #{residual_block_forward.7} parent=0
    _
  %s8 = ssub.s32 1, %s6
  %s9 = scalar_select 0, %s8, %s6
  loop: start=0, step=1, limit=4
  $region2: #{residual_block_forward.7} parent=0 // loop_pre_header
    _
  $region3: #{residual_block_forward.7} parent=0 // loop_header
    %s11 = sphi 0, %s15
    %p12 = scmp.ge.s32.totalorder %s11, 4
    %s18 = sphi 0, %s30
    %s19 = sphi 0, %s26
    %s20 = sphi 0, %s18
    %s21 = sphi 0, %s19
    %s22 = sphi 0, %s20
    %s23 = sphi 0, %s21
    %s33 = sphi 0, %s35
    %s36 = sphi 0, %s33
    %s37 = sphi 0, %s36
    %s53 = sphi 0, %s37
    %s59 = sphi 0, %s61
    %s62 = sphi 0, %s59
    %s63 = sphi 0, %s62
    %s79 = sphi 0, %s63
    %s87 = sphi 0, %s89
    %s90 = sphi 0, %s87
    %s91 = sphi 0, %s90
    %s107 = sphi 0, %s91
    %s115 = sphi 0, %s117
    %s118 = sphi 0, %s115
    %s119 = sphi 0, %s118
    %s135 = sphi 0, %s119
    %s143 = sphi 0, %s145
    %s146 = sphi 0, %s143
    %s147 = sphi 0, %s146
    %s163 = sphi 0, %s147
  $region4: #{residual_block_forward.7} parent=0 // loop_header_branch
    %14 = sbr.rel (%p12) target = $region8
  $region5: #{residual_block_forward.7} parent=0 // loop_body
    %s16 = ssub.s32 %s11, 1
    %s17 = ssub.s32 %s11, 2
    %s24 = sadd.s32 1, %s19
    %p25 = scmp.ge.s32.totalorder %s24, 1
    %s26 = scalar_select %p25, 0, %s24
    %s27 = sadd.s32 1, %s18
    %s28 = scalar_select %p25, %s27, %s18
    %p29 = scmp.ge.s32.totalorder %s28, 2
    %s30 = scalar_select %p29, 0, %s28
    %s31 = ssub.s32 %s18, %s30
    %p32 = scmp.eq.s32.totalorder %s31, 0
    %s34 = sadd.s32 %s33, 1
    %s35 = scalar_select %p32, %s33, %s34
    %p38 = pneg %p32
    %p39 = scmp.eq.s32.totalorder %s11, 1
    %p40 = por %p38, %p39
    %p41 = scmp.ne.s32.totalorder %s33, %s36
    %p42 = scmp.eq.s32.totalorder %s11, 0
    %p43 = por %p41, %p42
    %p44 = scmp.ne.s32.totalorder %s33, %s36
    %p45 = scmp.eq.s32.totalorder %s16, 1
    %p46 = por %p44, %p45
    %p47 = scmp.ne.s32.totalorder %s36, %s37
    %p48 = scmp.eq.s32.totalorder %s16, 0
    %p49 = por %p47, %p48
    %p50 = scmp.ne.s32.totalorder %s36, %s37
    %p51 = scmp.eq.s32.totalorder %s17, 1
    %p52 = por %p50, %p51
    %p54 = scmp.ne.s32.totalorder %s37, %s53
    %p55 = scmp.eq.s32.totalorder %s17, 0
    %p56 = por %p54, %p55
    %s57 = ssub.s32 %s19, %s26
    %p58 = scmp.eq.s32.totalorder %s57, 0
    %s60 = sadd.s32 %s59, 1
    %s61 = scalar_select %p58, %s59, %s60
    %p64 = pneg %p58
    %p65 = scmp.eq.s32.totalorder %s11, 1
    %p66 = por %p64, %p65
    %p67 = scmp.ne.s32.totalorder %s59, %s62
    %p68 = scmp.eq.s32.totalorder %s11, 0
    %p69 = por %p67, %p68
    %p70 = scmp.ne.s32.totalorder %s59, %s62
    %p71 = scmp.eq.s32.totalorder %s16, 1
    %p72 = por %p70, %p71
    %p73 = scmp.ne.s32.totalorder %s62, %s63
    %p74 = scmp.eq.s32.totalorder %s16, 0
    %p75 = por %p73, %p74
    %p76 = scmp.ne.s32.totalorder %s62, %s63
    %p77 = scmp.eq.s32.totalorder %s17, 1
    %p78 = por %p76, %p77
    %p80 = scmp.ne.s32.totalorder %s63, %s79
    %p81 = scmp.eq.s32.totalorder %s17, 0
    %p82 = por %p80, %p81
    %s83 = ssub.s32 %s18, %s30
    %s84 = ssub.s32 %s19, %s26
    %s85 = sor.u32 %s83, %s84
    %p86 = scmp.eq.s32.totalorder %s85, 0
    %s88 = sadd.s32 %s87, 1
    %s89 = scalar_select %p86, %s87, %s88
    %p92 = pneg %p86
    %p93 = scmp.eq.s32.totalorder %s11, 1
    %p94 = por %p92, %p93
    %p95 = scmp.ne.s32.totalorder %s87, %s90
    %p96 = scmp.eq.s32.totalorder %s11, 0
    %p97 = por %p95, %p96
    %p98 = scmp.ne.s32.totalorder %s87, %s90
    %p99 = scmp.eq.s32.totalorder %s16, 1
    %p100 = por %p98, %p99
    %p101 = scmp.ne.s32.totalorder %s90, %s91
    %p102 = scmp.eq.s32.totalorder %s16, 0
    %p103 = por %p101, %p102
    %p104 = scmp.ne.s32.totalorder %s90, %s91
    %p105 = scmp.eq.s32.totalorder %s17, 1
    %p106 = por %p104, %p105
    %p108 = scmp.ne.s32.totalorder %s91, %s107
    %p109 = scmp.eq.s32.totalorder %s17, 0
    %p110 = por %p108, %p109
    %s111 = ssub.s32 %s18, %s30
    %s112 = ssub.s32 %s19, %s26
    %s113 = sor.u32 %s111, %s112
    %p114 = scmp.eq.s32.totalorder %s113, 0
    %s116 = sadd.s32 %s115, 1
    %s117 = scalar_select %p114, %s115, %s116
    %p120 = pneg %p114
    %p121 = scmp.eq.s32.totalorder %s11, 1
    %p122 = por %p120, %p121
    %p123 = scmp.ne.s32.totalorder %s115, %s118
    %p124 = scmp.eq.s32.totalorder %s11, 0
    %p125 = por %p123, %p124
    %p126 = scmp.ne.s32.totalorder %s115, %s118
    %p127 = scmp.eq.s32.totalorder %s16, 1
    %p128 = por %p126, %p127
    %p129 = scmp.ne.s32.totalorder %s118, %s119
    %p130 = scmp.eq.s32.totalorder %s16, 0
    %p131 = por %p129, %p130
    %p132 = scmp.ne.s32.totalorder %s118, %s119
    %p133 = scmp.eq.s32.totalorder %s17, 1
    %p134 = por %p132, %p133
    %p136 = scmp.ne.s32.totalorder %s119, %s135
    %p137 = scmp.eq.s32.totalorder %s17, 0
    %p138 = por %p136, %p137
    %s139 = ssub.s32 %s18, %s30
    %s140 = ssub.s32 %s19, %s26
    %s141 = sor.u32 %s139, %s140
    %p142 = scmp.eq.s32.totalorder %s141, 0
    %s144 = sadd.s32 %s143, 1
    %s145 = scalar_select %p142, %s143, %s144
    %p148 = pneg %p142
    %p149 = scmp.eq.s32.totalorder %s11, 1
    %p150 = por %p148, %p149
    %p151 = scmp.ne.s32.totalorder %s143, %s146
    %p152 = scmp.eq.s32.totalorder %s11, 0
    %p153 = por %p151, %p152
    %p154 = scmp.ne.s32.totalorder %s143, %s146
    %p155 = scmp.eq.s32.totalorder %s16, 1
    %p156 = por %p154, %p155
    %p157 = scmp.ne.s32.totalorder %s146, %s147
    %p158 = scmp.eq.s32.totalorder %s16, 0
    %p159 = por %p157, %p158
    %p160 = scmp.ne.s32.totalorder %s146, %s147
    %p161 = scmp.eq.s32.totalorder %s17, 1
    %p162 = por %p160, %p161
    %p164 = scmp.ne.s32.totalorder %s147, %s163
    %p165 = scmp.eq.s32.totalorder %s17, 0
    %p166 = por %p164, %p165
    %p167 = scmp.le.s32.totalorder 1, %s11
    %p168 = scmp.lt.s32.totalorder %s11, 3
    %p169 = pnand %p167, %p168
    %p170 = pneg %p169
    // Predicated region
    $region9: #{residual_block_forward.7} parent=5 // pred_check
      _
    $region10: #{residual_block_forward.7} parent=5 // pred_check_branch
      %172 = sbr.rel (%p169) target = $region12
    $region11: #{residual_block_forward.7} parent=5 // pred_region
      %s173 = ssub.s32 %s11, 1
      // Predicated region
      $region13: #{residual_block_forward.7} parent=11 // pred_check
        %p174 = pneg %p75
      $region14: #{residual_block_forward.7} parent=11 // pred_check_branch
        %176 = sbr.rel (%p174) target = $region16
      $region15: #{residual_block_forward.7} parent=11 // pred_region
        %p177 = scmp.lt.s32.totalorder %s21, 0
        %s178 = scalar_select %p177, %s21, 0
        %s179 = smul.addr %s178, 4
        %s180 = scalar_lea.vmem %s1, %s179
      $region16: #{residual_block_forward.7} parent=11 // pred_fallthru
        _
    $region12: #{residual_block_forward.7} parent=5 // pred_fallthru
      _
    %p181 = scmp.lt.s32.totalorder %s11, 2
    // Predicated region
    $region17: #{residual_block_forward.7} parent=5 // pred_check
      %p182 = pneg %p181
    $region18: #{residual_block_forward.7} parent=5 // pred_check_branch
      %184 = sbr.rel (%p182) target = $region20
    $region19: #{residual_block_forward.7} parent=5 // pred_region
      // Predicated region
      $region21: #{residual_block_forward.7} parent=19 // pred_check
        %p185 = pneg %p43
      $region22: #{residual_block_forward.7} parent=19 // pred_check_branch
        %187 = sbr.rel (%p185) target = $region24
      $region23: #{residual_block_forward.7} parent=19 // pred_region
        %s188 = smul.u32 8, %s18
        %p189 = scmp.lt.s32.totalorder %s188, 15
        %s190 = scalar_select %p189, %s188, 15
        %s191 = smul.addr %s190, 4
        %s192 = scalar_lea.vmem %s0, %s191
        %s193 = smul.u32 8, %s18
      $region24: #{residual_block_forward.7} parent=19 // pred_fallthru
        _
    $region20: #{residual_block_forward.7} parent=5 // pred_fallthru
      _
    %p194 = scmp.le.s32.totalorder 1, %s11
    %p195 = scmp.lt.s32.totalorder %s11, 3
    %p196 = pnand %p194, %p195
    %p197 = pneg %p196
    // Predicated region
    $region25: #{residual_block_forward.7} parent=5 // pred_check
      _
    $region26: #{residual_block_forward.7} parent=5 // pred_check_branch
      %199 = sbr.rel (%p196) target = $region28
    $region27: #{residual_block_forward.7} parent=5 // pred_region
      %s200 = ssub.s32 %s11, 1
      %s201 = smul.u32 8, %s20
      %p202 = scmp.lt.s32.totalorder %s201, 15
      %s203 = scalar_select %p202, %s201, 15
      %s204 = smul.addr %s203, 4
      %s205 = scalar_lea.vmem %s0, %s204
      %p206 = pneg %p49
      %p207 = pneg %p46
      %p208 = scmp.lt.s32.totalorder %s21, 0
      %s209 = scalar_select %p208, %s21, 0
      %s210 = smul.addr %s209, 4
      %s211 = scalar_lea.vmem %s1, %s210
      %p212 = pneg %p75
      %p213 = pneg %p72
      %p214 = pneg %p103
      %p215 = pneg %p100
      %s216 = smul.u32 8, %s20
      %p217 = scmp.lt.s32.totalorder %s216, 15
      %s218 = scalar_select %p217, %s216, 15
      %p219 = scmp.lt.s32.totalorder %s21, 0
      %s220 = scalar_select %p219, %s21, 0
      %s221 = sadd.s32 %s220, %s218
      %s222 = smul.addr %s221, 4
      %s223 = scalar_lea.vmem %s2, %s222
      %p224 = pneg %p131
      %p225 = pneg %p128
      %p226 = scmp.lt.s32.totalorder %s20, 1
      %s227 = scalar_select %p226, %s20, 1
      %p228 = scmp.lt.s32.totalorder %s21, 0
      %s229 = scalar_select %p228, %s21, 0
      %s230 = sadd.s32 %s229, %s227
      %s231 = scalar_lea.vmem %s3, %s230
      %p232 = pneg %p159
      %p233 = pneg %p156
      %p234 = scmp.lt.s32.totalorder %s20, 1
      %s235 = scalar_select %p234, %s20, 1
      %p236 = scmp.lt.s32.totalorder %s21, 0
      %s237 = scalar_select %p236, %s21, 0
      %s238 = sadd.s32 %s237, %s235
      %s239 = scalar_lea.vmem %s4, %s238
      %s240 = smul.u32 8, %s20
      %p241 = scmp.lt.s32.totalorder %s240, 15
      %s242 = scalar_select %p241, %s240, 15
      %s243 = smul.addr %s242, 4
      %s244 = scalar_lea.vmem %s0, %s243
      %s245 = smul.u32 8, %s20
      %p246 = scmp.lt.s32.totalorder %s21, 0
      %s247 = scalar_select %p246, %s21, 0
      %s248 = smul.addr %s247, 4
      %s249 = scalar_lea.vmem %s1, %s248
      %s250 = smul.u32 8, %s20
      %p251 = scmp.lt.s32.totalorder %s250, 15
      %s252 = scalar_select %p251, %s250, 15
      %p253 = scmp.lt.s32.totalorder %s21, 0
      %s254 = scalar_select %p253, %s21, 0
      %s255 = sadd.s32 %s254, %s252
      %s256 = smul.addr %s255, 4
      %s257 = scalar_lea.vmem %s2, %s256
      %s258 = smul.u32 8, %s20
      %p259 = scmp.lt.s32.totalorder %s20, 1
      %s260 = scalar_select %p259, %s20, 1
      %p261 = scmp.lt.s32.totalorder %s21, 0
      %s262 = scalar_select %p261, %s21, 0
      %s263 = sadd.s32 %s262, %s260
      %s264 = scalar_lea.vmem %s3, %s263
      %p265 = scmp.lt.s32.totalorder %s20, 1
      %s266 = scalar_select %p265, %s20, 1
      %p267 = scmp.lt.s32.totalorder %s21, 0
      %s268 = scalar_select %p267, %s21, 0
      %s269 = sadd.s32 %s268, %s266
      %s270 = scalar_lea.vmem %s4, %s269
      %v272 = vld [vmem:[%s244] sm:$0xf]
      %v273 = vld [vmem:[%s244 + $0x4] sm:$0xf]
      %v274 = vld [vmem:[%s244 + $0x8] sm:$0xf]
      %v275 = vld [vmem:[%s244 + $0xc] sm:$0xf]
      %v276 = vld [vmem:[%s244 + $0x10] sm:$0xf]
      %v277 = vld [vmem:[%s244 + $0x14] sm:$0xf]
      %v278 = vld [vmem:[%s244 + $0x18] sm:$0xf]
      %v279 = vld [vmem:[%s244 + $0x1c] sm:$0xf]
      %v280 = vld [vmem:[%s249] sm:$0xf]
      %v289 = vunpack.c.l.b16 %v272
      %v290 = vunpack.c.l.b16 %v273
      %v291 = vunpack.c.l.b16 %v274
      %v292 = vunpack.c.l.b16 %v275
      %v293 = vunpack.c.l.b16 %v276
      %v294 = vunpack.c.l.b16 %v277
      %v295 = vunpack.c.l.b16 %v278
      %v296 = vunpack.c.l.b16 %v279
      %v297 = vpack.c.b16 %v290, %v289
      %v298 = vpack.c.b16 %v292, %v291
      %v299 = vpack.c.b16 %v294, %v293
      %v300 = vpack.c.b16 %v296, %v295
      %vm301 = vcmask 64512
      %v303 = vsel %vm301, %v297, 0
      %v306 = vsel %vm301, %v298, 0
      %v309 = vsel %vm301, %v299, 0
      %v312 = vsel %vm301, %v300, 0
      %vm314 = vcmask 1043456
      %v316 = vsel %vm314, %v280, 0
      %318 = vmatprep.subr.bf16.mxu0 0
      %319 = vmatpush1.bf16.msra.mxu0 0
      %320 = vmatprep.subr.bf16.mxu0 0
      %321 = vmatpush1.bf16.msra.mxu0 0
      %322 = vmatprep.subr.bf16.mxu0 0
      %323 = vmatpush1.bf16.msra.mxu0 0
      %324 = vmatprep.subr.bf16.mxu0 0
      %325 = vmatpush1.bf16.msra.mxu0 0
      %326 = vmatprep.subr.bf16.mxu0 0
      %327 = vmatpush1.bf16.msra.mxu0 0
      %328 = vmatprep.subr.bf16.mxu0 0
      %329 = vmatpush1.bf16.msra.mxu0 0
      %330 = vmatprep.subr.bf16.mxu0 0
      %331 = vmatpush1.bf16.msra.mxu0 0
      %332 = vmatprep.subr.bf16.mxu0 0
      %333 = vmatpush1.bf16.msra.mxu0 %v316
      %334 = vmatprep.subr.bf16.mxu0 0
      %335 = vmatpush2.bf16.msra.mxu0 0
      %336 = vmatprep.subr.bf16.mxu0 0
      %337 = vmatpush2.bf16.msra.mxu0 0
      %338 = vmatprep.subr.bf16.mxu0 0
      %339 = vmatpush2.bf16.msra.mxu0 0
      %340 = vmatprep.subr.bf16.mxu0 0
      %341 = vmatpush2.bf16.msra.mxu0 0
      %342 = vmatprep.subr.bf16.mxu0 0
      %343 = vmatpush2.bf16.msra.mxu0 0
      %344 = vmatprep.subr.bf16.mxu0 0
      %345 = vmatpush2.bf16.msra.mxu0 0
      %346 = vmatprep.subr.bf16.mxu0 0
      %347 = vmatpush2.bf16.msra.mxu0 0
      %348 = vmatprep.subr.bf16.mxu0 0
      %349 = vmatpush2.bf16.msra.mxu0 0
      %350 = vmatprep.mubr.bf16.mxu0 0
      %351 = vmatmul.mubr.bf16.gmra.mxu0 %v303
      %v352 = vpop.f32.mrf.mxu0
      %v353 = vadd.f32 0.0, %v352
      %v354 = vpop.f32.mrf.mxu0
      %v355 = vpop.f32.mrf.mxu0
      %v356 = vadd.f32 0.0, %v355
      %v357 = vpop.f32.mrf.mxu0
      %358 = vmatprep.mubr.bf16.mxu0 0
      %359 = vmatmul.mubr.bf16.gmra.mxu0 %v306
      %v360 = vpop.f32.mrf.mxu0
      %v361 = vadd.f32 0.0, %v360
      %v362 = vpop.f32.mrf.mxu0
      %v363 = vpop.f32.mrf.mxu0
      %v364 = vadd.f32 0.0, %v363
      %v365 = vpop.f32.mrf.mxu0
      %366 = vmatprep.mubr.bf16.mxu0 0
      %367 = vmatmul.mubr.bf16.gmra.mxu0 %v309
      %v368 = vpop.f32.mrf.mxu0
      %v369 = vadd.f32 0.0, %v368
      %v370 = vpop.f32.mrf.mxu0
      %v371 = vpop.f32.mrf.mxu0
      %v372 = vadd.f32 0.0, %v371
      %v373 = vpop.f32.mrf.mxu0
      %374 = vmatprep.mubr.bf16.mxu0 0
      %375 = vmatmul.mubr.bf16.gmra.mxu0 %v312
      %v376 = vpop.f32.mrf.mxu0
      %v377 = vadd.f32 0.0, %v376
      %v378 = vpop.f32.mrf.mxu0
      %v379 = vpop.f32.mrf.mxu0
      %v380 = vadd.f32 0.0, %v379
      %v381 = vpop.f32.mrf.mxu0
      %382 = vdwg.mxu0
      %v383 = vpack.c.bf16 %v356, %v353
      %v384 = vpack.c.bf16 %v364, %v361
      %v385 = vpack.c.bf16 %v372, %v369
      %v386 = vpack.c.bf16 %v380, %v377
      %v391 = vunpack.c.l.b16 %v383
      %v392 = vunpack.c.h.b16 %v383
      %v393 = vunpack.c.l.b16 %v384
      %v394 = vunpack.c.h.b16 %v384
      %v395 = vunpack.c.l.b16 %v385
      %v396 = vunpack.c.h.b16 %v385
      %v397 = vunpack.c.l.b16 %v386
      %v398 = vunpack.c.h.b16 %v386
      %v399 = vpack.c.b16 %v391, %v391
      %v400 = vpack.c.b16 %v392, %v392
      %v401 = vpack.c.b16 %v393, %v393
      %v402 = vpack.c.b16 %v394, %v394
      %v403 = vpack.c.b16 %v395, %v395
      %v404 = vpack.c.b16 %v396, %v396
      %v405 = vpack.c.b16 %v397, %v397
      %v406 = vpack.c.b16 %v398, %v398
      %415 = vst [vmem:[%s257] sm:$0xf] %v399
      %416 = vst [vmem:[%s257 + $0x4] sm:$0xf] %v400
      %417 = vst [vmem:[%s257 + $0x8] sm:$0xf] %v401
      %418 = vst [vmem:[%s257 + $0xc] sm:$0xf] %v402
      %419 = vst [vmem:[%s257 + $0x10] sm:$0xf] %v403
      %420 = vst [vmem:[%s257 + $0x14] sm:$0xf] %v404
      %421 = vst [vmem:[%s257 + $0x18] sm:$0xf] %v405
      %422 = vst [vmem:[%s257 + $0x1c] sm:$0xf] %v406
      %v423 = vadd.f32 %v353, %v356
      %v424 = vadd.f32 %v423, %v361
      %v425 = vadd.f32 %v424, %v364
      %v426 = vadd.f32 %v425, %v369
      %v427 = vadd.f32 %v426, %v372
      %v428 = vadd.f32 %v427, %v377
      %v429 = vadd.f32 %v428, %v380
      %v430 = vrot.slane %v429, 4
      %v431 = vadd.f32 %v429, %v430
      %v432 = vrot.slane %v431, 2
      %v433 = vadd.f32 %v431, %v432
      %v434 = vrot.slane %v433, 1
      %v435 = vadd.f32 %v433, %v434
      %436 = vst [vmem:[%s264] sm:$0x1] %v435
      %v437 = vmul.f32 %v353, %v353
      %v438 = vmul.f32 %v356, %v356
      %v439 = vmul.f32 %v361, %v361
      %v440 = vmul.f32 %v364, %v364
      %v441 = vmul.f32 %v369, %v369
      %v442 = vmul.f32 %v372, %v372
      %v443 = vmul.f32 %v377, %v377
      %v444 = vmul.f32 %v380, %v380
      %v445 = vadd.f32 %v437, %v438
      %v446 = vadd.f32 %v445, %v439
      %v447 = vadd.f32 %v446, %v440
      %v448 = vadd.f32 %v447, %v441
      %v449 = vadd.f32 %v448, %v442
      %v450 = vadd.f32 %v449, %v443
      %v451 = vadd.f32 %v450, %v444
      %v452 = vrot.slane %v451, 4
      %v453 = vadd.f32 %v451, %v452
      %v454 = vrot.slane %v453, 2
      %v455 = vadd.f32 %v453, %v454
      %v456 = vrot.slane %v455, 1
      %v457 = vadd.f32 %v455, %v456
      %458 = vst [vmem:[%s270] sm:$0x1] %v457
      %s459 = smul.u32 8, %s20
      %p460 = scmp.lt.s32.totalorder %s459, 15
      %s461 = scalar_select %p460, %s459, 15
      %p462 = scmp.lt.s32.totalorder %s21, 0
      %s463 = scalar_select %p462, %s21, 0
      %s464 = sadd.s32 %s463, %s461
      %s465 = smul.addr %s464, 4
      %s466 = scalar_lea.vmem %s2, %s465
      %p467 = scmp.lt.s32.totalorder %s20, 1
      %s468 = scalar_select %p467, %s20, 1
      %p469 = scmp.lt.s32.totalorder %s21, 0
      %s470 = scalar_select %p469, %s21, 0
      %s471 = sadd.s32 %s470, %s468
      %s472 = scalar_lea.vmem %s3, %s471
      %p473 = scmp.lt.s32.totalorder %s20, 1
      %s474 = scalar_select %p473, %s20, 1
      %p475 = scmp.lt.s32.totalorder %s21, 0
      %s476 = scalar_select %p475, %s21, 0
      %s477 = sadd.s32 %s476, %s474
      %s478 = scalar_lea.vmem %s4, %s477
      // Predicated region
      $region29: #{residual_block_forward.7} parent=27 // pred_check
        %p479 = pneg %p100
      $region30: #{residual_block_forward.7} parent=27 // pred_check_branch
        %481 = sbr.rel (%p479) target = $region32
      $region31: #{residual_block_forward.7} parent=27 // pred_region
        %s482 = smul.u32 8, %s20
      $region32: #{residual_block_forward.7} parent=27 // pred_fallthru
        _
      // Predicated region
      $region33: #{residual_block_forward.7} parent=27 // pred_check
        %p483 = pneg %p128
      $region34: #{residual_block_forward.7} parent=27 // pred_check_branch
        %485 = sbr.rel (%p483) target = $region36
      $region35: #{residual_block_forward.7} parent=27 // pred_region
        _
      $region36: #{residual_block_forward.7} parent=27 // pred_fallthru
        _
      // Predicated region
      $region37: #{residual_block_forward.7} parent=27 // pred_check
        %p486 = pneg %p156
      $region38: #{residual_block_forward.7} parent=27 // pred_check_branch
        %488 = sbr.rel (%p486) target = $region40
      $region39: #{residual_block_forward.7} parent=27 // pred_region
        _
      $region40: #{residual_block_forward.7} parent=27 // pred_fallthru
        _
    $region28: #{residual_block_forward.7} parent=5 // pred_fallthru
      _
    %p489 = scmp.le.s32.totalorder 2, %s11
    // Predicated region
    $region41: #{residual_block_forward.7} parent=5 // pred_check
      %p490 = pneg %p489
    $region42: #{residual_block_forward.7} parent=5 // pred_check_branch
      %492 = sbr.rel (%p490) target = $region44
    $region43: #{residual_block_forward.7} parent=5 // pred_region
      %s493 = ssub.s32 %s11, 2
      // Predicated region
      $region45: #{residual_block_forward.7} parent=43 // pred_check
        %p494 = pneg %p106
      $region46: #{residual_block_forward.7} parent=43 // pred_check_branch
        %496 = sbr.rel (%p494) target = $region48
      $region47: #{residual_block_forward.7} parent=43 // pred_region
        %s497 = smul.u32 8, %s22
        %p498 = scmp.lt.s32.totalorder %s497, 15
        %s499 = scalar_select %p498, %s497, 15
        %p500 = scmp.lt.s32.totalorder %s23, 0
        %s501 = scalar_select %p500, %s23, 0
        %s502 = sadd.s32 %s501, %s499
        %s503 = smul.addr %s502, 4
        %s504 = scalar_lea.vmem %s2, %s503
      $region48: #{residual_block_forward.7} parent=43 // pred_fallthru
        _
      // Predicated region
      $region49: #{residual_block_forward.7} parent=43 // pred_check
        %p505 = pneg %p134
      $region50: #{residual_block_forward.7} parent=43 // pred_check_branch
        %507 = sbr.rel (%p505) target = $region52
      $region51: #{residual_block_forward.7} parent=43 // pred_region
        %p508 = scmp.lt.s32.totalorder %s22, 1
        %s509 = scalar_select %p508, %s22, 1
        %p510 = scmp.lt.s32.totalorder %s23, 0
        %s511 = scalar_select %p510, %s23, 0
        %s512 = sadd.s32 %s511, %s509
        %s513 = scalar_lea.vmem %s3, %s512
      $region52: #{residual_block_forward.7} parent=43 // pred_fallthru
        _
      // Predicated region
      $region53: #{residual_block_forward.7} parent=43 // pred_check
        %p514 = pneg %p162
      $region54: #{residual_block_forward.7} parent=43 // pred_check_branch
        %516 = sbr.rel (%p514) target = $region56
      $region55: #{residual_block_forward.7} parent=43 // pred_region
        %p517 = scmp.lt.s32.totalorder %s22, 1
        %s518 = scalar_select %p517, %s22, 1
        %p519 = scmp.lt.s32.totalorder %s23, 0
        %s520 = scalar_select %p519, %s23, 0
        %s521 = sadd.s32 %s520, %s518
        %s522 = scalar_lea.vmem %s4, %s521
      $region56: #{residual_block_forward.7} parent=43 // pred_fallthru
        _
    $region44: #{residual_block_forward.7} parent=5 // pred_fallthru
      _
  $region6: #{residual_block_forward.7} parent=0 // loop_footer
    %s15 = sadd.s32 1, %s11
  $region7: #{residual_block_forward.7} parent=0 // loop_footer_branch
    %10 = sbr.rel target = $region3
  $region8: #{residual_block_forward.7} parent=0 // loop_exit
    _

// kernel: residual_block_forward.8
$region0: #{residual_block_forward.8}
  #allocation0 [shape = 'u32[]', space=smem, size = 0x4, offset = 0x4, fixed_abs, tag = 'smem constant byte address 0x4 - core index']
  #allocation1 [shape = 'u32[144,128]{1,0:T(1,128)}', space=vmem, size = 0x12000, scoped, tag = 'internal scratch']
  %s0 = inlined_call_operand.vmem [shape: bf16[2,10,10,128], index: 0, kind: input, shape index: {}]
  %s1 = inlined_call_operand.vmem [shape: bf16[9,128,128], index: 1, kind: input, shape index: {}]
  %s2 = inlined_call_operand.vmem [shape: bf16[2,64,128], index: 2, kind: output, shape index: {0}]
  %s3 = inlined_call_operand.vmem [shape: f32[2,1,128], index: 3, kind: output, shape index: {1}]
  %s4 = inlined_call_operand.vmem [shape: f32[2,1,128], index: 4, kind: output, shape index: {2}]
  %5 = xla_tuple %s2, %s3, %s4
  %s6 = sld [smem:[#allocation0]]
  $region57: #{residual_block_forward.8} parent=0
    _
  %s8 = ssub.s32 1, %s6
  %s9 = scalar_select 0, %s8, %s6
  loop: start=0, step=1, limit=4
  $region2: #{residual_block_forward.8} parent=0 // loop_pre_header
    _
  $region3: #{residual_block_forward.8} parent=0 // loop_header
    %s11 = sphi 0, %s15
    %p12 = scmp.ge.s32.totalorder %s11, 4
    %s18 = sphi 0, %s30
    %s19 = sphi 0, %s26
    %s20 = sphi 0, %s18
    %s21 = sphi 0, %s19
    %s22 = sphi 0, %s20
    %s23 = sphi 0, %s21
    %s33 = sphi 0, %s35
    %s36 = sphi 0, %s33
    %s37 = sphi 0, %s36
    %s53 = sphi 0, %s37
    %s59 = sphi 0, %s61
    %s62 = sphi 0, %s59
    %s63 = sphi 0, %s62
    %s79 = sphi 0, %s63
    %s87 = sphi 0, %s89
    %s90 = sphi 0, %s87
    %s91 = sphi 0, %s90
    %s107 = sphi 0, %s91
    %s115 = sphi 0, %s117
    %s118 = sphi 0, %s115
    %s119 = sphi 0, %s118
    %s135 = sphi 0, %s119
    %s143 = sphi 0, %s145
    %s146 = sphi 0, %s143
    %s147 = sphi 0, %s146
    %s163 = sphi 0, %s147
  $region4: #{residual_block_forward.8} parent=0 // loop_header_branch
    %14 = sbr.rel (%p12) target = $region8
  $region5: #{residual_block_forward.8} parent=0 // loop_body
    %s16 = ssub.s32 %s11, 1
    %s17 = ssub.s32 %s11, 2
    %s24 = sadd.s32 1, %s19
    %p25 = scmp.ge.s32.totalorder %s24, 1
    %s26 = scalar_select %p25, 0, %s24
    %s27 = sadd.s32 1, %s18
    %s28 = scalar_select %p25, %s27, %s18
    %p29 = scmp.ge.s32.totalorder %s28, 2
    %s30 = scalar_select %p29, 0, %s28
    %s31 = ssub.s32 %s18, %s30
    %p32 = scmp.eq.s32.totalorder %s31, 0
    %s34 = sadd.s32 %s33, 1
    %s35 = scalar_select %p32, %s33, %s34
    %p38 = pneg %p32
    %p39 = scmp.eq.s32.totalorder %s11, 1
    %p40 = por %p38, %p39
    %p41 = scmp.ne.s32.totalorder %s33, %s36
    %p42 = scmp.eq.s32.totalorder %s11, 0
    %p43 = por %p41, %p42
    %p44 = scmp.ne.s32.totalorder %s33, %s36
    %p45 = scmp.eq.s32.totalorder %s16, 1
    %p46 = por %p44, %p45
    %p47 = scmp.ne.s32.totalorder %s36, %s37
    %p48 = scmp.eq.s32.totalorder %s16, 0
    %p49 = por %p47, %p48
    %p50 = scmp.ne.s32.totalorder %s36, %s37
    %p51 = scmp.eq.s32.totalorder %s17, 1
    %p52 = por %p50, %p51
    %p54 = scmp.ne.s32.totalorder %s37, %s53
    %p55 = scmp.eq.s32.totalorder %s17, 0
    %p56 = por %p54, %p55
    %s57 = ssub.s32 %s19, %s26
    %p58 = scmp.eq.s32.totalorder %s57, 0
    %s60 = sadd.s32 %s59, 1
    %s61 = scalar_select %p58, %s59, %s60
    %p64 = pneg %p58
    %p65 = scmp.eq.s32.totalorder %s11, 1
    %p66 = por %p64, %p65
    %p67 = scmp.ne.s32.totalorder %s59, %s62
    %p68 = scmp.eq.s32.totalorder %s11, 0
    %p69 = por %p67, %p68
    %p70 = scmp.ne.s32.totalorder %s59, %s62
    %p71 = scmp.eq.s32.totalorder %s16, 1
    %p72 = por %p70, %p71
    %p73 = scmp.ne.s32.totalorder %s62, %s63
    %p74 = scmp.eq.s32.totalorder %s16, 0
    %p75 = por %p73, %p74
    %p76 = scmp.ne.s32.totalorder %s62, %s63
    %p77 = scmp.eq.s32.totalorder %s17, 1
    %p78 = por %p76, %p77
    %p80 = scmp.ne.s32.totalorder %s63, %s79
    %p81 = scmp.eq.s32.totalorder %s17, 0
    %p82 = por %p80, %p81
    %s83 = ssub.s32 %s18, %s30
    %s84 = ssub.s32 %s19, %s26
    %s85 = sor.u32 %s83, %s84
    %p86 = scmp.eq.s32.totalorder %s85, 0
    %s88 = sadd.s32 %s87, 1
    %s89 = scalar_select %p86, %s87, %s88
    %p92 = pneg %p86
    %p93 = scmp.eq.s32.totalorder %s11, 1
    %p94 = por %p92, %p93
    %p95 = scmp.ne.s32.totalorder %s87, %s90
    %p96 = scmp.eq.s32.totalorder %s11, 0
    %p97 = por %p95, %p96
    %p98 = scmp.ne.s32.totalorder %s87, %s90
    %p99 = scmp.eq.s32.totalorder %s16, 1
    %p100 = por %p98, %p99
    %p101 = scmp.ne.s32.totalorder %s90, %s91
    %p102 = scmp.eq.s32.totalorder %s16, 0
    %p103 = por %p101, %p102
    %p104 = scmp.ne.s32.totalorder %s90, %s91
    %p105 = scmp.eq.s32.totalorder %s17, 1
    %p106 = por %p104, %p105
    %p108 = scmp.ne.s32.totalorder %s91, %s107
    %p109 = scmp.eq.s32.totalorder %s17, 0
    %p110 = por %p108, %p109
    %s111 = ssub.s32 %s18, %s30
    %s112 = ssub.s32 %s19, %s26
    %s113 = sor.u32 %s111, %s112
    %p114 = scmp.eq.s32.totalorder %s113, 0
    %s116 = sadd.s32 %s115, 1
    %s117 = scalar_select %p114, %s115, %s116
    %p120 = pneg %p114
    %p121 = scmp.eq.s32.totalorder %s11, 1
    %p122 = por %p120, %p121
    %p123 = scmp.ne.s32.totalorder %s115, %s118
    %p124 = scmp.eq.s32.totalorder %s11, 0
    %p125 = por %p123, %p124
    %p126 = scmp.ne.s32.totalorder %s115, %s118
    %p127 = scmp.eq.s32.totalorder %s16, 1
    %p128 = por %p126, %p127
    %p129 = scmp.ne.s32.totalorder %s118, %s119
    %p130 = scmp.eq.s32.totalorder %s16, 0
    %p131 = por %p129, %p130
    %p132 = scmp.ne.s32.totalorder %s118, %s119
    %p133 = scmp.eq.s32.totalorder %s17, 1
    %p134 = por %p132, %p133
    %p136 = scmp.ne.s32.totalorder %s119, %s135
    %p137 = scmp.eq.s32.totalorder %s17, 0
    %p138 = por %p136, %p137
    %s139 = ssub.s32 %s18, %s30
    %s140 = ssub.s32 %s19, %s26
    %s141 = sor.u32 %s139, %s140
    %p142 = scmp.eq.s32.totalorder %s141, 0
    %s144 = sadd.s32 %s143, 1
    %s145 = scalar_select %p142, %s143, %s144
    %p148 = pneg %p142
    %p149 = scmp.eq.s32.totalorder %s11, 1
    %p150 = por %p148, %p149
    %p151 = scmp.ne.s32.totalorder %s143, %s146
    %p152 = scmp.eq.s32.totalorder %s11, 0
    %p153 = por %p151, %p152
    %p154 = scmp.ne.s32.totalorder %s143, %s146
    %p155 = scmp.eq.s32.totalorder %s16, 1
    %p156 = por %p154, %p155
    %p157 = scmp.ne.s32.totalorder %s146, %s147
    %p158 = scmp.eq.s32.totalorder %s16, 0
    %p159 = por %p157, %p158
    %p160 = scmp.ne.s32.totalorder %s146, %s147
    %p161 = scmp.eq.s32.totalorder %s17, 1
    %p162 = por %p160, %p161
    %p164 = scmp.ne.s32.totalorder %s147, %s163
    %p165 = scmp.eq.s32.totalorder %s17, 0
    %p166 = por %p164, %p165
    %p167 = scmp.le.s32.totalorder 1, %s11
    %p168 = scmp.lt.s32.totalorder %s11, 3
    %p169 = pnand %p167, %p168
    %p170 = pneg %p169
    // Predicated region
    $region9: #{residual_block_forward.8} parent=5 // pred_check
      _
    $region10: #{residual_block_forward.8} parent=5 // pred_check_branch
      %172 = sbr.rel (%p169) target = $region12
    $region11: #{residual_block_forward.8} parent=5 // pred_region
      %s173 = ssub.s32 %s11, 1
      // Predicated region
      $region13: #{residual_block_forward.8} parent=11 // pred_check
        %p174 = pneg %p75
      $region14: #{residual_block_forward.8} parent=11 // pred_check_branch
        %176 = sbr.rel (%p174) target = $region16
      $region15: #{residual_block_forward.8} parent=11 // pred_region
        %p177 = scmp.lt.s32.totalorder %s21, 0
        %s178 = scalar_select %p177, %s21, 0
        %s179 = smul.addr %s178, 4
        %s180 = scalar_lea.vmem %s1, %s179
      $region16: #{residual_block_forward.8} parent=11 // pred_fallthru
        _
    $region12: #{residual_block_forward.8} parent=5 // pred_fallthru
      _
    %p181 = scmp.lt.s32.totalorder %s11, 2
    // Predicated region
    $region17: #{residual_block_forward.8} parent=5 // pred_check
      %p182 = pneg %p181
    $region18: #{residual_block_forward.8} parent=5 // pred_check_branch
      %184 = sbr.rel (%p182) target = $region20
    $region19: #{residual_block_forward.8} parent=5 // pred_region
      // Predicated region
      $region21: #{residual_block_forward.8} parent=19 // pred_check
        %p185 = pneg %p43
      $region22: #{residual_block_forward.8} parent=19 // pred_check_branch
        %187 = sbr.rel (%p185) target = $region24
      $region23: #{residual_block_forward.8} parent=19 // pred_region
        %p188 = scmp.lt.s32.totalorder %s18, 1
        %s189 = scalar_select %p188, %s18, 1
        %s190 = smul.addr %s189, 20
        %s191 = smul.addr %s190, 4
        %s192 = scalar_lea.vmem %s0, %s191
      $region24: #{residual_block_forward.8} parent=19 // pred_fallthru
        _
    $region20: #{residual_block_forward.8} parent=5 // pred_fallthru
      _
    %p193 = scmp.le.s32.totalorder 1, %s11
    %p194 = scmp.lt.s32.totalorder %s11, 3
    %p195 = pnand %p193, %p194
    %p196 = pneg %p195
    // Predicated region
    $region25: #{residual_block_forward.8} parent=5 // pred_check
      _
    $region26: #{residual_block_forward.8} parent=5 // pred_check_branch
      %198 = sbr.rel (%p195) target = $region28
    $region27: #{residual_block_forward.8} parent=5 // pred_region
      %s199 = ssub.s32 %s11, 1
      %p200 = scmp.lt.s32.totalorder %s20, 1
      %s201 = scalar_select %p200, %s20, 1
      %s202 = smul.addr %s201, 20
      %s203 = smul.addr %s202, 4
      %s204 = scalar_lea.vmem %s0, %s203
      %p205 = pneg %p49
      %p206 = pneg %p46
      %p207 = scmp.lt.s32.totalorder %s21, 0
      %s208 = scalar_select %p207, %s21, 0
      %s209 = smul.addr %s208, 4
      %s210 = scalar_lea.vmem %s1, %s209
      %p211 = pneg %p75
      %p212 = pneg %p72
      %p213 = pneg %p103
      %p214 = pneg %p100
      %p215 = scmp.lt.s32.totalorder %s20, 1
      %s216 = scalar_select %p215, %s20, 1
      %p217 = scmp.lt.s32.totalorder %s21, 0
      %s218 = scalar_select %p217, %s21, 0
      %s219 = smul.addr %s216, 8
      %s220 = sadd.s32 %s218, %s219
      %s221 = smul.addr %s220, 4
      %s222 = scalar_lea.vmem %s2, %s221
      %p223 = pneg %p131
      %p224 = pneg %p128
      %p225 = scmp.lt.s32.totalorder %s20, 1
      %s226 = scalar_select %p225, %s20, 1
      %p227 = scmp.lt.s32.totalorder %s21, 0
      %s228 = scalar_select %p227, %s21, 0
      %s229 = sadd.s32 %s228, %s226
      %s230 = scalar_lea.vmem %s3, %s229
      %p231 = pneg %p159
      %p232 = pneg %p156
      %p233 = scmp.lt.s32.totalorder %s20, 1
      %s234 = scalar_select %p233, %s20, 1
      %p235 = scmp.lt.s32.totalorder %s21, 0
      %s236 = scalar_select %p235, %s21, 0
      %s237 = sadd.s32 %s236, %s234
      %s238 = scalar_lea.vmem %s4, %s237
      %p239 = scmp.lt.s32.totalorder %s20, 1
      %s240 = scalar_select %p239, %s20, 1
      %s241 = smul.addr %s240, 20
      %s242 = smul.addr %s241, 4
      %s243 = scalar_lea.vmem %s0, %s242
      %p244 = scmp.lt.s32.totalorder %s21, 0
      %s245 = scalar_select %p244, %s21, 0
      %s246 = smul.addr %s245, 4
      %s247 = scalar_lea.vmem %s1, %s246
      %p248 = scmp.lt.s32.totalorder %s20, 1
      %s249 = scalar_select %p248, %s20, 1
      %p250 = scmp.lt.s32.totalorder %s21, 0
      %s251 = scalar_select %p250, %s21, 0
      %s252 = smul.addr %s249, 8
      %s253 = sadd.s32 %s251, %s252
      %s254 = smul.addr %s253, 4
      %s255 = scalar_lea.vmem %s2, %s254
      %p256 = scmp.lt.s32.totalorder %s20, 1
      %s257 = scalar_select %p256, %s20, 1
      %p258 = scmp.lt.s32.totalorder %s21, 0
      %s259 = scalar_select %p258, %s21, 0
      %s260 = sadd.s32 %s259, %s257
      %s261 = scalar_lea.vmem %s3, %s260
      %p262 = scmp.lt.s32.totalorder %s20, 1
      %s263 = scalar_select %p262, %s20, 1
      %p264 = scmp.lt.s32.totalorder %s21, 0
      %s265 = scalar_select %p264, %s21, 0
      %s266 = sadd.s32 %s265, %s263
      %s267 = scalar_lea.vmem %s4, %s266
      %v269 = vld [vmem:[%s243] sm:$0xf]
      %v270 = vld [vmem:[%s243 + $0x8] sm:$0xf]
      %v271 = vld [vmem:[%s243 + $0x10] sm:$0xf]
      %v272 = vld [vmem:[%s243 + $0x18] sm:$0xf]
      %v273 = vld [vmem:[%s243 + $0x20] sm:$0xf]
      %v274 = vld [vmem:[%s243 + $0x28] sm:$0xf]
      %v275 = vld [vmem:[%s243 + $0x30] sm:$0xf]
      %v276 = vld [vmem:[%s243 + $0x38] sm:$0xf]
      %v277 = vunpack.c.l.bf16 %v269
      %v278 = vunpack.c.l.bf16 %v270
      %v279 = vunpack.c.l.bf16 %v271
      %v280 = vunpack.c.l.bf16 %v272
      %v281 = vunpack.c.l.bf16 %v273
      %v282 = vunpack.c.l.bf16 %v274
      %v283 = vunpack.c.l.bf16 %v275
      %v284 = vunpack.c.l.bf16 %v276
      %v285 = vpack.c.bf16 %v278, %v277
      %v286 = vpack.c.bf16 %v280, %v279
      %v287 = vpack.c.bf16 %v282, %v281
      %v288 = vpack.c.bf16 %v284, %v283
      %v289 = vld [vmem:[%s247] sm:$0xf]
      %v290 = vld [vmem:[%s247 + $0x4] sm:$0xf]
      %v291 = vld [vmem:[%s247 + $0x8] sm:$0xf]
      %v292 = vld [vmem:[%s247 + $0xc] sm:$0xf]
      %v293 = vld [vmem:[%s247 + $0x10] sm:$0xf]
      %v294 = vld [vmem:[%s247 + $0x14] sm:$0xf]
      %v295 = vld [vmem:[%s247 + $0x18] sm:$0xf]
      %v296 = vld [vmem:[%s247 + $0x1c] sm:$0xf]
      %v297 = vld [vmem:[%s247 + $0x20] sm:$0xf]
      %v298 = vld [vmem:[%s247 + $0x24] sm:$0xf]
      %v299 = vld [vmem:[%s247 + $0x28] sm:$0xf]
      %v300 = vld [vmem:[%s247 + $0x2c] sm:$0xf]
      %v301 = vld [vmem:[%s247 + $0x30] sm:$0xf]
      %v302 = vld [vmem:[%s247 + $0x34] sm:$0xf]
      %v303 = vld [vmem:[%s247 + $0x38] sm:$0xf]
      %v304 = vld [vmem:[%s247 + $0x3c] sm:$0xf]
      %v305 = vld [vmem:[%s243 + $0x4] sm:$0x1]
      %v306 = vld [vmem:[%s243 + $0xc] sm:$0x1]
      %v307 = vld [vmem:[%s243 + $0x14] sm:$0x1]
      %v308 = vld [vmem:[%s243 + $0x1c] sm:$0x1]
      %v309 = vld [vmem:[%s243 + $0x24] sm:$0x1]
      %v310 = vld [vmem:[%s243 + $0x2c] sm:$0x1]
      %v311 = vld [vmem:[%s243 + $0x34] sm:$0x1]
      %v312 = vld [vmem:[%s243 + $0x3c] sm:$0x1]
      %v313 = vunpack.c.l.bf16 %v305
      %v314 = vunpack.c.l.bf16 %v306
      %v315 = vunpack.c.l.bf16 %v307
      %v316 = vunpack.c.l.bf16 %v308
      %v317 = vunpack.c.l.bf16 %v309
      %v318 = vunpack.c.l.bf16 %v310
      %v319 = vunpack.c.l.bf16 %v311
      %v320 = vunpack.c.l.bf16 %v312
      %vm337 = vcmask 1046528
      %v338 = vrot.slane %v277, 1
      %v339 = vrot.slane %v313, 1
      %v340 = vsel %vm337, %v338, %v339
      %v341 = vrot.slane %v278, 1
      %v342 = vrot.slane %v314, 1
      %v343 = vsel %vm337, %v341, %v342
      %v344 = vrot.slane %v279, 1
      %v345 = vrot.slane %v315, 1
      %v346 = vsel %vm337, %v344, %v345
      %v347 = vrot.slane %v280, 1
      %v348 = vrot.slane %v316, 1
      %v349 = vsel %vm337, %v347, %v348
      %v350 = vrot.slane %v281, 1
      %v351 = vrot.slane %v317, 1
      %v352 = vsel %vm337, %v350, %v351
      %v353 = vrot.slane %v282, 1
      %v354 = vrot.slane %v318, 1
      %v355 = vsel %vm337, %v353, %v354
      %v356 = vrot.slane %v283, 1
      %v357 = vrot.slane %v319, 1
      %v358 = vsel %vm337, %v356, %v357
      %v359 = vrot.slane %v284, 1
      %v360 = vrot.slane %v320, 1
      %v361 = vsel %vm337, %v359, %v360
      %v370 = vpack.c.bf16 %v343, %v340
      %v371 = vpack.c.bf16 %v349, %v346
      %v372 = vpack.c.bf16 %v355, %v352
      %v373 = vpack.c.bf16 %v361, %v358
      %s374 = scalar_lea.vmem %s247, 64
      %v375 = vld [vmem:[%s374] sm:$0xf]
      %v376 = vld [vmem:[%s374 + $0x4] sm:$0xf]
      %v377 = vld [vmem:[%s374 + $0x8] sm:$0xf]
      %v378 = vld [vmem:[%s374 + $0xc] sm:$0xf]
      %v379 = vld [vmem:[%s374 + $0x10] sm:$0xf]
      %v380 = vld [vmem:[%s374 + $0x14] sm:$0xf]
      %v381 = vld [vmem:[%s374 + $0x18] sm:$0xf]
      %v382 = vld [vmem:[%s374 + $0x1c] sm:$0xf]
      %v383 = vld [vmem:[%s374 + $0x20] sm:$0xf]
      %v384 = vld [vmem:[%s374 + $0x24] sm:$0xf]
      %v385 = vld [vmem:[%s374 + $0x28] sm:$0xf]
      %v386 = vld [vmem:[%s374 + $0x2c] sm:$0xf]
      %v387 = vld [vmem:[%s374 + $0x30] sm:$0xf]
      %v388 = vld [vmem:[%s374 + $0x34] sm:$0xf]
      %v389 = vld [vmem:[%s374 + $0x38] sm:$0xf]
      %v390 = vld [vmem:[%s374 + $0x3c] sm:$0xf]
      %v407 = vunpack.c.l.b16 %v375
      %v408 = vunpack.c.l.b16 %v376
      %v409 = vunpack.c.l.b16 %v377
      %v410 = vunpack.c.l.b16 %v378
      %v411 = vunpack.c.l.b16 %v379
      %v412 = vunpack.c.l.b16 %v380
      %v413 = vunpack.c.l.b16 %v381
      %v414 = vunpack.c.l.b16 %v382
      %v415 = vunpack.c.l.b16 %v383
      %v416 = vunpack.c.l.b16 %v384
      %v417 = vunpack.c.l.b16 %v385
      %v418 = vunpack.c.l.b16 %v386
      %v419 = vunpack.c.l.b16 %v387
      %v420 = vunpack.c.l.b16 %v388
      %v421 = vunpack.c.l.b16 %v389
      %v422 = vunpack.c.l.b16 %v390
      %v423 = vpack.c.b16 %v408, %v407
      %v424 = vpack.c.b16 %v410, %v409
      %v425 = vpack.c.b16 %v412, %v411
      %v426 = vpack.c.b16 %v414, %v413
      %v427 = vpack.c.b16 %v416, %v415
      %v428 = vpack.c.b16 %v418, %v417
      %v429 = vpack.c.b16 %v420, %v419
      %v430 = vpack.c.b16 %v422, %v421
      %439 = vmatprep.subr.bf16.mxu0 0
      %440 = vmatpush1.bf16.msra.mxu0 %v430
      %441 = vmatprep.subr.bf16.mxu0 0
      %442 = vmatpush1.bf16.msra.mxu0 %v429
      %443 = vmatprep.subr.bf16.mxu0 0
      %444 = vmatpush1.bf16.msra.mxu0 %v428
      %445 = vmatprep.subr.bf16.mxu0 0
      %446 = vmatpush1.bf16.msra.mxu0 %v427
      %447 = vmatprep.subr.bf16.mxu0 0
      %448 = vmatpush1.bf16.msra.mxu0 %v426
      %449 = vmatprep.subr.bf16.mxu0 0
      %450 = vmatpush1.bf16.msra.mxu0 %v425
      %451 = vmatprep.subr.bf16.mxu0 0
      %452 = vmatpush1.bf16.msra.mxu0 %v424
      %453 = vmatprep.subr.bf16.mxu0 0
      %454 = vmatpush1.bf16.msra.mxu0 %v423
      %455 = vmatprep.subr.bf16.mxu0 0
      %456 = vmatpush2.bf16.msra.mxu0 0
      %457 = vmatprep.subr.bf16.mxu0 0
      %458 = vmatpush2.bf16.msra.mxu0 0
      %459 = vmatprep.subr.bf16.mxu0 0
      %460 = vmatpush2.bf16.msra.mxu0 0
      %461 = vmatprep.subr.bf16.mxu0 0
      %462 = vmatpush2.bf16.msra.mxu0 0
      %463 = vmatprep.subr.bf16.mxu0 0
      %464 = vmatpush2.bf16.msra.mxu0 0
      %465 = vmatprep.subr.bf16.mxu0 0
      %466 = vmatpush2.bf16.msra.mxu0 0
      %467 = vmatprep.subr.bf16.mxu0 0
      %468 = vmatpush2.bf16.msra.mxu0 0
      %469 = vmatprep.subr.bf16.mxu0 0
      %470 = vmatpush2.bf16.msra.mxu0 0
      %471 = vmatprep.mubr.bf16.mxu0 0
      %472 = vmatmul.mubr.bf16.gmra.mxu0 %v370
      %v473 = vpop.f32.mrf.mxu0
      %v474 = vadd.f32 0.0, %v473
      %v475 = vpop.f32.mrf.mxu0
      %v476 = vpop.f32.mrf.mxu0
      %v477 = vadd.f32 0.0, %v476
      %v478 = vpop.f32.mrf.mxu0
      %479 = vmatprep.mubr.bf16.mxu0 0
      %480 = vmatmul.mubr.bf16.gmra.mxu0 %v371
      %v481 = vpop.f32.mrf.mxu0
      %v482 = vadd.f32 0.0, %v481
      %v483 = vpop.f32.mrf.mxu0
      %v484 = vpop.f32.mrf.mxu0
      %v485 = vadd.f32 0.0, %v484
      %v486 = vpop.f32.mrf.mxu0
      %487 = vmatprep.mubr.bf16.mxu0 0
      %488 = vmatmul.mubr.bf16.gmra.mxu0 %v372
      %v489 = vpop.f32.mrf.mxu0
      %v490 = vadd.f32 0.0, %v489
      %v491 = vpop.f32.mrf.mxu0
      %v492 = vpop.f32.mrf.mxu0
      %v493 = vadd.f32 0.0, %v492
      %v494 = vpop.f32.mrf.mxu0
      %495 = vmatprep.mubr.bf16.mxu0 0
      %496 = vmatmul.mubr.bf16.gmra.mxu0 %v373
      %v497 = vpop.f32.mrf.mxu0
      %v498 = vadd.f32 0.0, %v497
      %v499 = vpop.f32.mrf.mxu0
      %v500 = vpop.f32.mrf.mxu0
      %v501 = vadd.f32 0.0, %v500
      %v502 = vpop.f32.mrf.mxu0
      %503 = vdwg.mxu0
      %v520 = vunpack.c.l.b16 %v289
      %v521 = vunpack.c.l.b16 %v290
      %v522 = vunpack.c.l.b16 %v291
      %v523 = vunpack.c.l.b16 %v292
      %v524 = vunpack.c.l.b16 %v293
      %v525 = vunpack.c.l.b16 %v294
      %v526 = vunpack.c.l.b16 %v295
      %v527 = vunpack.c.l.b16 %v296
      %v528 = vunpack.c.l.b16 %v297
      %v529 = vunpack.c.l.b16 %v298
      %v530 = vunpack.c.l.b16 %v299
      %v531 = vunpack.c.l.b16 %v300
      %v532 = vunpack.c.l.b16 %v301
      %v533 = vunpack.c.l.b16 %v302
      %v534 = vunpack.c.l.b16 %v303
      %v535 = vunpack.c.l.b16 %v304
      %v536 = vpack.c.b16 %v521, %v520
      %v537 = vpack.c.b16 %v523, %v522
      %v538 = vpack.c.b16 %v525, %v524
      %v539 = vpack.c.b16 %v527, %v526
      %v540 = vpack.c.b16 %v529, %v528
      %v541 = vpack.c.b16 %v531, %v530
      %v542 = vpack.c.b16 %v533, %v532
      %v543 = vpack.c.b16 %v535, %v534
      %552 = vmatprep.subr.bf16.mxu0 0
      %553 = vmatpush1.bf16.msra.mxu0 %v543
      %554 = vmatprep.subr.bf16.mxu0 0
      %555 = vmatpush1.bf16.msra.mxu0 %v542
      %556 = vmatprep.subr.bf16.mxu0 0
      %557 = vmatpush1.bf16.msra.mxu0 %v541
      %558 = vmatprep.subr.bf16.mxu0 0
      %559 = vmatpush1.bf16.msra.mxu0 %v540
      %560 = vmatprep.subr.bf16.mxu0 0
      %561 = vmatpush1.bf16.msra.mxu0 %v539
      %562 = vmatprep.subr.bf16.mxu0 0
      %563 = vmatpush1.bf16.msra.mxu0 %v538
      %564 = vmatprep.subr.bf16.mxu0 0
      %565 = vmatpush1.bf16.msra.mxu0 %v537
      %566 = vmatprep.subr.bf16.mxu0 0
      %567 = vmatpush1.bf16.msra.mxu0 %v536
      %568 = vmatprep.subr.bf16.mxu0 0
      %569 = vmatpush2.bf16.msra.mxu0 0
      %570 = vmatprep.subr.bf16.mxu0 0
      %571 = vmatpush2.bf16.msra.mxu0 0
      %572 = vmatprep.subr.bf16.mxu0 0
      %573 = vmatpush2.bf16.msra.mxu0 0
      %574 = vmatprep.subr.bf16.mxu0 0
      %575 = vmatpush2.bf16.msra.mxu0 0
      %576 = vmatprep.subr.bf16.mxu0 0
      %577 = vmatpush2.bf16.msra.mxu0 0
      %578 = vmatprep.subr.bf16.mxu0 0
      %579 = vmatpush2.bf16.msra.mxu0 0
      %580 = vmatprep.subr.bf16.mxu0 0
      %581 = vmatpush2.bf16.msra.mxu0 0
      %582 = vmatprep.subr.bf16.mxu0 0
      %583 = vmatpush2.bf16.msra.mxu0 0
      %584 = vmatprep.mubr.bf16.mxu0 0
      %585 = vmatmul.mubr.bf16.gmra.mxu0 %v285
      %v586 = vpop.f32.mrf.mxu0
      %v587 = vadd.f32 %v474, %v586
      %v588 = vpop.f32.mrf.mxu0
      %v589 = vpop.f32.mrf.mxu0
      %v590 = vadd.f32 %v477, %v589
      %v591 = vpop.f32.mrf.mxu0
      %592 = vmatprep.mubr.bf16.mxu0 0
      %593 = vmatmul.mubr.bf16.gmra.mxu0 %v286
      %v594 = vpop.f32.mrf.mxu0
      %v595 = vadd.f32 %v482, %v594
      %v596 = vpop.f32.mrf.mxu0
      %v597 = vpop.f32.mrf.mxu0
      %v598 = vadd.f32 %v485, %v597
      %v599 = vpop.f32.mrf.mxu0
      %600 = vmatprep.mubr.bf16.mxu0 0
      %601 = vmatmul.mubr.bf16.gmra.mxu0 %v287
      %v602 = vpop.f32.mrf.mxu0
      %v603 = vadd.f32 %v490, %v602
      %v604 = vpop.f32.mrf.mxu0
      %v605 = vpop.f32.mrf.mxu0
      %v606 = vadd.f32 %v493, %v605
      %v607 = vpop.f32.mrf.mxu0
      %608 = vmatprep.mubr.bf16.mxu0 0
      %609 = vmatmul.mubr.bf16.gmra.mxu0 %v288
      %v610 = vpop.f32.mrf.mxu0
      %v611 = vadd.f32 %v498, %v610
      %v612 = vpop.f32.mrf.mxu0
      %v613 = vpop.f32.mrf.mxu0
      %v614 = vadd.f32 %v501, %v613
      %v615 = vpop.f32.mrf.mxu0
      %616 = vdwg.mxu0
      %v617 = vld [vmem:[%s243] sm:$0xe]
      %v618 = vld [vmem:[%s243 + $0x8] sm:$0xe]
      %v619 = vld [vmem:[%s243 + $0x10] sm:$0xe]
      %v620 = vld [vmem:[%s243 + $0x18] sm:$0xe]
      %v621 = vld [vmem:[%s243 + $0x20] sm:$0xe]
      %v622 = vld [vmem:[%s243 + $0x28] sm:$0xe]
      %v623 = vld [vmem:[%s243 + $0x30] sm:$0xe]
      %v624 = vld [vmem:[%s243 + $0x38] sm:$0xe]
      %v625 = vunpack.c.l.bf16 %v617
      %v626 = vunpack.c.l.bf16 %v618
      %v627 = vunpack.c.l.bf16 %v619
      %v628 = vunpack.c.l.bf16 %v620
      %v629 = vunpack.c.l.bf16 %v621
      %v630 = vunpack.c.l.bf16 %v622
      %v631 = vunpack.c.l.bf16 %v623
      %v632 = vunpack.c.l.bf16 %v624
      %vm641 = vcmask 1045504
      %v642 = vrot.slane %v625, 2
      %v643 = vrot.slane %v313, 2
      %v644 = vsel %vm641, %v642, %v643
      %v645 = vrot.slane %v626, 2
      %v646 = vrot.slane %v314, 2
      %v647 = vsel %vm641, %v645, %v646
      %v648 = vrot.slane %v627, 2
      %v649 = vrot.slane %v315, 2
      %v650 = vsel %vm641, %v648, %v649
      %v651 = vrot.slane %v628, 2
      %v652 = vrot.slane %v316, 2
      %v653 = vsel %vm641, %v651, %v652
      %v654 = vrot.slane %v629, 2
      %v655 = vrot.slane %v317, 2
      %v656 = vsel %vm641, %v654, %v655
      %v657 = vrot.slane %v630, 2
      %v658 = vrot.slane %v318, 2
      %v659 = vsel %vm641, %v657, %v658
      %v660 = vrot.slane %v631, 2
      %v661 = vrot.slane %v319, 2
      %v662 = vsel %vm641, %v660, %v661
      %v663 = vrot.slane %v632, 2
      %v664 = vrot.slane %v320, 2
      %v665 = vsel %vm641, %v663, %v664
      %v674 = vpack.c.bf16 %v647, %v644
      %v675 = vpack.c.bf16 %v653, %v650
      %v676 = vpack.c.bf16 %v659, %v656
      %v677 = vpack.c.bf16 %v665, %v662
      %s678 = scalar_lea.vmem %s247, 128
      %v679 = vld [vmem:[%s678] sm:$0xf]
      %v680 = vld [vmem:[%s678 + $0x4] sm:$0xf]
      %v681 = vld [vmem:[%s678 + $0x8] sm:$0xf]
      %v682 = vld [vmem:[%s678 + $0xc] sm:$0xf]
      %v683 = vld [vmem:[%s678 + $0x10] sm:$0xf]
      %v684 = vld [vmem:[%s678 + $0x14] sm:$0xf]
      %v685 = vld [vmem:[%s678 + $0x18] sm:$0xf]
      %v686 = vld [vmem:[%s678 + $0x1c] sm:$0xf]
      %v687 = vld [vmem:[%s678 + $0x20] sm:$0xf]
      %v688 = vld [vmem:[%s678 + $0x24] sm:$0xf]
      %v689 = vld [vmem:[%s678 + $0x28] sm:$0xf]
      %v690 = vld [vmem:[%s678 + $0x2c] sm:$0xf]
      %v691 = vld [vmem:[%s678 + $0x30] sm:$0xf]
      %v692 = vld [vmem:[%s678 + $0x34] sm:$0xf]
      %v693 = vld [vmem:[%s678 + $0x38] sm:$0xf]
      %v694 = vld [vmem:[%s678 + $0x3c] sm:$0xf]
      %v711 = vunpack.c.l.b16 %v679
      %v712 = vunpack.c.l.b16 %v680
      %v713 = vunpack.c.l.b16 %v681
      %v714 = vunpack.c.l.b16 %v682
      %v715 = vunpack.c.l.b16 %v683
      %v716 = vunpack.c.l.b16 %v684
      %v717 = vunpack.c.l.b16 %v685
      %v718 = vunpack.c.l.b16 %v686
      %v719 = vunpack.c.l.b16 %v687
      %v720 = vunpack.c.l.b16 %v688
      %v721 = vunpack.c.l.b16 %v689
      %v722 = vunpack.c.l.b16 %v690
      %v723 = vunpack.c.l.b16 %v691
      %v724 = vunpack.c.l.b16 %v692
      %v725 = vunpack.c.l.b16 %v693
      %v726 = vunpack.c.l.b16 %v694
      %v727 = vpack.c.b16 %v712, %v711
      %v728 = vpack.c.b16 %v714, %v713
      %v729 = vpack.c.b16 %v716, %v715
      %v730 = vpack.c.b16 %v718, %v717
      %v731 = vpack.c.b16 %v720, %v719
      %v732 = vpack.c.b16 %v722, %v721
      %v733 = vpack.c.b16 %v724, %v723
      %v734 = vpack.c.b16 %v726, %v725
      %743 = vmatprep.subr.bf16.mxu0 0
      %744 = vmatpush1.bf16.msra.mxu0 %v734
      %745 = vmatprep.subr.bf16.mxu0 0
      %746 = vmatpush1.bf16.msra.mxu0 %v733
      %747 = vmatprep.subr.bf16.mxu0 0
      %748 = vmatpush1.bf16.msra.mxu0 %v732
      %749 = vmatprep.subr.bf16.mxu0 0
      %750 = vmatpush1.bf16.msra.mxu0 %v731
      %751 = vmatprep.subr.bf16.mxu0 0
      %752 = vmatpush1.bf16.msra.mxu0 %v730
      %753 = vmatprep.subr.bf16.mxu0 0
      %754 = vmatpush1.bf16.msra.mxu0 %v729
      %755 = vmatprep.subr.bf16.mxu0 0
      %756 = vmatpush1.bf16.msra.mxu0 %v728
      %757 = vmatprep.subr.bf16.mxu0 0
      %758 = vmatpush1.bf16.msra.mxu0 %v727
      %759 = vmatprep.subr.bf16.mxu0 0
      %760 = vmatpush2.bf16.msra.mxu0 0
      %761 = vmatprep.subr.bf16.mxu0 0
      %762 = vmatpush2.bf16.msra.mxu0 0
      %763 = vmatprep.subr.bf16.mxu0 0
      %764 = vmatpush2.bf16.msra.mxu0 0
      %765 = vmatprep.subr.bf16.mxu0 0
      %766 = vmatpush2.bf16.msra.mxu0 0
      %767 = vmatprep.subr.bf16.mxu0 0
      %768 = vmatpush2.bf16.msra.mxu0 0
      %769 = vmatprep.subr.bf16.mxu0 0
      %770 = vmatpush2.bf16.msra.mxu0 0
      %771 = vmatprep.subr.bf16.mxu0 0
      %772 = vmatpush2.bf16.msra.mxu0 0
      %773 = vmatprep.subr.bf16.mxu0 0
      %774 = vmatpush2.bf16.msra.mxu0 0
      %775 = vmatprep.mubr.bf16.mxu0 0
      %776 = vmatmul.mubr.bf16.gmra.mxu0 %v674
      %v777 = vpop.f32.mrf.mxu0
      %v778 = vadd.f32 0.0, %v777
      %v779 = vpop.f32.mrf.mxu0
      %v780 = vpop.f32.mrf.mxu0
      %v781 = vadd.f32 0.0, %v780
      %v782 = vpop.f32.mrf.mxu0
      %783 = vmatprep.mubr.bf16.mxu0 0
      %784 = vmatmul.mubr.bf16.gmra.mxu0 %v675
      %v785 = vpop.f32.mrf.mxu0
      %v786 = vadd.f32 0.0, %v785
      %v787 = vpop.f32.mrf.mxu0
      %v788 = vpop.f32.mrf.mxu0
      %v789 = vadd.f32 0.0, %v788
      %v790 = vpop.f32.mrf.mxu0
      %791 = vmatprep.mubr.bf16.mxu0 0
      %792 = vmatmul.mubr.bf16.gmra.mxu0 %v676
      %v793 = vpop.f32.mrf.mxu0
      %v794 = vadd.f32 0.0, %v793
      %v795 = vpop.f32.mrf.mxu0
      %v796 = vpop.f32.mrf.mxu0
      %v797 = vadd.f32 0.0, %v796
      %v798 = vpop.f32.mrf.mxu0
      %799 = vmatprep.mubr.bf16.mxu0 0
      %800 = vmatmul.mubr.bf16.gmra.mxu0 %v677
      %v801 = vpop.f32.mrf.mxu0
      %v802 = vadd.f32 0.0, %v801
      %v803 = vpop.f32.mrf.mxu0
      %v804 = vpop.f32.mrf.mxu0
      %v805 = vadd.f32 0.0, %v804
      %v806 = vpop.f32.mrf.mxu0
      %807 = vdwg.mxu0
      %v808 = vadd.f32 %v587, %v778
      %v809 = vadd.f32 %v590, %v781
      %v810 = vadd.f32 %v595, %v786
      %v811 = vadd.f32 %v598, %v789
      %v812 = vadd.f32 %v603, %v794
      %v813 = vadd.f32 %v606, %v797
      %v814 = vadd.f32 %v611, %v802
      %v815 = vadd.f32 %v614, %v805
      %s816 = scalar_lea.vmem %s243, 8
      %v817 = vld [vmem:[%s816] sm:$0xf]
      %v818 = vld [vmem:[%s816 + $0x8] sm:$0xf]
      %v819 = vld [vmem:[%s816 + $0x10] sm:$0xf]
      %v820 = vld [vmem:[%s816 + $0x18] sm:$0xf]
      %v821 = vld [vmem:[%s816 + $0x20] sm:$0xf]
      %v822 = vld [vmem:[%s816 + $0x28] sm:$0xf]
      %v823 = vld [vmem:[%s816 + $0x30] sm:$0xf]
      %v824 = vld [vmem:[%s816 + $0x38] sm:$0xf]
      %v825 = vunpack.c.l.bf16 %v817
      %v826 = vunpack.c.l.bf16 %v818
      %v827 = vunpack.c.l.bf16 %v819
      %v828 = vunpack.c.l.bf16 %v820
      %v829 = vunpack.c.l.bf16 %v821
      %v830 = vunpack.c.l.bf16 %v822
      %v831 = vunpack.c.l.bf16 %v823
      %v832 = vunpack.c.l.bf16 %v824
      %v833 = vpack.c.bf16 %v826, %v825
      %v834 = vpack.c.bf16 %v828, %v827
      %v835 = vpack.c.bf16 %v830, %v829
      %v836 = vpack.c.bf16 %v832, %v831
      %s837 = scalar_lea.vmem %s247, 192
      %v838 = vld [vmem:[%s837] sm:$0xf]
      %v839 = vld [vmem:[%s837 + $0x4] sm:$0xf]
      %v840 = vld [vmem:[%s837 + $0x8] sm:$0xf]
      %v841 = vld [vmem:[%s837 + $0xc] sm:$0xf]
      %v842 = vld [vmem:[%s837 + $0x10] sm:$0xf]
      %v843 = vld [vmem:[%s837 + $0x14] sm:$0xf]
      %v844 = vld [vmem:[%s837 + $0x18] sm:$0xf]
      %v845 = vld [vmem:[%s837 + $0x1c] sm:$0xf]
      %v846 = vld [vmem:[%s837 + $0x20] sm:$0xf]
      %v847 = vld [vmem:[%s837 + $0x24] sm:$0xf]
      %v848 = vld [vmem:[%s837 + $0x28] sm:$0xf]
      %v849 = vld [vmem:[%s837 + $0x2c] sm:$0xf]
      %v850 = vld [vmem:[%s837 + $0x30] sm:$0xf]
      %v851 = vld [vmem:[%s837 + $0x34] sm:$0xf]
      %v852 = vld [vmem:[%s837 + $0x38] sm:$0xf]
      %v853 = vld [vmem:[%s837 + $0x3c] sm:$0xf]
      %v870 = vunpack.c.l.b16 %v838
      %v871 = vunpack.c.l.b16 %v839
      %v872 = vunpack.c.l.b16 %v840
      %v873 = vunpack.c.l.b16 %v841
      %v874 = vunpack.c.l.b16 %v842
      %v875 = vunpack.c.l.b16 %v843
      %v876 = vunpack.c.l.b16 %v844
      %v877 = vunpack.c.l.b16 %v845
      %v878 = vunpack.c.l.b16 %v846
      %v879 = vunpack.c.l.b16 %v847
      %v880 = vunpack.c.l.b16 %v848
      %v881 = vunpack.c.l.b16 %v849
      %v882 = vunpack.c.l.b16 %v850
      %v883 = vunpack.c.l.b16 %v851
      %v884 = vunpack.c.l.b16 %v852
      %v885 = vunpack.c.l.b16 %v853
      %v886 = vpack.c.b16 %v871, %v870
      %v887 = vpack.c.b16 %v873, %v872
      %v888 = vpack.c.b16 %v875, %v874
      %v889 = vpack.c.b16 %v877, %v876
      %v890 = vpack.c.b16 %v879, %v878
      %v891 = vpack.c.b16 %v881, %v880
      %v892 = vpack.c.b16 %v883, %v882
      %v893 = vpack.c.b16 %v885, %v884
      %902 = vmatprep.subr.bf16.mxu0 0
      %903 = vmatpush1.bf16.msra.mxu0 %v893
      %904 = vmatprep.subr.bf16.mxu0 0
      %905 = vmatpush1.bf16.msra.mxu0 %v892
      %906 = vmatprep.subr.bf16.mxu0 0
      %907 = vmatpush1.bf16.msra.mxu0 %v891
      %908 = vmatprep.subr.bf16.mxu0 0
      %909 = vmatpush1.bf16.msra.mxu0 %v890
      %910 = vmatprep.subr.bf16.mxu0 0
      %911 = vmatpush1.bf16.msra.mxu0 %v889
      %912 = vmatprep.subr.bf16.mxu0 0
      %913 = vmatpush1.bf16.msra.mxu0 %v888
      %914 = vmatprep.subr.bf16.mxu0 0
      %915 = vmatpush1.bf16.msra.mxu0 %v887
      %916 = vmatprep.subr.bf16.mxu0 0
      %917 = vmatpush1.bf16.msra.mxu0 %v886
      %918 = vmatprep.subr.bf16.mxu0 0
      %919 = vmatpush2.bf16.msra.mxu0 0
      %920 = vmatprep.subr.bf16.mxu0 0
      %921 = vmatpush2.bf16.msra.mxu0 0
      %922 = vmatprep.subr.bf16.mxu0 0
      %923 = vmatpush2.bf16.msra.mxu0 0
      %924 = vmatprep.subr.bf16.mxu0 0
      %925 = vmatpush2.bf16.msra.mxu0 0
      %926 = vmatprep.subr.bf16.mxu0 0
      %927 = vmatpush2.bf16.msra.mxu0 0
      %928 = vmatprep.subr.bf16.mxu0 0
      %929 = vmatpush2.bf16.msra.mxu0 0
      %930 = vmatprep.subr.bf16.mxu0 0
      %931 = vmatpush2.bf16.msra.mxu0 0
      %932 = vmatprep.subr.bf16.mxu0 0
      %933 = vmatpush2.bf16.msra.mxu0 0
      %934 = vmatprep.mubr.bf16.mxu0 0
      %935 = vmatmul.mubr.bf16.gmra.mxu0 %v833
      %v936 = vpop.f32.mrf.mxu0
      %v937 = vadd.f32 0.0, %v936
      %v938 = vpop.f32.mrf.mxu0
      %v939 = vpop.f32.mrf.mxu0
      %v940 = vadd.f32 0.0, %v939
      %v941 = vpop.f32.mrf.mxu0
      %942 = vmatprep.mubr.bf16.mxu0 0
      %943 = vmatmul.mubr.bf16.gmra.mxu0 %v834
      %v944 = vpop.f32.mrf.mxu0
      %v945 = vadd.f32 0.0, %v944
      %v946 = vpop.f32.mrf.mxu0
      %v947 = vpop.f32.mrf.mxu0
      %v948 = vadd.f32 0.0, %v947
      %v949 = vpop.f32.mrf.mxu0
      %950 = vmatprep.mubr.bf16.mxu0 0
      %951 = vmatmul.mubr.bf16.gmra.mxu0 %v835
      %v952 = vpop.f32.mrf.mxu0
      %v953 = vadd.f32 0.0, %v952
      %v954 = vpop.f32.mrf.mxu0
      %v955 = vpop.f32.mrf.mxu0
      %v956 = vadd.f32 0.0, %v955
      %v957 = vpop.f32.mrf.mxu0
      %958 = vmatprep.mubr.bf16.mxu0 0
      %959 = vmatmul.mubr.bf16.gmra.mxu0 %v836
      %v960 = vpop.f32.mrf.mxu0
      %v961 = vadd.f32 0.0, %v960
      %v962 = vpop.f32.mrf.mxu0
      %v963 = vpop.f32.mrf.mxu0
      %v964 = vadd.f32 0.0, %v963
      %v965 = vpop.f32.mrf.mxu0
      %966 = vdwg.mxu0
      %v967 = vadd.f32 %v808, %v937
      %v968 = vadd.f32 %v809, %v940
      %v969 = vadd.f32 %v810, %v945
      %v970 = vadd.f32 %v811, %v948
      %v971 = vadd.f32 %v812, %v953
      %v972 = vadd.f32 %v813, %v956
      %v973 = vadd.f32 %v814, %v961
      %v974 = vadd.f32 %v815, %v964
      %v975 = vld [vmem:[%s816] sm:$0xf]
      %v976 = vld [vmem:[%s816 + $0x4] sm:$0x1]
      %v977 = vld [vmem:[%s816 + $0x8] sm:$0xf]
      %v978 = vld [vmem:[%s816 + $0xc] sm:$0x1]
      %v979 = vld [vmem:[%s816 + $0x10] sm:$0xf]
      %v980 = vld [vmem:[%s816 + $0x14] sm:$0x1]
      %v981 = vld [vmem:[%s816 + $0x18] sm:$0xf]
      %v982 = vld [vmem:[%s816 + $0x1c] sm:$0x1]
      %v983 = vld [vmem:[%s816 + $0x20] sm:$0xf]
      %v984 = vld [vmem:[%s816 + $0x24] sm:$0x1]
      %v985 = vld [vmem:[%s816 + $0x28] sm:$0xf]
      %v986 = vld [vmem:[%s816 + $0x2c] sm:$0x1]
      %v987 = vld [vmem:[%s816 + $0x30] sm:$0xf]
      %v988 = vld [vmem:[%s816 + $0x34] sm:$0x1]
      %v989 = vld [vmem:[%s816 + $0x38] sm:$0xf]
      %v990 = vld [vmem:[%s816 + $0x3c] sm:$0x1]
      %v991 = vunpack.c.l.bf16 %v975
      %v992 = vunpack.c.l.bf16 %v976
      %v993 = vunpack.c.l.bf16 %v977
      %v994 = vunpack.c.l.bf16 %v978
      %v995 = vunpack.c.l.bf16 %v979
      %v996 = vunpack.c.l.bf16 %v980
      %v997 = vunpack.c.l.bf16 %v981
      %v998 = vunpack.c.l.bf16 %v982
      %v999 = vunpack.c.l.bf16 %v983
      %v1000 = vunpack.c.l.bf16 %v984
      %v1001 = vunpack.c.l.bf16 %v985
      %v1002 = vunpack.c.l.bf16 %v986
      %v1003 = vunpack.c.l.bf16 %v987
      %v1004 = vunpack.c.l.bf16 %v988
      %v1005 = vunpack.c.l.bf16 %v989
      %v1006 = vunpack.c.l.bf16 %v990
      %v1023 = vrot.slane %v991, 1
      %v1024 = vrot.slane %v992, 1
      %v1025 = vsel %vm337, %v1023, %v1024
      %v1026 = vrot.slane %v993, 1
      %v1027 = vrot.slane %v994, 1
      %v1028 = vsel %vm337, %v1026, %v1027
      %v1029 = vrot.slane %v995, 1
      %v1030 = vrot.slane %v996, 1
      %v1031 = vsel %vm337, %v1029, %v1030
      %v1032 = vrot.slane %v997, 1
      %v1033 = vrot.slane %v998, 1
      %v1034 = vsel %vm337, %v1032, %v1033
      %v1035 = vrot.slane %v999, 1
      %v1036 = vrot.slane %v1000, 1
      %v1037 = vsel %vm337, %v1035, %v1036
      %v1038 = vrot.slane %v1001, 1
      %v1039 = vrot.slane %v1002, 1
      %v1040 = vsel %vm337, %v1038, %v1039
      %v1041 = vrot.slane %v1003, 1
      %v1042 = vrot.slane %v1004, 1
      %v1043 = vsel %vm337, %v1041, %v1042
      %v1044 = vrot.slane %v1005, 1
      %v1045 = vrot.slane %v1006, 1
      %v1046 = vsel %vm337, %v1044, %v1045
      %v1055 = vpack.c.bf16 %v1028, %v1025
      %v1056 = vpack.c.bf16 %v1034, %v1031
      %v1057 = vpack.c.bf16 %v1040, %v1037
      %v1058 = vpack.c.bf16 %v1046, %v1043
      %s1059 = scalar_lea.vmem %s247, 256
      %v1060 = vld [vmem:[%s1059] sm:$0xf]
      %v1061 = vld [vmem:[%s1059 + $0x4] sm:$0xf]
      %v1062 = vld [vmem:[%s1059 + $0x8] sm:$0xf]
      %v1063 = vld [vmem:[%s1059 + $0xc] sm:$0xf]
      %v1064 = vld [vmem:[%s1059 + $0x10] sm:$0xf]
      %v1065 = vld [vmem:[%s1059 + $0x14] sm:$0xf]
      %v1066 = vld [vmem:[%s1059 + $0x18] sm:$0xf]
      %v1067 = vld [vmem:[%s1059 + $0x1c] sm:$0xf]
      %v1068 = vld [vmem:[%s1059 + $0x20] sm:$0xf]
      %v1069 = vld [vmem:[%s1059 + $0x24] sm:$0xf]
      %v1070 = vld [vmem:[%s1059 + $0x28] sm:$0xf]
      %v1071 = vld [vmem:[%s1059 + $0x2c] sm:$0xf]
      %v1072 = vld [vmem:[%s1059 + $0x30] sm:$0xf]
      %v1073 = vld [vmem:[%s1059 + $0x34] sm:$0xf]
      %v1074 = vld [vmem:[%s1059 + $0x38] sm:$0xf]
      %v1075 = vld [vmem:[%s1059 + $0x3c] sm:$0xf]
      %v1092 = vunpack.c.l.b16 %v1060
      %v1093 = vunpack.c.l.b16 %v1061
      %v1094 = vunpack.c.l.b16 %v1062
      %v1095 = vunpack.c.l.b16 %v1063
      %v1096 = vunpack.c.l.b16 %v1064
      %v1097 = vunpack.c.l.b16 %v1065
      %v1098 = vunpack.c.l.b16 %v1066
      %v1099 = vunpack.c.l.b16 %v1067
      %v1100 = vunpack.c.l.b16 %v1068
      %v1101 = vunpack.c.l.b16 %v1069
      %v1102 = vunpack.c.l.b16 %v1070
      %v1103 = vunpack.c.l.b16 %v1071
      %v1104 = vunpack.c.l.b16 %v1072
      %v1105 = vunpack.c.l.b16 %v1073
      %v1106 = vunpack.c.l.b16 %v1074
      %v1107 = vunpack.c.l.b16 %v1075
      %v1108 = vpack.c.b16 %v1093, %v1092
      %v1109 = vpack.c.b16 %v1095, %v1094
      %v1110 = vpack.c.b16 %v1097, %v1096
      %v1111 = vpack.c.b16 %v1099, %v1098
      %v1112 = vpack.c.b16 %v1101, %v1100
      %v1113 = vpack.c.b16 %v1103, %v1102
      %v1114 = vpack.c.b16 %v1105, %v1104
      %v1115 = vpack.c.b16 %v1107, %v1106
      %1124 = vmatprep.subr.bf16.mxu0 0
      %1125 = vmatpush1.bf16.msra.mxu0 %v1115
      %1126 = vmatprep.subr.bf16.mxu0 0
      %1127 = vmatpush1.bf16.msra.mxu0 %v1114
      %1128 = vmatprep.subr.bf16.mxu0 0
      %1129 = vmatpush1.bf16.msra.mxu0 %v1113
      %1130 = vmatprep.subr.bf16.mxu0 0
      %1131 = vmatpush1.bf16.msra.mxu0 %v1112
      %1132 = vmatprep.subr.bf16.mxu0 0
      %1133 = vmatpush1.bf16.msra.mxu0 %v1111
      %1134 = vmatprep.subr.bf16.mxu0 0
      %1135 = vmatpush1.bf16.msra.mxu0 %v1110
      %1136 = vmatprep.subr.bf16.mxu0 0
      %1137 = vmatpush1.bf16.msra.mxu0 %v1109
      %1138 = vmatprep.subr.bf16.mxu0 0
      %1139 = vmatpush1.bf16.msra.mxu0 %v1108
      %1140 = vmatprep.subr.bf16.mxu0 0
      %1141 = vmatpush2.bf16.msra.mxu0 0
      %1142 = vmatprep.subr.bf16.mxu0 0
      %1143 = vmatpush2.bf16.msra.mxu0 0
      %1144 = vmatprep.subr.bf16.mxu0 0
      %1145 = vmatpush2.bf16.msra.mxu0 0
      %1146 = vmatprep.subr.bf16.mxu0 0
      %1147 = vmatpush2.bf16.msra.mxu0 0
      %1148 = vmatprep.subr.bf16.mxu0 0
      %1149 = vmatpush2.bf16.msra.mxu0 0
      %1150 = vmatprep.subr.bf16.mxu0 0
      %1151 = vmatpush2.bf16.msra.mxu0 0
      %1152 = vmatprep.subr.bf16.mxu0 0
      %1153 = vmatpush2.bf16.msra.mxu0 0
      %1154 = vmatprep.subr.bf16.mxu0 0
      %1155 = vmatpush2.bf16.msra.mxu0 0
      %1156 = vmatprep.mubr.bf16.mxu0 0
      %1157 = vmatmul.mubr.bf16.gmra.mxu0 %v1055
      %v1158 = vpop.f32.mrf.mxu0
      %v1159 = vadd.f32 0.0, %v1158
      %v1160 = vpop.f32.mrf.mxu0
      %v1161 = vpop.f32.mrf.mxu0
      %v1162 = vadd.f32 0.0, %v1161
      %v1163 = vpop.f32.mrf.mxu0
      %1164 = vmatprep.mubr.bf16.mxu0 0
      %1165 = vmatmul.mubr.bf16.gmra.mxu0 %v1056
      %v1166 = vpop.f32.mrf.mxu0
      %v1167 = vadd.f32 0.0, %v1166
      %v1168 = vpop.f32.mrf.mxu0
      %v1169 = vpop.f32.mrf.mxu0
      %v1170 = vadd.f32 0.0, %v1169
      %v1171 = vpop.f32.mrf.mxu0
      %1172 = vmatprep.mubr.bf16.mxu0 0
      %1173 = vmatmul.mubr.bf16.gmra.mxu0 %v1057
      %v1174 = vpop.f32.mrf.mxu0
      %v1175 = vadd.f32 0.0, %v1174
      %v1176 = vpop.f32.mrf.mxu0
      %v1177 = vpop.f32.mrf.mxu0
      %v1178 = vadd.f32 0.0, %v1177
      %v1179 = vpop.f32.mrf.mxu0
      %1180 = vmatprep.mubr.bf16.mxu0 0
      %1181 = vmatmul.mubr.bf16.gmra.mxu0 %v1058
      %v1182 = vpop.f32.mrf.mxu0
      %v1183 = vadd.f32 0.0, %v1182
      %v1184 = vpop.f32.mrf.mxu0
      %v1185 = vpop.f32.mrf.mxu0
      %v1186 = vadd.f32 0.0, %v1185
      %v1187 = vpop.f32.mrf.mxu0
      %1188 = vdwg.mxu0
      %v1189 = vadd.f32 %v967, %v1159
      %v1190 = vadd.f32 %v968, %v1162
      %v1191 = vadd.f32 %v969, %v1167
      %v1192 = vadd.f32 %v970, %v1170
      %v1193 = vadd.f32 %v971, %v1175
      %v1194 = vadd.f32 %v972, %v1178
      %v1195 = vadd.f32 %v973, %v1183
      %v1196 = vadd.f32 %v974, %v1186
      %v1197 = vld [vmem:[%s816] sm:$0xe]
      %v1198 = vld [vmem:[%s816 + $0x8] sm:$0xe]
      %v1199 = vld [vmem:[%s816 + $0x10] sm:$0xe]
      %v1200 = vld [vmem:[%s816 + $0x18] sm:$0xe]
      %v1201 = vld [vmem:[%s816 + $0x20] sm:$0xe]
      %v1202 = vld [vmem:[%s816 + $0x28] sm:$0xe]
      %v1203 = vld [vmem:[%s816 + $0x30] sm:$0xe]
      %v1204 = vld [vmem:[%s816 + $0x38] sm:$0xe]
      %v1205 = vunpack.c.l.bf16 %v1197
      %v1206 = vunpack.c.l.bf16 %v1198
      %v1207 = vunpack.c.l.bf16 %v1199
      %v1208 = vunpack.c.l.bf16 %v1200
      %v1209 = vunpack.c.l.bf16 %v1201
      %v1210 = vunpack.c.l.bf16 %v1202
      %v1211 = vunpack.c.l.bf16 %v1203
      %v1212 = vunpack.c.l.bf16 %v1204
      %v1221 = vrot.slane %v1205, 2
      %v1222 = vrot.slane %v992, 2
      %v1223 = vsel %vm641, %v1221, %v1222
      %v1224 = vrot.slane %v1206, 2
      %v1225 = vrot.slane %v994, 2
      %v1226 = vsel %vm641, %v1224, %v1225
      %v1227 = vrot.slane %v1207, 2
      %v1228 = vrot.slane %v996, 2
      %v1229 = vsel %vm641, %v1227, %v1228
      %v1230 = vrot.slane %v1208, 2
      %v1231 = vrot.slane %v998, 2
      %v1232 = vsel %vm641, %v1230, %v1231
      %v1233 = vrot.slane %v1209, 2
      %v1234 = vrot.slane %v1000, 2
      %v1235 = vsel %vm641, %v1233, %v1234
      %v1236 = vrot.slane %v1210, 2
      %v1237 = vrot.slane %v1002, 2
      %v1238 = vsel %vm641, %v1236, %v1237
      %v1239 = vrot.slane %v1211, 2
      %v1240 = vrot.slane %v1004, 2
      %v1241 = vsel %vm641, %v1239, %v1240
      %v1242 = vrot.slane %v1212, 2
      %v1243 = vrot.slane %v1006, 2
      %v1244 = vsel %vm641, %v1242, %v1243
      %v1253 = vpack.c.bf16 %v1226, %v1223
      %v1254 = vpack.c.bf16 %v1232, %v1229
      %v1255 = vpack.c.bf16 %v1238, %v1235
      %v1256 = vpack.c.bf16 %v1244, %v1241
      %s1257 = scalar_lea.vmem %s247, 320
      %v1258 = vld [vmem:[%s1257] sm:$0xf]
      %v1259 = vld [vmem:[%s1257 + $0x4] sm:$0xf]
      %v1260 = vld [vmem:[%s1257 + $0x8] sm:$0xf]
      %v1261 = vld [vmem:[%s1257 + $0xc] sm:$0xf]
      %v1262 = vld [vmem:[%s1257 + $0x10] sm:$0xf]
      %v1263 = vld [vmem:[%s1257 + $0x14] sm:$0xf]
      %v1264 = vld [vmem:[%s1257 + $0x18] sm:$0xf]
      %v1265 = vld [vmem:[%s1257 + $0x1c] sm:$0xf]
      %v1266 = vld [vmem:[%s1257 + $0x20] sm:$0xf]
      %v1267 = vld [vmem:[%s1257 + $0x24] sm:$0xf]
      %v1268 = vld [vmem:[%s1257 + $0x28] sm:$0xf]
      %v1269 = vld [vmem:[%s1257 + $0x2c] sm:$0xf]
      %v1270 = vld [vmem:[%s1257 + $0x30] sm:$0xf]
      %v1271 = vld [vmem:[%s1257 + $0x34] sm:$0xf]
      %v1272 = vld [vmem:[%s1257 + $0x38] sm:$0xf]
      %v1273 = vld [vmem:[%s1257 + $0x3c] sm:$0xf]
      %v1290 = vunpack.c.l.b16 %v1258
      %v1291 = vunpack.c.l.b16 %v1259
      %v1292 = vunpack.c.l.b16 %v1260
      %v1293 = vunpack.c.l.b16 %v1261
      %v1294 = vunpack.c.l.b16 %v1262
      %v1295 = vunpack.c.l.b16 %v1263
      %v1296 = vunpack.c.l.b16 %v1264
      %v1297 = vunpack.c.l.b16 %v1265
      %v1298 = vunpack.c.l.b16 %v1266
      %v1299 = vunpack.c.l.b16 %v1267
      %v1300 = vunpack.c.l.b16 %v1268
      %v1301 = vunpack.c.l.b16 %v1269
      %v1302 = vunpack.c.l.b16 %v1270
      %v1303 = vunpack.c.l.b16 %v1271
      %v1304 = vunpack.c.l.b16 %v1272
      %v1305 = vunpack.c.l.b16 %v1273
      %v1306 = vpack.c.b16 %v1291, %v1290
      %v1307 = vpack.c.b16 %v1293, %v1292
      %v1308 = vpack.c.b16 %v1295, %v1294
      %v1309 = vpack.c.b16 %v1297, %v1296
      %v1310 = vpack.c.b16 %v1299, %v1298
      %v1311 = vpack.c.b16 %v1301, %v1300
      %v1312 = vpack.c.b16 %v1303, %v1302
      %v1313 = vpack.c.b16 %v1305, %v1304
      %1322 = vmatprep.subr.bf16.mxu0 0
      %1323 = vmatpush1.bf16.msra.mxu0 %v1313
      %1324 = vmatprep.subr.bf16.mxu0 0
      %1325 = vmatpush1.bf16.msra.mxu0 %v1312
      %1326 = vmatprep.subr.bf16.mxu0 0
      %1327 = vmatpush1.bf16.msra.mxu0 %v1311
      %1328 = vmatprep.subr.bf16.mxu0 0
      %1329 = vmatpush1.bf16.msra.mxu0 %v1310
      %1330 = vmatprep.subr.bf16.mxu0 0
      %1331 = vmatpush1.bf16.msra.mxu0 %v1309
      %1332 = vmatprep.subr.bf16.mxu0 0
      %1333 = vmatpush1.bf16.msra.mxu0 %v1308
      %1334 = vmatprep.subr.bf16.mxu0 0
      %1335 = vmatpush1.bf16.msra.mxu0 %v1307
      %1336 = vmatprep.subr.bf16.mxu0 0
      %1337 = vmatpush1.bf16.msra.mxu0 %v1306
      %1338 = vmatprep.subr.bf16.mxu0 0
      %1339 = vmatpush2.bf16.msra.mxu0 0
      %1340 = vmatprep.subr.bf16.mxu0 0
      %1341 = vmatpush2.bf16.msra.mxu0 0
      %1342 = vmatprep.subr.bf16.mxu0 0
      %1343 = vmatpush2.bf16.msra.mxu0 0
      %1344 = vmatprep.subr.bf16.mxu0 0
      %1345 = vmatpush2.bf16.msra.mxu0 0
      %1346 = vmatprep.subr.bf16.mxu0 0
      %1347 = vmatpush2.bf16.msra.mxu0 0
      %1348 = vmatprep.subr.bf16.mxu0 0
      %1349 = vmatpush2.bf16.msra.mxu0 0
      %1350 = vmatprep.subr.bf16.mxu0 0
      %1351 = vmatpush2.bf16.msra.mxu0 0
      %1352 = vmatprep.subr.bf16.mxu0 0
      %1353 = vmatpush2.bf16.msra.mxu0 0
      %1354 = vmatprep.mubr.bf16.mxu0 0
      %1355 = vmatmul.mubr.bf16.gmra.mxu0 %v1253
      %v1356 = vpop.f32.mrf.mxu0
      %v1357 = vadd.f32 0.0, %v1356
      %v1358 = vpop.f32.mrf.mxu0
      %v1359 = vpop.f32.mrf.mxu0
      %v1360 = vadd.f32 0.0, %v1359
      %v1361 = vpop.f32.mrf.mxu0
      %1362 = vmatprep.mubr.bf16.mxu0 0
      %1363 = vmatmul.mubr.bf16.gmra.mxu0 %v1254
      %v1364 = vpop.f32.mrf.mxu0
      %v1365 = vadd.f32 0.0, %v1364
      %v1366 = vpop.f32.mrf.mxu0
      %v1367 = vpop.f32.mrf.mxu0
      %v1368 = vadd.f32 0.0, %v1367
      %v1369 = vpop.f32.mrf.mxu0
      %1370 = vmatprep.mubr.bf16.mxu0 0
      %1371 = vmatmul.mubr.bf16.gmra.mxu0 %v1255
      %v1372 = vpop.f32.mrf.mxu0
      %v1373 = vadd.f32 0.0, %v1372
      %v1374 = vpop.f32.mrf.mxu0
      %v1375 = vpop.f32.mrf.mxu0
      %v1376 = vadd.f32 0.0, %v1375
      %v1377 = vpop.f32.mrf.mxu0
      %1378 = vmatprep.mubr.bf16.mxu0 0
      %1379 = vmatmul.mubr.bf16.gmra.mxu0 %v1256
      %v1380 = vpop.f32.mrf.mxu0
      %v1381 = vadd.f32 0.0, %v1380
      %v1382 = vpop.f32.mrf.mxu0
      %v1383 = vpop.f32.mrf.mxu0
      %v1384 = vadd.f32 0.0, %v1383
      %v1385 = vpop.f32.mrf.mxu0
      %1386 = vdwg.mxu0
      %v1387 = vadd.f32 %v1189, %v1357
      %v1388 = vadd.f32 %v1190, %v1360
      %v1389 = vadd.f32 %v1191, %v1365
      %v1390 = vadd.f32 %v1192, %v1368
      %v1391 = vadd.f32 %v1193, %v1373
      %v1392 = vadd.f32 %v1194, %v1376
      %v1393 = vadd.f32 %v1195, %v1381
      %v1394 = vadd.f32 %v1196, %v1384
      %s1395 = scalar_lea.vmem %s243, 16
      %v1396 = vld [vmem:[%s1395] sm:$0xf]
      %v1397 = vld [vmem:[%s1395 + $0x8] sm:$0xf]
      %v1398 = vld [vmem:[%s1395 + $0x10] sm:$0xf]
      %v1399 = vld [vmem:[%s1395 + $0x18] sm:$0xf]
      %v1400 = vld [vmem:[%s1395 + $0x20] sm:$0xf]
      %v1401 = vld [vmem:[%s1395 + $0x28] sm:$0xf]
      %v1402 = vld [vmem:[%s1395 + $0x30] sm:$0xf]
      %v1403 = vld [vmem:[%s1395 + $0x38] sm:$0xf]
      %v1404 = vunpack.c.l.bf16 %v1396
      %v1405 = vunpack.c.l.bf16 %v1397
      %v1406 = vunpack.c.l.bf16 %v1398
      %v1407 = vunpack.c.l.bf16 %v1399
      %v1408 = vunpack.c.l.bf16 %v1400
      %v1409 = vunpack.c.l.bf16 %v1401
      %v1410 = vunpack.c.l.bf16 %v1402
      %v1411 = vunpack.c.l.bf16 %v1403
      %v1412 = vpack.c.bf16 %v1405, %v1404
      %v1413 = vpack.c.bf16 %v1407, %v1406
      %v1414 = vpack.c.bf16 %v1409, %v1408
      %v1415 = vpack.c.bf16 %v1411, %v1410
      %s1416 = scalar_lea.vmem %s247, 384
      %v1417 = vld [vmem:[%s1416] sm:$0xf]
      %v1418 = vld [vmem:[%s1416 + $0x4] sm:$0xf]
      %v1419 = vld [vmem:[%s1416 + $0x8] sm:$0xf]
      %v1420 = vld [vmem:[%s1416 + $0xc] sm:$0xf]
      %v1421 = vld [vmem:[%s1416 + $0x10] sm:$0xf]
      %v1422 = vld [vmem:[%s1416 + $0x14] sm:$0xf]
      %v1423 = vld [vmem:[%s1416 + $0x18] sm:$0xf]
      %v1424 = vld [vmem:[%s1416 + $0x1c] sm:$0xf]
      %v1425 = vld [vmem:[%s1416 + $0x20] sm:$0xf]
      %v1426 = vld [vmem:[%s1416 + $0x24] sm:$0xf]
      %v1427 = vld [vmem:[%s1416 + $0x28] sm:$0xf]
      %v1428 = vld [vmem:[%s1416 + $0x2c] sm:$0xf]
      %v1429 = vld [vmem:[%s1416 + $0x30] sm:$0xf]
      %v1430 = vld [vmem:[%s1416 + $0x34] sm:$0xf]
      %v1431 = vld [vmem:[%s1416 + $0x38] sm:$0xf]
      %v1432 = vld [vmem:[%s1416 + $0x3c] sm:$0xf]
      %v1449 = vunpack.c.l.b16 %v1417
      %v1450 = vunpack.c.l.b16 %v1418
      %v1451 = vunpack.c.l.b16 %v1419
      %v1452 = vunpack.c.l.b16 %v1420
      %v1453 = vunpack.c.l.b16 %v1421
      %v1454 = vunpack.c.l.b16 %v1422
      %v1455 = vunpack.c.l.b16 %v1423
      %v1456 = vunpack.c.l.b16 %v1424
      %v1457 = vunpack.c.l.b16 %v1425
      %v1458 = vunpack.c.l.b16 %v1426
      %v1459 = vunpack.c.l.b16 %v1427
      %v1460 = vunpack.c.l.b16 %v1428
      %v1461 = vunpack.c.l.b16 %v1429
      %v1462 = vunpack.c.l.b16 %v1430
      %v1463 = vunpack.c.l.b16 %v1431
      %v1464 = vunpack.c.l.b16 %v1432
      %v1465 = vpack.c.b16 %v1450, %v1449
      %v1466 = vpack.c.b16 %v1452, %v1451
      %v1467 = vpack.c.b16 %v1454, %v1453
      %v1468 = vpack.c.b16 %v1456, %v1455
      %v1469 = vpack.c.b16 %v1458, %v1457
      %v1470 = vpack.c.b16 %v1460, %v1459
      %v1471 = vpack.c.b16 %v1462, %v1461
      %v1472 = vpack.c.b16 %v1464, %v1463
      %1481 = vmatprep.subr.bf16.mxu0 0
      %1482 = vmatpush1.bf16.msra.mxu0 %v1472
      %1483 = vmatprep.subr.bf16.mxu0 0
      %1484 = vmatpush1.bf16.msra.mxu0 %v1471
      %1485 = vmatprep.subr.bf16.mxu0 0
      %1486 = vmatpush1.bf16.msra.mxu0 %v1470
      %1487 = vmatprep.subr.bf16.mxu0 0
      %1488 = vmatpush1.bf16.msra.mxu0 %v1469
      %1489 = vmatprep.subr.bf16.mxu0 0
      %1490 = vmatpush1.bf16.msra.mxu0 %v1468
      %1491 = vmatprep.subr.bf16.mxu0 0
      %1492 = vmatpush1.bf16.msra.mxu0 %v1467
      %1493 = vmatprep.subr.bf16.mxu0 0
      %1494 = vmatpush1.bf16.msra.mxu0 %v1466
      %1495 = vmatprep.subr.bf16.mxu0 0
      %1496 = vmatpush1.bf16.msra.mxu0 %v1465
      %1497 = vmatprep.subr.bf16.mxu0 0
      %1498 = vmatpush2.bf16.msra.mxu0 0
      %1499 = vmatprep.subr.bf16.mxu0 0
      %1500 = vmatpush2.bf16.msra.mxu0 0
      %1501 = vmatprep.subr.bf16.mxu0 0
      %1502 = vmatpush2.bf16.msra.mxu0 0
      %1503 = vmatprep.subr.bf16.mxu0 0
      %1504 = vmatpush2.bf16.msra.mxu0 0
      %1505 = vmatprep.subr.bf16.mxu0 0
      %1506 = vmatpush2.bf16.msra.mxu0 0
      %1507 = vmatprep.subr.bf16.mxu0 0
      %1508 = vmatpush2.bf16.msra.mxu0 0
      %1509 = vmatprep.subr.bf16.mxu0 0
      %1510 = vmatpush2.bf16.msra.mxu0 0
      %1511 = vmatprep.subr.bf16.mxu0 0
      %1512 = vmatpush2.bf16.msra.mxu0 0
      %1513 = vmatprep.mubr.bf16.mxu0 0
      %1514 = vmatmul.mubr.bf16.gmra.mxu0 %v1412
      %v1515 = vpop.f32.mrf.mxu0
      %v1516 = vadd.f32 0.0, %v1515
      %v1517 = vpop.f32.mrf.mxu0
      %v1518 = vpop.f32.mrf.mxu0
      %v1519 = vadd.f32 0.0, %v1518
      %v1520 = vpop.f32.mrf.mxu0
      %1521 = vmatprep.mubr.bf16.mxu0 0
      %1522 = vmatmul.mubr.bf16.gmra.mxu0 %v1413
      %v1523 = vpop.f32.mrf.mxu0
      %v1524 = vadd.f32 0.0, %v1523
      %v1525 = vpop.f32.mrf.mxu0
      %v1526 = vpop.f32.mrf.mxu0
      %v1527 = vadd.f32 0.0, %v1526
      %v1528 = vpop.f32.mrf.mxu0
      %1529 = vmatprep.mubr.bf16.mxu0 0
      %1530 = vmatmul.mubr.bf16.gmra.mxu0 %v1414
      %v1531 = vpop.f32.mrf.mxu0
      %v1532 = vadd.f32 0.0, %v1531
      %v1533 = vpop.f32.mrf.mxu0
      %v1534 = vpop.f32.mrf.mxu0
      %v1535 = vadd.f32 0.0, %v1534
      %v1536 = vpop.f32.mrf.mxu0
      %1537 = vmatprep.mubr.bf16.mxu0 0
      %1538 = vmatmul.mubr.bf16.gmra.mxu0 %v1415
      %v1539 = vpop.f32.mrf.mxu0
      %v1540 = vadd.f32 0.0, %v1539
      %v1541 = vpop.f32.mrf.mxu0
      %v1542 = vpop.f32.mrf.mxu0
      %v1543 = vadd.f32 0.0, %v1542
      %v1544 = vpop.f32.mrf.mxu0
      %1545 = vdwg.mxu0
      %v1546 = vadd.f32 %v1387, %v1516
      %v1547 = vadd.f32 %v1388, %v1519
      %v1548 = vadd.f32 %v1389, %v1524
      %v1549 = vadd.f32 %v1390, %v1527
      %v1550 = vadd.f32 %v1391, %v1532
      %v1551 = vadd.f32 %v1392, %v1535
      %v1552 = vadd.f32 %v1393, %v1540
      %v1553 = vadd.f32 %v1394, %v1543
      %v1554 = vld [vmem:[%s1395] sm:$0xf]
      %v1555 = vld [vmem:[%s1395 + $0x4] sm:$0x1]
      %v1556 = vld [vmem:[%s1395 + $0x8] sm:$0xf]
      %v1557 = vld [vmem:[%s1395 + $0xc] sm:$0x1]
      %v1558 = vld [vmem:[%s1395 + $0x10] sm:$0xf]
      %v1559 = vld [vmem:[%s1395 + $0x14] sm:$0x1]
      %v1560 = vld [vmem:[%s1395 + $0x18] sm:$0xf]
      %v1561 = vld [vmem:[%s1395 + $0x1c] sm:$0x1]
      %v1562 = vld [vmem:[%s1395 + $0x20] sm:$0xf]
      %v1563 = vld [vmem:[%s1395 + $0x24] sm:$0x1]
      %v1564 = vld [vmem:[%s1395 + $0x28] sm:$0xf]
      %v1565 = vld [vmem:[%s1395 + $0x2c] sm:$0x1]
      %v1566 = vld [vmem:[%s1395 + $0x30] sm:$0xf]
      %v1567 = vld [vmem:[%s1395 + $0x34] sm:$0x1]
      %v1568 = vld [vmem:[%s1395 + $0x38] sm:$0xf]
      %v1569 = vld [vmem:[%s1395 + $0x3c] sm:$0x1]
      %v1570 = vunpack.c.l.bf16 %v1554
      %v1571 = vunpack.c.l.bf16 %v1555
      %v1572 = vunpack.c.l.bf16 %v1556
      %v1573 = vunpack.c.l.bf16 %v1557
      %v1574 = vunpack.c.l.bf16 %v1558
      %v1575 = vunpack.c.l.bf16 %v1559
      %v1576 = vunpack.c.l.bf16 %v1560
      %v1577 = vunpack.c.l.bf16 %v1561
      %v1578 = vunpack.c.l.bf16 %v1562
      %v1579 = vunpack.c.l.bf16 %v1563
      %v1580 = vunpack.c.l.bf16 %v1564
      %v1581 = vunpack.c.l.bf16 %v1565
      %v1582 = vunpack.c.l.bf16 %v1566
      %v1583 = vunpack.c.l.bf16 %v1567
      %v1584 = vunpack.c.l.bf16 %v1568
      %v1585 = vunpack.c.l.bf16 %v1569
      %v1602 = vrot.slane %v1570, 1
      %v1603 = vrot.slane %v1571, 1
      %v1604 = vsel %vm337, %v1602, %v1603
      %v1605 = vrot.slane %v1572, 1
      %v1606 = vrot.slane %v1573, 1
      %v1607 = vsel %vm337, %v1605, %v1606
      %v1608 = vrot.slane %v1574, 1
      %v1609 = vrot.slane %v1575, 1
      %v1610 = vsel %vm337, %v1608, %v1609
      %v1611 = vrot.slane %v1576, 1
      %v1612 = vrot.slane %v1577, 1
      %v1613 = vsel %vm337, %v1611, %v1612
      %v1614 = vrot.slane %v1578, 1
      %v1615 = vrot.slane %v1579, 1
      %v1616 = vsel %vm337, %v1614, %v1615
      %v1617 = vrot.slane %v1580, 1
      %v1618 = vrot.slane %v1581, 1
      %v1619 = vsel %vm337, %v1617, %v1618
      %v1620 = vrot.slane %v1582, 1
      %v1621 = vrot.slane %v1583, 1
      %v1622 = vsel %vm337, %v1620, %v1621
      %v1623 = vrot.slane %v1584, 1
      %v1624 = vrot.slane %v1585, 1
      %v1625 = vsel %vm337, %v1623, %v1624
      %v1634 = vpack.c.bf16 %v1607, %v1604
      %v1635 = vpack.c.bf16 %v1613, %v1610
      %v1636 = vpack.c.bf16 %v1619, %v1616
      %v1637 = vpack.c.bf16 %v1625, %v1622
      %s1638 = scalar_lea.vmem %s247, 448
      %v1639 = vld [vmem:[%s1638] sm:$0xf]
      %v1640 = vld [vmem:[%s1638 + $0x4] sm:$0xf]
      %v1641 = vld [vmem:[%s1638 + $0x8] sm:$0xf]
      %v1642 = vld [vmem:[%s1638 + $0xc] sm:$0xf]
      %v1643 = vld [vmem:[%s1638 + $0x10] sm:$0xf]
      %v1644 = vld [vmem:[%s1638 + $0x14] sm:$0xf]
      %v1645 = vld [vmem:[%s1638 + $0x18] sm:$0xf]
      %v1646 = vld [vmem:[%s1638 + $0x1c] sm:$0xf]
      %v1647 = vld [vmem:[%s1638 + $0x20] sm:$0xf]
      %v1648 = vld [vmem:[%s1638 + $0x24] sm:$0xf]
      %v1649 = vld [vmem:[%s1638 + $0x28] sm:$0xf]
      %v1650 = vld [vmem:[%s1638 + $0x2c] sm:$0xf]
      %v1651 = vld [vmem:[%s1638 + $0x30] sm:$0xf]
      %v1652 = vld [vmem:[%s1638 + $0x34] sm:$0xf]
      %v1653 = vld [vmem:[%s1638 + $0x38] sm:$0xf]
      %v1654 = vld [vmem:[%s1638 + $0x3c] sm:$0xf]
      %v1671 = vunpack.c.l.b16 %v1639
      %v1672 = vunpack.c.l.b16 %v1640
      %v1673 = vunpack.c.l.b16 %v1641
      %v1674 = vunpack.c.l.b16 %v1642
      %v1675 = vunpack.c.l.b16 %v1643
      %v1676 = vunpack.c.l.b16 %v1644
      %v1677 = vunpack.c.l.b16 %v1645
      %v1678 = vunpack.c.l.b16 %v1646
      %v1679 = vunpack.c.l.b16 %v1647
      %v1680 = vunpack.c.l.b16 %v1648
      %v1681 = vunpack.c.l.b16 %v1649
      %v1682 = vunpack.c.l.b16 %v1650
      %v1683 = vunpack.c.l.b16 %v1651
      %v1684 = vunpack.c.l.b16 %v1652
      %v1685 = vunpack.c.l.b16 %v1653
      %v1686 = vunpack.c.l.b16 %v1654
      %v1687 = vpack.c.b16 %v1672, %v1671
      %v1688 = vpack.c.b16 %v1674, %v1673
      %v1689 = vpack.c.b16 %v1676, %v1675
      %v1690 = vpack.c.b16 %v1678, %v1677
      %v1691 = vpack.c.b16 %v1680, %v1679
      %v1692 = vpack.c.b16 %v1682, %v1681
      %v1693 = vpack.c.b16 %v1684, %v1683
      %v1694 = vpack.c.b16 %v1686, %v1685
      %1703 = vmatprep.subr.bf16.mxu0 0
      %1704 = vmatpush1.bf16.msra.mxu0 %v1694
      %1705 = vmatprep.subr.bf16.mxu0 0
      %1706 = vmatpush1.bf16.msra.mxu0 %v1693
      %1707 = vmatprep.subr.bf16.mxu0 0
      %1708 = vmatpush1.bf16.msra.mxu0 %v1692
      %1709 = vmatprep.subr.bf16.mxu0 0
      %1710 = vmatpush1.bf16.msra.mxu0 %v1691
      %1711 = vmatprep.subr.bf16.mxu0 0
      %1712 = vmatpush1.bf16.msra.mxu0 %v1690
      %1713 = vmatprep.subr.bf16.mxu0 0
      %1714 = vmatpush1.bf16.msra.mxu0 %v1689
      %1715 = vmatprep.subr.bf16.mxu0 0
      %1716 = vmatpush1.bf16.msra.mxu0 %v1688
      %1717 = vmatprep.subr.bf16.mxu0 0
      %1718 = vmatpush1.bf16.msra.mxu0 %v1687
      %1719 = vmatprep.subr.bf16.mxu0 0
      %1720 = vmatpush2.bf16.msra.mxu0 0
      %1721 = vmatprep.subr.bf16.mxu0 0
      %1722 = vmatpush2.bf16.msra.mxu0 0
      %1723 = vmatprep.subr.bf16.mxu0 0
      %1724 = vmatpush2.bf16.msra.mxu0 0
      %1725 = vmatprep.subr.bf16.mxu0 0
      %1726 = vmatpush2.bf16.msra.mxu0 0
      %1727 = vmatprep.subr.bf16.mxu0 0
      %1728 = vmatpush2.bf16.msra.mxu0 0
      %1729 = vmatprep.subr.bf16.mxu0 0
      %1730 = vmatpush2.bf16.msra.mxu0 0
      %1731 = vmatprep.subr.bf16.mxu0 0
      %1732 = vmatpush2.bf16.msra.mxu0 0
      %1733 = vmatprep.subr.bf16.mxu0 0
      %1734 = vmatpush2.bf16.msra.mxu0 0
      %1735 = vmatprep.mubr.bf16.mxu0 0
      %1736 = vmatmul.mubr.bf16.gmra.mxu0 %v1634
      %v1737 = vpop.f32.mrf.mxu0
      %v1738 = vadd.f32 0.0, %v1737
      %v1739 = vpop.f32.mrf.mxu0
      %v1740 = vpop.f32.mrf.mxu0
      %v1741 = vadd.f32 0.0, %v1740
      %v1742 = vpop.f32.mrf.mxu0
      %1743 = vmatprep.mubr.bf16.mxu0 0
      %1744 = vmatmul.mubr.bf16.gmra.mxu0 %v1635
      %v1745 = vpop.f32.mrf.mxu0
      %v1746 = vadd.f32 0.0, %v1745
      %v1747 = vpop.f32.mrf.mxu0
      %v1748 = vpop.f32.mrf.mxu0
      %v1749 = vadd.f32 0.0, %v1748
      %v1750 = vpop.f32.mrf.mxu0
      %1751 = vmatprep.mubr.bf16.mxu0 0
      %1752 = vmatmul.mubr.bf16.gmra.mxu0 %v1636
      %v1753 = vpop.f32.mrf.mxu0
      %v1754 = vadd.f32 0.0, %v1753
      %v1755 = vpop.f32.mrf.mxu0
      %v1756 = vpop.f32.mrf.mxu0
      %v1757 = vadd.f32 0.0, %v1756
      %v1758 = vpop.f32.mrf.mxu0
      %1759 = vmatprep.mubr.bf16.mxu0 0
      %1760 = vmatmul.mubr.bf16.gmra.mxu0 %v1637
      %v1761 = vpop.f32.mrf.mxu0
      %v1762 = vadd.f32 0.0, %v1761
      %v1763 = vpop.f32.mrf.mxu0
      %v1764 = vpop.f32.mrf.mxu0
      %v1765 = vadd.f32 0.0, %v1764
      %v1766 = vpop.f32.mrf.mxu0
      %1767 = vdwg.mxu0
      %v1768 = vadd.f32 %v1546, %v1738
      %v1769 = vadd.f32 %v1547, %v1741
      %v1770 = vadd.f32 %v1548, %v1746
      %v1771 = vadd.f32 %v1549, %v1749
      %v1772 = vadd.f32 %v1550, %v1754
      %v1773 = vadd.f32 %v1551, %v1757
      %v1774 = vadd.f32 %v1552, %v1762
      %v1775 = vadd.f32 %v1553, %v1765
      %v1776 = vld [vmem:[%s1395] sm:$0xe]
      %v1777 = vld [vmem:[%s1395 + $0x8] sm:$0xe]
      %v1778 = vld [vmem:[%s1395 + $0x10] sm:$0xe]
      %v1779 = vld [vmem:[%s1395 + $0x18] sm:$0xe]
      %v1780 = vld [vmem:[%s1395 + $0x20] sm:$0xe]
      %v1781 = vld [vmem:[%s1395 + $0x28] sm:$0xe]
      %v1782 = vld [vmem:[%s1395 + $0x30] sm:$0xe]
      %v1783 = vld [vmem:[%s1395 + $0x38] sm:$0xe]
      %v1784 = vunpack.c.l.bf16 %v1776
      %v1785 = vunpack.c.l.bf16 %v1777
      %v1786 = vunpack.c.l.bf16 %v1778
      %v1787 = vunpack.c.l.bf16 %v1779
      %v1788 = vunpack.c.l.bf16 %v1780
      %v1789 = vunpack.c.l.bf16 %v1781
      %v1790 = vunpack.c.l.bf16 %v1782
      %v1791 = vunpack.c.l.bf16 %v1783
      %v1800 = vrot.slane %v1784, 2
      %v1801 = vrot.slane %v1571, 2
      %v1802 = vsel %vm641, %v1800, %v1801
      %v1803 = vrot.slane %v1785, 2
      %v1804 = vrot.slane %v1573, 2
      %v1805 = vsel %vm641, %v1803, %v1804
      %v1806 = vrot.slane %v1786, 2
      %v1807 = vrot.slane %v1575, 2
      %v1808 = vsel %vm641, %v1806, %v1807
      %v1809 = vrot.slane %v1787, 2
      %v1810 = vrot.slane %v1577, 2
      %v1811 = vsel %vm641, %v1809, %v1810
      %v1812 = vrot.slane %v1788, 2
      %v1813 = vrot.slane %v1579, 2
      %v1814 = vsel %vm641, %v1812, %v1813
      %v1815 = vrot.slane %v1789, 2
      %v1816 = vrot.slane %v1581, 2
      %v1817 = vsel %vm641, %v1815, %v1816
      %v1818 = vrot.slane %v1790, 2
      %v1819 = vrot.slane %v1583, 2
      %v1820 = vsel %vm641, %v1818, %v1819
      %v1821 = vrot.slane %v1791, 2
      %v1822 = vrot.slane %v1585, 2
      %v1823 = vsel %vm641, %v1821, %v1822
      %v1832 = vpack.c.bf16 %v1805, %v1802
      %v1833 = vpack.c.bf16 %v1811, %v1808
      %v1834 = vpack.c.bf16 %v1817, %v1814
      %v1835 = vpack.c.bf16 %v1823, %v1820
      %s1836 = scalar_lea.vmem %s247, 512
      %v1837 = vld [vmem:[%s1836] sm:$0xf]
      %v1838 = vld [vmem:[%s1836 + $0x4] sm:$0xf]
      %v1839 = vld [vmem:[%s1836 + $0x8] sm:$0xf]
      %v1840 = vld [vmem:[%s1836 + $0xc] sm:$0xf]
      %v1841 = vld [vmem:[%s1836 + $0x10] sm:$0xf]
      %v1842 = vld [vmem:[%s1836 + $0x14] sm:$0xf]
      %v1843 = vld [vmem:[%s1836 + $0x18] sm:$0xf]
      %v1844 = vld [vmem:[%s1836 + $0x1c] sm:$0xf]
      %v1845 = vld [vmem:[%s1836 + $0x20] sm:$0xf]
      %v1846 = vld [vmem:[%s1836 + $0x24] sm:$0xf]
      %v1847 = vld [vmem:[%s1836 + $0x28] sm:$0xf]
      %v1848 = vld [vmem:[%s1836 + $0x2c] sm:$0xf]
      %v1849 = vld [vmem:[%s1836 + $0x30] sm:$0xf]
      %v1850 = vld [vmem:[%s1836 + $0x34] sm:$0xf]
      %v1851 = vld [vmem:[%s1836 + $0x38] sm:$0xf]
      %v1852 = vld [vmem:[%s1836 + $0x3c] sm:$0xf]
      %v1869 = vunpack.c.l.b16 %v1837
      %v1870 = vunpack.c.l.b16 %v1838
      %v1871 = vunpack.c.l.b16 %v1839
      %v1872 = vunpack.c.l.b16 %v1840
      %v1873 = vunpack.c.l.b16 %v1841
      %v1874 = vunpack.c.l.b16 %v1842
      %v1875 = vunpack.c.l.b16 %v1843
      %v1876 = vunpack.c.l.b16 %v1844
      %v1877 = vunpack.c.l.b16 %v1845
      %v1878 = vunpack.c.l.b16 %v1846
      %v1879 = vunpack.c.l.b16 %v1847
      %v1880 = vunpack.c.l.b16 %v1848
      %v1881 = vunpack.c.l.b16 %v1849
      %v1882 = vunpack.c.l.b16 %v1850
      %v1883 = vunpack.c.l.b16 %v1851
      %v1884 = vunpack.c.l.b16 %v1852
      %v1885 = vpack.c.b16 %v1870, %v1869
      %v1886 = vpack.c.b16 %v1872, %v1871
      %v1887 = vpack.c.b16 %v1874, %v1873
      %v1888 = vpack.c.b16 %v1876, %v1875
      %v1889 = vpack.c.b16 %v1878, %v1877
      %v1890 = vpack.c.b16 %v1880, %v1879
      %v1891 = vpack.c.b16 %v1882, %v1881
      %v1892 = vpack.c.b16 %v1884, %v1883
      %1901 = vmatprep.subr.bf16.mxu0 0
      %1902 = vmatpush1.bf16.msra.mxu0 %v1892
      %1903 = vmatprep.subr.bf16.mxu0 0
      %1904 = vmatpush1.bf16.msra.mxu0 %v1891
      %1905 = vmatprep.subr.bf16.mxu0 0
      %1906 = vmatpush1.bf16.msra.mxu0 %v1890
      %1907 = vmatprep.subr.bf16.mxu0 0
      %1908 = vmatpush1.bf16.msra.mxu0 %v1889
      %1909 = vmatprep.subr.bf16.mxu0 0
      %1910 = vmatpush1.bf16.msra.mxu0 %v1888
      %1911 = vmatprep.subr.bf16.mxu0 0
      %1912 = vmatpush1.bf16.msra.mxu0 %v1887
      %1913 = vmatprep.subr.bf16.mxu0 0
      %1914 = vmatpush1.bf16.msra.mxu0 %v1886
      %1915 = vmatprep.subr.bf16.mxu0 0
      %1916 = vmatpush1.bf16.msra.mxu0 %v1885
      %1917 = vmatprep.subr.bf16.mxu0 0
      %1918 = vmatpush2.bf16.msra.mxu0 0
      %1919 = vmatprep.subr.bf16.mxu0 0
      %1920 = vmatpush2.bf16.msra.mxu0 0
      %1921 = vmatprep.subr.bf16.mxu0 0
      %1922 = vmatpush2.bf16.msra.mxu0 0
      %1923 = vmatprep.subr.bf16.mxu0 0
      %1924 = vmatpush2.bf16.msra.mxu0 0
      %1925 = vmatprep.subr.bf16.mxu0 0
      %1926 = vmatpush2.bf16.msra.mxu0 0
      %1927 = vmatprep.subr.bf16.mxu0 0
      %1928 = vmatpush2.bf16.msra.mxu0 0
      %1929 = vmatprep.subr.bf16.mxu0 0
      %1930 = vmatpush2.bf16.msra.mxu0 0
      %1931 = vmatprep.subr.bf16.mxu0 0
      %1932 = vmatpush2.bf16.msra.mxu0 0
      %1933 = vmatprep.mubr.bf16.mxu0 0
      %1934 = vmatmul.mubr.bf16.gmra.mxu0 %v1832
      %v1935 = vpop.f32.mrf.mxu0
      %v1936 = vadd.f32 0.0, %v1935
      %v1937 = vpop.f32.mrf.mxu0
      %v1938 = vpop.f32.mrf.mxu0
      %v1939 = vadd.f32 0.0, %v1938
      %v1940 = vpop.f32.mrf.mxu0
      %1941 = vmatprep.mubr.bf16.mxu0 0
      %1942 = vmatmul.mubr.bf16.gmra.mxu0 %v1833
      %v1943 = vpop.f32.mrf.mxu0
      %v1944 = vadd.f32 0.0, %v1943
      %v1945 = vpop.f32.mrf.mxu0
      %v1946 = vpop.f32.mrf.mxu0
      %v1947 = vadd.f32 0.0, %v1946
      %v1948 = vpop.f32.mrf.mxu0
      %1949 = vmatprep.mubr.bf16.mxu0 0
      %1950 = vmatmul.mubr.bf16.gmra.mxu0 %v1834
      %v1951 = vpop.f32.mrf.mxu0
      %v1952 = vadd.f32 0.0, %v1951
      %v1953 = vpop.f32.mrf.mxu0
      %v1954 = vpop.f32.mrf.mxu0
      %v1955 = vadd.f32 0.0, %v1954
      %v1956 = vpop.f32.mrf.mxu0
      %1957 = vmatprep.mubr.bf16.mxu0 0
      %1958 = vmatmul.mubr.bf16.gmra.mxu0 %v1835
      %v1959 = vpop.f32.mrf.mxu0
      %v1960 = vadd.f32 0.0, %v1959
      %v1961 = vpop.f32.mrf.mxu0
      %v1962 = vpop.f32.mrf.mxu0
      %v1963 = vadd.f32 0.0, %v1962
      %v1964 = vpop.f32.mrf.mxu0
      %1965 = vdwg.mxu0
      %v1966 = vadd.f32 %v1768, %v1936
      %v1967 = vadd.f32 %v1769, %v1939
      %v1968 = vadd.f32 %v1770, %v1944
      %v1969 = vadd.f32 %v1771, %v1947
      %v1970 = vadd.f32 %v1772, %v1952
      %v1971 = vadd.f32 %v1773, %v1955
      %v1972 = vadd.f32 %v1774, %v1960
      %v1973 = vadd.f32 %v1775, %v1963
      %v1974 = vpack.c.bf16 %v1967, %v1966
      %v1975 = vpack.c.bf16 %v1969, %v1968
      %v1976 = vpack.c.bf16 %v1971, %v1970
      %v1977 = vpack.c.bf16 %v1973, %v1972
      %v1982 = vunpack.c.l.b16 %v1974
      %v1983 = vunpack.c.h.b16 %v1974
      %v1984 = vunpack.c.l.b16 %v1975
      %v1985 = vunpack.c.h.b16 %v1975
      %v1986 = vunpack.c.l.b16 %v1976
      %v1987 = vunpack.c.h.b16 %v1976
      %v1988 = vunpack.c.l.b16 %v1977
      %v1989 = vunpack.c.h.b16 %v1977
      %v1990 = vpack.c.b16 %v1982, %v1982
      %v1991 = vpack.c.b16 %v1983, %v1983
      %v1992 = vpack.c.b16 %v1984, %v1984
      %v1993 = vpack.c.b16 %v1985, %v1985
      %v1994 = vpack.c.b16 %v1986, %v1986
      %v1995 = vpack.c.b16 %v1987, %v1987
      %v1996 = vpack.c.b16 %v1988, %v1988
      %v1997 = vpack.c.b16 %v1989, %v1989
      %2006 = vst [vmem:[%s255] sm:$0xf] %v1990
      %2007 = vst [vmem:[%s255 + $0x4] sm:$0xf] %v1991
      %2008 = vst [vmem:[%s255 + $0x8] sm:$0xf] %v1992
      %2009 = vst [vmem:[%s255 + $0xc] sm:$0xf] %v1993
      %2010 = vst [vmem:[%s255 + $0x10] sm:$0xf] %v1994
      %2011 = vst [vmem:[%s255 + $0x14] sm:$0xf] %v1995
      %2012 = vst [vmem:[%s255 + $0x18] sm:$0xf] %v1996
      %2013 = vst [vmem:[%s255 + $0x1c] sm:$0xf] %v1997
      %v2014 = vadd.f32 %v1966, %v1967
      %v2015 = vadd.f32 %v2014, %v1968
      %v2016 = vadd.f32 %v2015, %v1969
      %v2017 = vadd.f32 %v2016, %v1970
      %v2018 = vadd.f32 %v2017, %v1971
      %v2019 = vadd.f32 %v2018, %v1972
      %v2020 = vadd.f32 %v2019, %v1973
      %v2021 = vrot.slane %v2020, 4
      %v2022 = vadd.f32 %v2020, %v2021
      %v2023 = vrot.slane %v2022, 2
      %v2024 = vadd.f32 %v2022, %v2023
      %v2025 = vrot.slane %v2024, 1
      %v2026 = vadd.f32 %v2024, %v2025
      %2027 = vst [vmem:[%s261] sm:$0x1] %v2026
      %v2028 = vmul.f32 %v1966, %v1966
      %v2029 = vmul.f32 %v1967, %v1967
      %v2030 = vmul.f32 %v1968, %v1968
      %v2031 = vmul.f32 %v1969, %v1969
      %v2032 = vmul.f32 %v1970, %v1970
      %v2033 = vmul.f32 %v1971, %v1971
      %v2034 = vmul.f32 %v1972, %v1972
      %v2035 = vmul.f32 %v1973, %v1973
      %v2036 = vadd.f32 %v2028, %v2029
      %v2037 = vadd.f32 %v2036, %v2030
      %v2038 = vadd.f32 %v2037, %v2031
      %v2039 = vadd.f32 %v2038, %v2032
      %v2040 = vadd.f32 %v2039, %v2033
      %v2041 = vadd.f32 %v2040, %v2034
      %v2042 = vadd.f32 %v2041, %v2035
      %v2043 = vrot.slane %v2042, 4
      %v2044 = vadd.f32 %v2042, %v2043
      %v2045 = vrot.slane %v2044, 2
      %v2046 = vadd.f32 %v2044, %v2045
      %v2047 = vrot.slane %v2046, 1
      %v2048 = vadd.f32 %v2046, %v2047
      %2049 = vst [vmem:[%s267] sm:$0x1] %v2048
      %p2050 = scmp.lt.s32.totalorder %s20, 1
      %s2051 = scalar_select %p2050, %s20, 1
      %p2052 = scmp.lt.s32.totalorder %s21, 0
      %s2053 = scalar_select %p2052, %s21, 0
      %s2054 = smul.addr %s2051, 8
      %s2055 = sadd.s32 %s2053, %s2054
      %s2056 = smul.addr %s2055, 4
      %s2057 = scalar_lea.vmem %s2, %s2056
      %p2058 = scmp.lt.s32.totalorder %s20, 1
      %s2059 = scalar_select %p2058, %s20, 1
      %p2060 = scmp.lt.s32.totalorder %s21, 0
      %s2061 = scalar_select %p2060, %s21, 0
      %s2062 = sadd.s32 %s2061, %s2059
      %s2063 = scalar_lea.vmem %s3, %s2062
      %p2064 = scmp.lt.s32.totalorder %s20, 1
      %s2065 = scalar_select %p2064, %s20, 1
      %p2066 = scmp.lt.s32.totalorder %s21, 0
      %s2067 = scalar_select %p2066, %s21, 0
      %s2068 = sadd.s32 %s2067, %s2065
      %s2069 = scalar_lea.vmem %s4, %s2068
      // Predicated region
      $region29: #{residual_block_forward.8} parent=27 // pred_check
        %p2070 = pneg %p100
      $region30: #{residual_block_forward.8} parent=27 // pred_check_branch
        %2072 = sbr.rel (%p2070) target = $region32
      $region31: #{residual_block_forward.8} parent=27 // pred_region
        _
      $region32: #{residual_block_forward.8} parent=27 // pred_fallthru
        _
      // Predicated region
      $region33: #{residual_block_forward.8} parent=27 // pred_check
        %p2073 = pneg %p128
      $region34: #{residual_block_forward.8} parent=27 // pred_check_branch
        %2075 = sbr.rel (%p2073) target = $region36
      $region35: #{residual_block_forward.8} parent=27 // pred_region
        _
      $region36: #{residual_block_forward.8} parent=27 // pred_fallthru
        _
      // Predicated region
      $region37: #{residual_block_forward.8} parent=27 // pred_check
        %p2076 = pneg %p156
      $region38: #{residual_block_forward.8} parent=27 // pred_check_branch
        %2078 = sbr.rel (%p2076) target = $region40
      $region39: #{residual_block_forward.8} parent=27 // pred_region
        _
      $region40: #{residual_block_forward.8} parent=27 // pred_fallthru
        _
    $region28: #{residual_block_forward.8} parent=5 // pred_fallthru
      _
    %p2079 = scmp.le.s32.totalorder 2, %s11
    // Predicated region
    $region41: #{residual_block_forward.8} parent=5 // pred_check
      %p2080 = pneg %p2079
    $region42: #{residual_block_forward.8} parent=5 // pred_check_branch
      %2082 = sbr.rel (%p2080) target = $region44
    $region43: #{residual_block_forward.8} parent=5 // pred_region
      %s2083 = ssub.s32 %s11, 2
      // Predicated region
      $region45: #{residual_block_forward.8} parent=43 // pred_check
        %p2084 = pneg %p106
      $region46: #{residual_block_forward.8} parent=43 // pred_check_branch
        %2086 = sbr.rel (%p2084) target = $region48
      $region47: #{residual_block_forward.8} parent=43 // pred_region
        %p2087 = scmp.lt.s32.totalorder %s22, 1
        %s2088 = scalar_select %p2087, %s22, 1
        %p2089 = scmp.lt.s32.totalorder %s23, 0
        %s2090 = scalar_select %p2089, %s23, 0
        %s2091 = smul.addr %s2088, 8
        %s2092 = sadd.s32 %s2090, %s2091
        %s2093 = smul.addr %s2092, 4
        %s2094 = scalar_lea.vmem %s2, %s2093
      $region48: #{residual_block_forward.8} parent=43 // pred_fallthru
        _
      // Predicated region
      $region49: #{residual_block_forward.8} parent=43 // pred_check
        %p2095 = pneg %p134
      $region50: #{residual_block_forward.8} parent=43 // pred_check_branch
        %2097 = sbr.rel (%p2095) target = $region52
      $region51: #{residual_block_forward.8} parent=43 // pred_region
        %p2098 = scmp.lt.s32.totalorder %s22, 1
        %s2099 = scalar_select %p2098, %s22, 1
        %p2100 = scmp.lt.s32.totalorder %s23, 0
        %s2101 = scalar_select %p2100, %s23, 0
        %s2102 = sadd.s32 %s2101, %s2099
        %s2103 = scalar_lea.vmem %s3, %s2102
      $region52: #{residual_block_forward.8} parent=43 // pred_fallthru
        _
      // Predicated region
      $region53: #{residual_block_forward.8} parent=43 // pred_check
        %p2104 = pneg %p162
      $region54: #{residual_block_forward.8} parent=43 // pred_check_branch
        %2106 = sbr.rel (%p2104) target = $region56
      $region55: #{residual_block_forward.8} parent=43 // pred_region
        %p2107 = scmp.lt.s32.totalorder %s22, 1
        %s2108 = scalar_select %p2107, %s22, 1
        %p2109 = scmp.lt.s32.totalorder %s23, 0
        %s2110 = scalar_select %p2109, %s23, 0
        %s2111 = sadd.s32 %s2110, %s2108
        %s2112 = scalar_lea.vmem %s4, %s2111
      $region56: #{residual_block_forward.8} parent=43 // pred_fallthru
        _
    $region44: #{residual_block_forward.8} parent=5 // pred_fallthru
      _
  $region6: #{residual_block_forward.8} parent=0 // loop_footer
    %s15 = sadd.s32 1, %s11
  $region7: #{residual_block_forward.8} parent=0 // loop_footer_branch
    %10 = sbr.rel target = $region3
  $region8: #{residual_block_forward.8} parent=0 // loop_exit
    _

</llo_original>
